<compile_context>
chip_gen: v5e
topology: v5e:2x2
jax: 0.10.0
libtpu: 0.0.40
codegen_flags: <defaults>
</compile_context>

<pallas_src>
import jax
import jax.numpy as jnp
from jax.experimental import pallas as pl
from jax.experimental.pallas import tpu as pltpu

# Problem sizes (consistent with the module: dim_in, dim_out, att_heads)
N_NODES = 16        # nodes per graph
F_IN = 8            # layer_config.dim_in
C_OUT = 8           # layer_config.dim_out
HEADS = 2           # cfg.gnn.att_heads
GB = 8              # graphs processed per grid step (grid=2 -> feeds both v7x TCs)
NEG_SLOPE = 0.2     # GATv2Conv default negative_slope
MASK_BIG = 1e30
MXU_DT = jnp.bfloat16   # MXU operand dtype (accumulation stays f32)

HC = HEADS * C_OUT
NHC = N_NODES * HC
NF = N_NODES * F_IN
HN = HEADS * N_NODES
ROWS = GB * N_NODES


def gatv2_kernel(x_ref, xg_ref, adjb_ref, wrs_ref, brs_ref, wsrc_ref, bsrc_ref,
                 watt_ref, spr_ref, wrp_ref, bout_ref, out_ref):
    # ---- target-side features, lane-spread across source slots ---------------
    # wrs = W_r @ spread: column j*HC+k holds W_r[:, k], so every destination row
    # gets its x_r replicated into all N source blocks (MXU does the replication).
    xr_rows = jnp.dot(x_ref[...].astype(MXU_DT), wrs_ref[...].astype(MXU_DT),
                      preferred_element_type=jnp.float32) + brs_ref[...]   # [ROWS, NHC]

    # ---- source-side features: ONE projection per graph ----------------------
    # wsrc = kron(I_N, W_l): xl_graph[g, j*HC+k] = x_l[(g,j), k]; also the value
    # tensor for aggregation.
    xl_graph = jnp.dot(xg_ref[...].astype(MXU_DT), wsrc_ref[...].astype(MXU_DT),
                       preferred_element_type=jnp.float32) + bsrc_ref[...]  # [GB, NHC]

    # ---- GATv2 pre-activation (sublane-group view, no lane relayout) ---------
    e = xr_rows.reshape(GB, N_NODES, NHC) + xl_graph[:, None, :]
    e = jnp.where(e >= 0.0, e, NEG_SLOPE * e)          # LeakyReLU(0.2), f32
    e = e.reshape(ROWS, NHC)

    # ---- attention logits, all heads in one dot + hoisted additive mask ------
    logits = jnp.dot(e.astype(MXU_DT), watt_ref[...].astype(MXU_DT),
                     preferred_element_type=jnp.float32) + adjb_ref[...]    # [ROWS, HN]
    # TODO(synk): attention dropout (cfg.gnn.att_dropout) omitted — eval / p=0.

    # ---- per-head masked softmax (single exp launch, f32 throughout) ---------
    shifted = jnp.concatenate(
        [logits[:, h * N_NODES:(h + 1) * N_NODES]
         - jnp.max(logits[:, h * N_NODES:(h + 1) * N_NODES], axis=-1, keepdims=True)
         for h in range(HEADS)], axis=-1)
    p = jnp.exp(shifted)                                                    # [ROWS, HN]
    a = jnp.concatenate(
        [p[:, h * N_NODES:(h + 1) * N_NODES]
         * pl.reciprocal(jnp.sum(p[:, h * N_NODES:(h + 1) * N_NODES],
                                 axis=-1, keepdims=True), approx=True)
         for h in range(HEADS)], axis=-1)                                   # [ROWS, HN]

    # ---- lane-dense aggregation + projection ----------------------------------
    # spr[h*N+j, j*HC+h*C+c] = 1 : spreads a into the value layout.
    a_spread = jnp.dot(a.astype(MXU_DT), spr_ref[...].astype(MXU_DT),
                       preferred_element_type=jnp.float32)                  # [ROWS, NHC]
    prod = (a_spread.reshape(GB, N_NODES, NHC)
            * xl_graph[:, None, :]).reshape(ROWS, NHC)
    # wrp = tile(eye(HC),(N,1)) @ W_proj : lane-group sum + GraphGym projection
    # in one dense matmul; bout = concat_bias @ W_proj + b_proj.
    out_ref[...] = jnp.dot(prod.astype(MXU_DT), wrp_ref[...].astype(MXU_DT),
                           preferred_element_type=jnp.float32) + bout_ref[...]


@jax.jit
def gatv2conv_forward(x, adj, wl, bl, wr, br, att, bias, wp, bp):
    """x: [B, N, F_IN]; adj[b, i, j] = 1 iff edge j->i (self-loops included)."""
    B = x.shape[0]
    assert B % GB == 0
    f32 = jnp.float32

    # -- structured operands (plain JAX; cheap, overlapped with the kernel) -----
    spread = jnp.tile(jnp.eye(HC, dtype=f32), (1, N_NODES))            # [HC, N*HC]
    w_rs = wr @ spread                                                 # [F, N*HC]
    b_rs = jnp.tile(br, (1, N_NODES))                                  # [1, N*HC]
    w_src = jnp.kron(jnp.eye(N_NODES, dtype=f32), wl)                  # [N*F, N*HC]
    b_src = jnp.tile(bl, (1, N_NODES))                                 # [1, N*HC]
    # w_att[j*HC + h*C + c, h*N + j] = att[h, c]
    w_att = jnp.einsum('hc,hg,jk->jhcgk', att,
                       jnp.eye(HEADS, dtype=f32),
                       jnp.eye(N_NODES, dtype=f32)).reshape(NHC, HN)   # [N*HC, H*N]
    # S[h*N + j, j*HC + h*C + c] = 1
    sprd = jnp.einsum('hg,jk,c->hjkgc',
                      jnp.eye(HEADS, dtype=f32),
                      jnp.eye(N_NODES, dtype=f32),
                      jnp.ones((C_OUT,), f32)).reshape(HN, NHC)        # [H*N, N*HC]
    w_rp = jnp.tile(jnp.eye(HC, dtype=f32), (N_NODES, 1)) @ wp         # [N*HC, C]
    b_out = bias @ wp + bp                                             # [1, C]

    x_nodes = x.reshape(B * N_NODES, F_IN)
    x_graph = x.reshape(B, NF)
    # NOTE: x_nodes / x_graph are the same 4 KiB of bytes viewed two ways; the
    # duplicate DMA is negligible and avoids an in-kernel sublane<->lane relayout.
    # additive mask, 0 where edge / -1e30 where not, pre-tiled per head (h*N+j)
    adj_bias = jnp.tile((adj - 1.0) * MASK_BIG,
                        (1, 1, HEADS)).reshape(B * N_NODES, HN)

    steps = B // GB
    mm_flops = 2 * (ROWS * F_IN * NHC + GB * NF * NHC + ROWS * NHC * HN
                    + ROWS * HN * NHC + ROWS * NHC * C_OUT)
    cost = pl.CostEstimate(
        flops=steps * (mm_flops + 8 * ROWS * NHC),
        transcendentals=steps * (ROWS * HN + ROWS * HEADS),
        bytes_accessed=steps * 4 * (ROWS * F_IN + GB * NF + ROWS * HN
                                    + F_IN * NHC + NHC + NF * NHC + NHC
                                    + NHC * HN + HN * NHC + NHC * C_OUT + C_OUT
                                    + ROWS * C_OUT))

    full = lambda shape: pl.BlockSpec(shape, lambda b: (0,) * len(shape))
    y = pl.pallas_call(
        gatv2_kernel,
        out_shape=jax.ShapeDtypeStruct((B * N_NODES, C_OUT), f32),
        grid=(steps,),
        in_specs=[
            pl.BlockSpec((ROWS, F_IN), lambda b: (b, 0)),    # x_nodes
            pl.BlockSpec((GB, NF), lambda b: (b, 0)),        # x_graph (per-graph flat)
            pl.BlockSpec((ROWS, HN), lambda b: (b, 0)),      # adj bias
            full((F_IN, NHC)),                               # w_rs
            full((1, NHC)),                                  # b_rs
            full((NF, NHC)),                                 # w_src
            full((1, NHC)),                                  # b_src
            full((NHC, HN)),                                 # w_att
            full((HN, NHC)),                                 # sprd
            full((NHC, C_OUT)),                              # w_rp
            full((1, C_OUT)),                                # b_out
        ],
        out_specs=pl.BlockSpec((ROWS, C_OUT), lambda b: (b, 0)),
        compiler_params=pltpu.CompilerParams(
            dimension_semantics=("parallel",)),
        cost_estimate=cost,
    )(x_nodes, x_graph, adj_bias, w_rs, b_rs, w_src, b_src, w_att, sprd,
      w_rp, b_out)

    return y.reshape(B, N_NODES, C_OUT)


def gatv2_reference(x, adj, wl, bl, wr, br, att, bias, wp, bp):
    """Plain-JAX f32 reference of the same forward pass (for validation)."""
    B = x.shape[0]
    xl = (x @ wl + bl).reshape(B, N_NODES, HEADS, C_OUT)
    xr = (x @ wr + br).reshape(B, N_NODES, HEADS, C_OUT)
    e = xl[:, None, :, :, :] + xr[:, :, None, :, :]          # [B, dst, src, H, C]
    e = jnp.where(e >= 0, e, NEG_SLOPE * e)
    logits = jnp.einsum('bijhc,hc->bijh', e, att)             # [B, dst, src, H]
    mask = (adj > 0)[..., None]
    logits = jnp.where(mask, logits, -jnp.inf)
    m = jnp.max(logits, axis=2, keepdims=True)
    p = jnp.where(mask, jnp.exp(logits - m), 0.0)
    alpha = p / jnp.sum(p, axis=2, keepdims=True)
    aggr = jnp.einsum('bijh,bjhc->bihc', alpha, xl)           # [B, dst, H, C]
    out = aggr.reshape(B, N_NODES, HEADS * C_OUT) + bias
    return out @ wp + bp


if __name__ == "__main__":
    key = jax.random.PRNGKey(0)
    ks = jax.random.split(key, 12)
    B = 16

    # node features (batch.x), B independent graphs
    x = jax.random.normal(ks[0], (B, N_NODES, F_IN), jnp.float32)

    # edge_index per graph -> dense adjacency mask adj[b, dst, src] with
    # self-loops (matches PyG add_self_loops; assumes a simple graph).
    E = 48
    src = jax.random.randint(ks[1], (B, E), 0, N_NODES)
    dst = jax.random.randint(ks[2], (B, E), 0, N_NODES)
    adj = jnp.zeros((B, N_NODES, N_NODES), jnp.float32)
    adj = adj.at[jnp.arange(B)[:, None], dst, src].set(1.0)
    diag = jnp.arange(N_NODES)
    adj = adj.at[:, diag, diag].set(1.0)

    # Deterministic parameter init (shapes from GATv2Conv / nn.Linear)
    def glorot(k, shape):
        lim = (6.0 / (shape[0] + shape[1])) ** 0.5
        return jax.random.uniform(k, shape, jnp.float32, -lim, lim)

    wl = glorot(ks[3], (F_IN, HC))                 # lin_l.weight^T
    wr = glorot(ks[4], (F_IN, HC))                 # lin_r.weight^T
    att = glorot(ks[5], (HEADS, C_OUT))            # att (1,H,C) -> (H,C)
    bl = 0.01 * jax.random.normal(ks[6], (1, HC), jnp.float32)
    br = 0.01 * jax.random.normal(ks[7], (1, HC), jnp.float32)
    bias = 0.01 * jax.random.normal(ks[8], (1, HC), jnp.float32)   # concat bias
    wp = glorot(ks[9], (HC, C_OUT))                # proj.weight^T
    bp = 0.01 * jax.random.normal(ks[10], (1, C_OUT), jnp.float32)

    y = gatv2conv_forward(x, adj, wl, bl, wr, br, att, bias, wp, bp)
    jax.block_until_ready(y)

    y_ref = gatv2_reference(x, adj, wl, bl, wr, br, att, bias, wp, bp)
    assert y.shape == (B, N_NODES, C_OUT)
    assert bool(jnp.all(jnp.isfinite(y)))
    assert bool(jnp.allclose(y, y_ref, atol=5e-2, rtol=5e-2)), \
        float(jnp.max(jnp.abs(y - y_ref)))
    print("KERNEL_OK")
</pallas_src>

<mosaic_0001>
module attributes {stable_mosaic.version = 11 : i64} {
  func.func @gatv2_kernel(%arg0: i32, %arg1: memref<128x8xf32, #tpu.memory_space<vmem>>, %arg2: memref<8x128xf32, #tpu.memory_space<vmem>>, %arg3: memref<128x32xf32, #tpu.memory_space<vmem>>, %arg4: memref<8x256xf32, #tpu.memory_space<vmem>>, %arg5: memref<1x256xf32, #tpu.memory_space<vmem>>, %arg6: memref<128x256xf32, #tpu.memory_space<vmem>>, %arg7: memref<1x256xf32, #tpu.memory_space<vmem>>, %arg8: memref<256x32xf32, #tpu.memory_space<vmem>>, %arg9: memref<32x256xf32, #tpu.memory_space<vmem>>, %arg10: memref<256x8xf32, #tpu.memory_space<vmem>>, %arg11: memref<1x8xf32, #tpu.memory_space<vmem>>, %arg12: memref<128x8xf32, #tpu.memory_space<vmem>>) attributes {dimension_semantics = [#tpu.dimension_semantics<parallel>], iteration_bounds = array<i64: 2>, scalar_prefetch = 0 : i64, scratch_operands = 0 : i64, tpu.core_type = #tpu.core_type<tc>, window_params = [{transform_indices = @transform_0, window_bounds = array<i64: 128, 8>}, {transform_indices = @transform_1, window_bounds = array<i64: 8, 128>}, {transform_indices = @transform_2, window_bounds = array<i64: 128, 32>}, {pipeline_mode = #tpu.pipeline_mode<synchronous>, transform_indices = @transform_3, window_bounds = array<i64: 8, 256>}, {pipeline_mode = #tpu.pipeline_mode<synchronous>, transform_indices = @transform_4, window_bounds = array<i64: 1, 256>}, {pipeline_mode = #tpu.pipeline_mode<synchronous>, transform_indices = @transform_5, window_bounds = array<i64: 128, 256>}, {pipeline_mode = #tpu.pipeline_mode<synchronous>, transform_indices = @transform_6, window_bounds = array<i64: 1, 256>}, {pipeline_mode = #tpu.pipeline_mode<synchronous>, transform_indices = @transform_7, window_bounds = array<i64: 256, 32>}, {pipeline_mode = #tpu.pipeline_mode<synchronous>, transform_indices = @transform_8, window_bounds = array<i64: 32, 256>}, {pipeline_mode = #tpu.pipeline_mode<synchronous>, transform_indices = @transform_9, window_bounds = array<i64: 256, 8>}, {pipeline_mode = #tpu.pipeline_mode<synchronous>, transform_indices = @transform_10, window_bounds = array<i64: 1, 8>}, {transform_indices = @transform_11, window_bounds = array<i64: 128, 8>}]} {
    %c0 = arith.constant 0 : index
    %c0_0 = arith.constant 0 : index
    %0 = vector.load %arg1[%c0, %c0_0] : memref<128x8xf32, #tpu.memory_space<vmem>>, vector<128x8xf32>
    %1 = arith.truncf %0 : vector<128x8xf32> to vector<128x8xbf16>
    %c0_1 = arith.constant 0 : index
    %c0_2 = arith.constant 0 : index
    %2 = vector.load %arg4[%c0_1, %c0_2] : memref<8x256xf32, #tpu.memory_space<vmem>>, vector<8x256xf32>
    %3 = arith.truncf %2 : vector<8x256xf32> to vector<8x256xbf16>
    %cst = arith.constant dense<0.000000e+00> : vector<128x256xf32>
    %4 = tpu.matmul %1, %3, %cst {dimension_numbers = #tpu.dot_dimension_numbers<[1], [0], [0], [1], [0, 0, 1, 1], [], []>} : vector<128x8xbf16>, vector<8x256xbf16>, vector<128x256xf32> -> vector<128x256xf32>
    %c0_3 = arith.constant 0 : index
    %c0_4 = arith.constant 0 : index
    %5 = vector.load %arg5[%c0_3, %c0_4] : memref<1x256xf32, #tpu.memory_space<vmem>>, vector<1x256xf32>
    %6 = vector.broadcast %5 : vector<1x256xf32> to vector<128x256xf32>
    %7 = arith.addf %4, %6 : vector<128x256xf32>
    %c0_5 = arith.constant 0 : index
    %c0_6 = arith.constant 0 : index
    %8 = vector.load %arg2[%c0_5, %c0_6] : memref<8x128xf32, #tpu.memory_space<vmem>>, vector<8x128xf32>
    %9 = arith.truncf %8 : vector<8x128xf32> to vector<8x128xbf16>
    %c0_7 = arith.constant 0 : index
    %c0_8 = arith.constant 0 : index
    %10 = vector.load %arg6[%c0_7, %c0_8] : memref<128x256xf32, #tpu.memory_space<vmem>>, vector<128x256xf32>
    %11 = arith.truncf %10 : vector<128x256xf32> to vector<128x256xbf16>
    %cst_9 = arith.constant dense<0.000000e+00> : vector<8x256xf32>
    %12 = tpu.matmul %9, %11, %cst_9 {dimension_numbers = #tpu.dot_dimension_numbers<[1], [0], [0], [1], [0, 0, 1, 1], [], []>} : vector<8x128xbf16>, vector<128x256xbf16>, vector<8x256xf32> -> vector<8x256xf32>
    %c0_10 = arith.constant 0 : index
    %c0_11 = arith.constant 0 : index
    %13 = vector.load %arg7[%c0_10, %c0_11] : memref<1x256xf32, #tpu.memory_space<vmem>>, vector<1x256xf32>
    %14 = vector.broadcast %13 : vector<1x256xf32> to vector<8x256xf32>
    %15 = arith.addf %12, %14 : vector<8x256xf32>
    %16 = vector.shape_cast %7 : vector<128x256xf32> to vector<8x16x256xf32>
    %17 = vector.shape_cast %15 : vector<8x256xf32> to vector<8x1x256xf32>
    %18 = vector.broadcast %17 : vector<8x1x256xf32> to vector<8x16x256xf32>
    %19 = arith.addf %16, %18 : vector<8x16x256xf32>
    %cst_12 = arith.constant 0.000000e+00 : f32
    %20 = vector.broadcast %cst_12 : f32 to vector<8x16x256xf32>
    %21 = arith.cmpf oge, %19, %20 : vector<8x16x256xf32>
    %cst_13 = arith.constant 2.000000e-01 : f32
    %22 = vector.broadcast %cst_13 : f32 to vector<8x16x256xf32>
    %23 = arith.mulf %22, %19 : vector<8x16x256xf32>
    %24 = arith.select %21, %19, %23 : vector<8x16x256xi1>, vector<8x16x256xf32>
    %25 = vector.shape_cast %24 : vector<8x16x256xf32> to vector<128x256xf32>
    %26 = arith.truncf %25 : vector<128x256xf32> to vector<128x256xbf16>
    %c0_14 = arith.constant 0 : index
    %c0_15 = arith.constant 0 : index
    %27 = vector.load %arg8[%c0_14, %c0_15] : memref<256x32xf32, #tpu.memory_space<vmem>>, vector<256x32xf32>
    %28 = arith.truncf %27 : vector<256x32xf32> to vector<256x32xbf16>
    %cst_16 = arith.constant dense<0.000000e+00> : vector<128x32xf32>
    %29 = tpu.matmul %26, %28, %cst_16 {dimension_numbers = #tpu.dot_dimension_numbers<[1], [0], [0], [1], [0, 0, 1, 1], [], []>} : vector<128x256xbf16>, vector<256x32xbf16>, vector<128x32xf32> -> vector<128x32xf32>
    %c0_17 = arith.constant 0 : index
    %c0_18 = arith.constant 0 : index
    %30 = vector.load %arg3[%c0_17, %c0_18] : memref<128x32xf32, #tpu.memory_space<vmem>>, vector<128x32xf32>
    %31 = arith.addf %29, %30 : vector<128x32xf32>
    %32 = vector.extract_strided_slice %31 {offsets = [0, 0], sizes = [128, 16], strides = [1, 1]} : vector<128x32xf32> to vector<128x16xf32>
    %33 = vector.extract_strided_slice %31 {offsets = [0, 0], sizes = [128, 16], strides = [1, 1]} : vector<128x32xf32> to vector<128x16xf32>
    %cst_19 = arith.constant dense<0xFF800000> : vector<128xf32>
    %34 = vector.multi_reduction <maximumf>, %33, %cst_19 [1] : vector<128x16xf32> to vector<128xf32>
    %35 = vector.shape_cast %34 : vector<128xf32> to vector<128x1xf32>
    %36 = vector.broadcast %35 : vector<128x1xf32> to vector<128x16xf32>
    %37 = arith.subf %32, %36 : vector<128x16xf32>
    %38 = vector.extract_strided_slice %31 {offsets = [0, 16], sizes = [128, 16], strides = [1, 1]} : vector<128x32xf32> to vector<128x16xf32>
    %39 = vector.extract_strided_slice %31 {offsets = [0, 16], sizes = [128, 16], strides = [1, 1]} : vector<128x32xf32> to vector<128x16xf32>
    %cst_20 = arith.constant dense<0xFF800000> : vector<128xf32>
    %40 = vector.multi_reduction <maximumf>, %39, %cst_20 [1] : vector<128x16xf32> to vector<128xf32>
    %41 = vector.shape_cast %40 : vector<128xf32> to vector<128x1xf32>
    %42 = vector.broadcast %41 : vector<128x1xf32> to vector<128x16xf32>
    %43 = arith.subf %38, %42 : vector<128x16xf32>
    %44 = tpu.concatenate %37, %43 in 1 : vector<128x16xf32>, vector<128x16xf32> -> vector<128x32xf32>
    %45 = math.exp %44 : vector<128x32xf32>
    %46 = vector.extract_strided_slice %45 {offsets = [0, 0], sizes = [128, 16], strides = [1, 1]} : vector<128x32xf32> to vector<128x16xf32>
    %47 = vector.extract_strided_slice %45 {offsets = [0, 0], sizes = [128, 16], strides = [1, 1]} : vector<128x32xf32> to vector<128x16xf32>
    %cst_21 = arith.constant dense<0.000000e+00> : vector<128xf32>
    %48 = vector.multi_reduction <add>, %47, %cst_21 [1] : vector<128x16xf32> to vector<128xf32>
    %49 = vector.shape_cast %48 : vector<128xf32> to vector<128x1xf32>
    %50 = tpu.reciprocal %49 {approx = true} : vector<128x1xf32> -> vector<128x1xf32>
    %51 = vector.broadcast %50 : vector<128x1xf32> to vector<128x16xf32>
    %52 = arith.mulf %46, %51 : vector<128x16xf32>
    %53 = vector.extract_strided_slice %45 {offsets = [0, 16], sizes = [128, 16], strides = [1, 1]} : vector<128x32xf32> to vector<128x16xf32>
    %54 = vector.extract_strided_slice %45 {offsets = [0, 16], sizes = [128, 16], strides = [1, 1]} : vector<128x32xf32> to vector<128x16xf32>
    %cst_22 = arith.constant dense<0.000000e+00> : vector<128xf32>
    %55 = vector.multi_reduction <add>, %54, %cst_22 [1] : vector<128x16xf32> to vector<128xf32>
    %56 = vector.shape_cast %55 : vector<128xf32> to vector<128x1xf32>
    %57 = tpu.reciprocal %56 {approx = true} : vector<128x1xf32> -> vector<128x1xf32>
    %58 = vector.broadcast %57 : vector<128x1xf32> to vector<128x16xf32>
    %59 = arith.mulf %53, %58 : vector<128x16xf32>
    %60 = tpu.concatenate %52, %59 in 1 : vector<128x16xf32>, vector<128x16xf32> -> vector<128x32xf32>
    %61 = arith.truncf %60 : vector<128x32xf32> to vector<128x32xbf16>
    %c0_23 = arith.constant 0 : index
    %c0_24 = arith.constant 0 : index
    %62 = vector.load %arg9[%c0_23, %c0_24] : memref<32x256xf32, #tpu.memory_space<vmem>>, vector<32x256xf32>
    %63 = arith.truncf %62 : vector<32x256xf32> to vector<32x256xbf16>
    %cst_25 = arith.constant dense<0.000000e+00> : vector<128x256xf32>
    %64 = tpu.matmul %61, %63, %cst_25 {dimension_numbers = #tpu.dot_dimension_numbers<[1], [0], [0], [1], [0, 0, 1, 1], [], []>} : vector<128x32xbf16>, vector<32x256xbf16>, vector<128x256xf32> -> vector<128x256xf32>
    %65 = vector.shape_cast %64 : vector<128x256xf32> to vector<8x16x256xf32>
    %66 = vector.shape_cast %15 : vector<8x256xf32> to vector<8x1x256xf32>
    %67 = vector.broadcast %66 : vector<8x1x256xf32> to vector<8x16x256xf32>
    %68 = arith.mulf %65, %67 : vector<8x16x256xf32>
    %69 = vector.shape_cast %68 : vector<8x16x256xf32> to vector<128x256xf32>
    %70 = arith.truncf %69 : vector<128x256xf32> to vector<128x256xbf16>
    %c0_26 = arith.constant 0 : index
    %c0_27 = arith.constant 0 : index
    %71 = vector.load %arg10[%c0_26, %c0_27] : memref<256x8xf32, #tpu.memory_space<vmem>>, vector<256x8xf32>
    %72 = arith.truncf %71 : vector<256x8xf32> to vector<256x8xbf16>
    %cst_28 = arith.constant dense<0.000000e+00> : vector<128x8xf32>
    %73 = tpu.matmul %70, %72, %cst_28 {dimension_numbers = #tpu.dot_dimension_numbers<[1], [0], [0], [1], [0, 0, 1, 1], [], []>} : vector<128x256xbf16>, vector<256x8xbf16>, vector<128x8xf32> -> vector<128x8xf32>
    %c0_29 = arith.constant 0 : index
    %c0_30 = arith.constant 0 : index
    %74 = vector.load %arg11[%c0_29, %c0_30] : memref<1x8xf32, #tpu.memory_space<vmem>>, vector<1x8xf32>
    %75 = vector.broadcast %74 : vector<1x8xf32> to vector<128x8xf32>
    %76 = arith.addf %73, %75 : vector<128x8xf32>
    %c0_31 = arith.constant 0 : index
    %c0_32 = arith.constant 0 : index
    %77 = vector.load %arg12[%c0_31, %c0_32] : memref<128x8xf32, #tpu.memory_space<vmem>>, vector<128x8xf32>
    tpu.vector_store %arg12[%c0_31, %c0_32], %76 {strides = array<i32>} : memref<128x8xf32, #tpu.memory_space<vmem>>, vector<128x8xf32>,
    return
  }
  func.func @transform_0(%arg0: i32) -> (i32, i32) {
    %c0_i32 = arith.constant 0 : i32
    %c0_i32_0 = arith.constant 0 : i32
    return %arg0, %c0_i32 : i32, i32
  }
  func.func @transform_1(%arg0: i32) -> (i32, i32) {
    %c0_i32 = arith.constant 0 : i32
    %c0_i32_0 = arith.constant 0 : i32
    return %arg0, %c0_i32 : i32, i32
  }
  func.func @transform_2(%arg0: i32) -> (i32, i32) {
    %c0_i32 = arith.constant 0 : i32
    %c0_i32_0 = arith.constant 0 : i32
    return %arg0, %c0_i32 : i32, i32
  }
  func.func @transform_3(%arg0: i32) -> (i32, i32) {
    %c0_i32 = arith.constant 0 : i32
    %c0_i32_0 = arith.constant 0 : i32
    %c0_i32_1 = arith.constant 0 : i32
    return %c0_i32, %c0_i32_0 : i32, i32
  }
  func.func @transform_4(%arg0: i32) -> (i32, i32) {
    %c0_i32 = arith.constant 0 : i32
    %c0_i32_0 = arith.constant 0 : i32
    %c0_i32_1 = arith.constant 0 : i32
    return %c0_i32, %c0_i32_0 : i32, i32
  }
  func.func @transform_5(%arg0: i32) -> (i32, i32) {
    %c0_i32 = arith.constant 0 : i32
    %c0_i32_0 = arith.constant 0 : i32
    %c0_i32_1 = arith.constant 0 : i32
    return %c0_i32, %c0_i32_0 : i32, i32
  }
  func.func @transform_6(%arg0: i32) -> (i32, i32) {
    %c0_i32 = arith.constant 0 : i32
    %c0_i32_0 = arith.constant 0 : i32
    %c0_i32_1 = arith.constant 0 : i32
    return %c0_i32, %c0_i32_0 : i32, i32
  }
  func.func @transform_7(%arg0: i32) -> (i32, i32) {
    %c0_i32 = arith.constant 0 : i32
    %c0_i32_0 = arith.constant 0 : i32
    %c0_i32_1 = arith.constant 0 : i32
    return %c0_i32, %c0_i32_0 : i32, i32
  }
  func.func @transform_8(%arg0: i32) -> (i32, i32) {
    %c0_i32 = arith.constant 0 : i32
    %c0_i32_0 = arith.constant 0 : i32
    %c0_i32_1 = arith.constant 0 : i32
    return %c0_i32, %c0_i32_0 : i32, i32
  }
  func.func @transform_9(%arg0: i32) -> (i32, i32) {
    %c0_i32 = arith.constant 0 : i32
    %c0_i32_0 = arith.constant 0 : i32
    %c0_i32_1 = arith.constant 0 : i32
    return %c0_i32, %c0_i32_0 : i32, i32
  }
  func.func @transform_10(%arg0: i32) -> (i32, i32) {
    %c0_i32 = arith.constant 0 : i32
    %c0_i32_0 = arith.constant 0 : i32
    %c0_i32_1 = arith.constant 0 : i32
    return %c0_i32, %c0_i32_0 : i32, i32
  }
  func.func @transform_11(%arg0: i32) -> (i32, i32) {
    %c0_i32 = arith.constant 0 : i32
    %c0_i32_0 = arith.constant 0 : i32
    return %arg0, %c0_i32 : i32, i32
  }
}

</mosaic_0001>

<llo_original>
// kernel: tile.29
$region0: #{tile.29}
  %s0 = inlined_call_operand.vmem [shape: bf16[16,16,16], index: 0, kind: input, shape index: {}]
  %s1 = inlined_call_operand.vmem [shape: bf16[16,256], index: 1, kind: output, shape index: {}]
  $region1: #{tile.29} parent=0
    #allocation0 [shape = 'u8[16384]{0}', space=vmem, size = 0x4000, scoped, tag = 'scoped mem for output reshape']
    #allocation1 [shape = 'u8[131072]{0}', space=vmem, size = 0x20000, scoped, tag = 'scoped mem for input reshape']
    %s3 = ssub.s32 256, 1
    %s4 = scalar_lea.vmem %s0, 124
    %s5 = sshrl.u32 %s3, 1
    %s6 = sor.u32 %s3, %s5
    %s7 = sand.u32 %s6, 85
    %s8 = sshrl.u32 %s7, 1
    %s9 = sor.u32 %s7, %s8
    %s10 = sand.u32 51, %s9
    %s11 = sshrl.u32 %s10, 2
    %s12 = sor.u32 %s10, %s11
    %s13 = sand.u32 15, %s12
    %v14 = vld [vmem:[%s4] sm:%s13]
    %v15 = vunpack.c.l.bf16 %v14
    %v16 = vunpack.c.h.bf16 %v14
    %s17 = scalar_lea.vmem [#allocation1], 248
    %18 = vst [vmem:[%s17] sm:%s3] %v15
    %s19 = scalar_lea.vmem %s0, 120
    %s20 = sshrl.u32 %s3, 1
    %s21 = sor.u32 %s3, %s20
    %s22 = sand.u32 %s21, 85
    %s23 = sshrl.u32 %s22, 1
    %s24 = sor.u32 %s22, %s23
    %s25 = sand.u32 51, %s24
    %s26 = sshrl.u32 %s25, 2
    %s27 = sor.u32 %s25, %s26
    %s28 = sand.u32 15, %s27
    %v29 = vld [vmem:[%s19] sm:%s28]
    %v30 = vunpack.c.l.bf16 %v29
    %v31 = vunpack.c.h.bf16 %v29
    %s32 = scalar_lea.vmem [#allocation1], 240
    %33 = vst [vmem:[%s32] sm:%s3] %v30
    %s34 = scalar_lea.vmem %s0, 116
    %s35 = sshrl.u32 %s3, 1
    %s36 = sor.u32 %s3, %s35
    %s37 = sand.u32 %s36, 85
    %s38 = sshrl.u32 %s37, 1
    %s39 = sor.u32 %s37, %s38
    %s40 = sand.u32 51, %s39
    %s41 = sshrl.u32 %s40, 2
    %s42 = sor.u32 %s40, %s41
    %s43 = sand.u32 15, %s42
    %v44 = vld [vmem:[%s34] sm:%s43]
    %v45 = vunpack.c.l.bf16 %v44
    %v46 = vunpack.c.h.bf16 %v44
    %s47 = scalar_lea.vmem [#allocation1], 232
    %48 = vst [vmem:[%s47] sm:%s3] %v45
    %s49 = scalar_lea.vmem %s0, 112
    %s50 = sshrl.u32 %s3, 1
    %s51 = sor.u32 %s3, %s50
    %s52 = sand.u32 %s51, 85
    %s53 = sshrl.u32 %s52, 1
    %s54 = sor.u32 %s52, %s53
    %s55 = sand.u32 51, %s54
    %s56 = sshrl.u32 %s55, 2
    %s57 = sor.u32 %s55, %s56
    %s58 = sand.u32 15, %s57
    %v59 = vld [vmem:[%s49] sm:%s58]
    %v60 = vunpack.c.l.bf16 %v59
    %v61 = vunpack.c.h.bf16 %v59
    %s62 = scalar_lea.vmem [#allocation1], 224
    %63 = vst [vmem:[%s62] sm:%s3] %v60
    %s64 = scalar_lea.vmem %s0, 108
    %s65 = sshrl.u32 %s3, 1
    %s66 = sor.u32 %s3, %s65
    %s67 = sand.u32 %s66, 85
    %s68 = sshrl.u32 %s67, 1
    %s69 = sor.u32 %s67, %s68
    %s70 = sand.u32 51, %s69
    %s71 = sshrl.u32 %s70, 2
    %s72 = sor.u32 %s70, %s71
    %s73 = sand.u32 15, %s72
    %v74 = vld [vmem:[%s64] sm:%s73]
    %v75 = vunpack.c.l.bf16 %v74
    %v76 = vunpack.c.h.bf16 %v74
    %s77 = scalar_lea.vmem [#allocation1], 216
    %78 = vst [vmem:[%s77] sm:%s3] %v75
    %s79 = scalar_lea.vmem %s0, 104
    %s80 = sshrl.u32 %s3, 1
    %s81 = sor.u32 %s3, %s80
    %s82 = sand.u32 %s81, 85
    %s83 = sshrl.u32 %s82, 1
    %s84 = sor.u32 %s82, %s83
    %s85 = sand.u32 51, %s84
    %s86 = sshrl.u32 %s85, 2
    %s87 = sor.u32 %s85, %s86
    %s88 = sand.u32 15, %s87
    %v89 = vld [vmem:[%s79] sm:%s88]
    %v90 = vunpack.c.l.bf16 %v89
    %v91 = vunpack.c.h.bf16 %v89
    %s92 = scalar_lea.vmem [#allocation1], 208
    %93 = vst [vmem:[%s92] sm:%s3] %v90
    %s94 = scalar_lea.vmem %s0, 100
    %s95 = sshrl.u32 %s3, 1
    %s96 = sor.u32 %s3, %s95
    %s97 = sand.u32 %s96, 85
    %s98 = sshrl.u32 %s97, 1
    %s99 = sor.u32 %s97, %s98
    %s100 = sand.u32 51, %s99
    %s101 = sshrl.u32 %s100, 2
    %s102 = sor.u32 %s100, %s101
    %s103 = sand.u32 15, %s102
    %v104 = vld [vmem:[%s94] sm:%s103]
    %v105 = vunpack.c.l.bf16 %v104
    %v106 = vunpack.c.h.bf16 %v104
    %s107 = scalar_lea.vmem [#allocation1], 200
    %108 = vst [vmem:[%s107] sm:%s3] %v105
    %s109 = scalar_lea.vmem %s0, 96
    %s110 = sshrl.u32 %s3, 1
    %s111 = sor.u32 %s3, %s110
    %s112 = sand.u32 %s111, 85
    %s113 = sshrl.u32 %s112, 1
    %s114 = sor.u32 %s112, %s113
    %s115 = sand.u32 51, %s114
    %s116 = sshrl.u32 %s115, 2
    %s117 = sor.u32 %s115, %s116
    %s118 = sand.u32 15, %s117
    %v119 = vld [vmem:[%s109] sm:%s118]
    %v120 = vunpack.c.l.bf16 %v119
    %v121 = vunpack.c.h.bf16 %v119
    %s122 = scalar_lea.vmem [#allocation1], 192
    %123 = vst [vmem:[%s122] sm:%s3] %v120
    %s124 = scalar_lea.vmem %s0, 92
    %s125 = sshrl.u32 %s3, 1
    %s126 = sor.u32 %s3, %s125
    %s127 = sand.u32 %s126, 85
    %s128 = sshrl.u32 %s127, 1
    %s129 = sor.u32 %s127, %s128
    %s130 = sand.u32 51, %s129
    %s131 = sshrl.u32 %s130, 2
    %s132 = sor.u32 %s130, %s131
    %s133 = sand.u32 15, %s132
    %v134 = vld [vmem:[%s124] sm:%s133]
    %v135 = vunpack.c.l.bf16 %v134
    %v136 = vunpack.c.h.bf16 %v134
    %s137 = scalar_lea.vmem [#allocation1], 184
    %138 = vst [vmem:[%s137] sm:%s3] %v135
    %s139 = scalar_lea.vmem %s0, 88
    %s140 = sshrl.u32 %s3, 1
    %s141 = sor.u32 %s3, %s140
    %s142 = sand.u32 %s141, 85
    %s143 = sshrl.u32 %s142, 1
    %s144 = sor.u32 %s142, %s143
    %s145 = sand.u32 51, %s144
    %s146 = sshrl.u32 %s145, 2
    %s147 = sor.u32 %s145, %s146
    %s148 = sand.u32 15, %s147
    %v149 = vld [vmem:[%s139] sm:%s148]
    %v150 = vunpack.c.l.bf16 %v149
    %v151 = vunpack.c.h.bf16 %v149
    %s152 = scalar_lea.vmem [#allocation1], 176
    %153 = vst [vmem:[%s152] sm:%s3] %v150
    %s154 = scalar_lea.vmem %s0, 84
    %s155 = sshrl.u32 %s3, 1
    %s156 = sor.u32 %s3, %s155
    %s157 = sand.u32 %s156, 85
    %s158 = sshrl.u32 %s157, 1
    %s159 = sor.u32 %s157, %s158
    %s160 = sand.u32 51, %s159
    %s161 = sshrl.u32 %s160, 2
    %s162 = sor.u32 %s160, %s161
    %s163 = sand.u32 15, %s162
    %v164 = vld [vmem:[%s154] sm:%s163]
    %v165 = vunpack.c.l.bf16 %v164
    %v166 = vunpack.c.h.bf16 %v164
    %s167 = scalar_lea.vmem [#allocation1], 168
    %168 = vst [vmem:[%s167] sm:%s3] %v165
    %s169 = scalar_lea.vmem %s0, 80
    %s170 = sshrl.u32 %s3, 1
    %s171 = sor.u32 %s3, %s170
    %s172 = sand.u32 %s171, 85
    %s173 = sshrl.u32 %s172, 1
    %s174 = sor.u32 %s172, %s173
    %s175 = sand.u32 51, %s174
    %s176 = sshrl.u32 %s175, 2
    %s177 = sor.u32 %s175, %s176
    %s178 = sand.u32 15, %s177
    %v179 = vld [vmem:[%s169] sm:%s178]
    %v180 = vunpack.c.l.bf16 %v179
    %v181 = vunpack.c.h.bf16 %v179
    %s182 = scalar_lea.vmem [#allocation1], 160
    %183 = vst [vmem:[%s182] sm:%s3] %v180
    %s184 = scalar_lea.vmem %s0, 76
    %s185 = sshrl.u32 %s3, 1
    %s186 = sor.u32 %s3, %s185
    %s187 = sand.u32 %s186, 85
    %s188 = sshrl.u32 %s187, 1
    %s189 = sor.u32 %s187, %s188
    %s190 = sand.u32 51, %s189
    %s191 = sshrl.u32 %s190, 2
    %s192 = sor.u32 %s190, %s191
    %s193 = sand.u32 15, %s192
    %v194 = vld [vmem:[%s184] sm:%s193]
    %v195 = vunpack.c.l.bf16 %v194
    %v196 = vunpack.c.h.bf16 %v194
    %s197 = scalar_lea.vmem [#allocation1], 152
    %198 = vst [vmem:[%s197] sm:%s3] %v195
    %s199 = scalar_lea.vmem %s0, 72
    %s200 = sshrl.u32 %s3, 1
    %s201 = sor.u32 %s3, %s200
    %s202 = sand.u32 %s201, 85
    %s203 = sshrl.u32 %s202, 1
    %s204 = sor.u32 %s202, %s203
    %s205 = sand.u32 51, %s204
    %s206 = sshrl.u32 %s205, 2
    %s207 = sor.u32 %s205, %s206
    %s208 = sand.u32 15, %s207
    %v209 = vld [vmem:[%s199] sm:%s208]
    %v210 = vunpack.c.l.bf16 %v209
    %v211 = vunpack.c.h.bf16 %v209
    %s212 = scalar_lea.vmem [#allocation1], 144
    %213 = vst [vmem:[%s212] sm:%s3] %v210
    %s214 = scalar_lea.vmem %s0, 68
    %s215 = sshrl.u32 %s3, 1
    %s216 = sor.u32 %s3, %s215
    %s217 = sand.u32 %s216, 85
    %s218 = sshrl.u32 %s217, 1
    %s219 = sor.u32 %s217, %s218
    %s220 = sand.u32 51, %s219
    %s221 = sshrl.u32 %s220, 2
    %s222 = sor.u32 %s220, %s221
    %s223 = sand.u32 15, %s222
    %v224 = vld [vmem:[%s214] sm:%s223]
    %v225 = vunpack.c.l.bf16 %v224
    %v226 = vunpack.c.h.bf16 %v224
    %s227 = scalar_lea.vmem [#allocation1], 136
    %228 = vst [vmem:[%s227] sm:%s3] %v225
    %s229 = scalar_lea.vmem %s0, 64
    %s230 = sshrl.u32 %s3, 1
    %s231 = sor.u32 %s3, %s230
    %s232 = sand.u32 %s231, 85
    %s233 = sshrl.u32 %s232, 1
    %s234 = sor.u32 %s232, %s233
    %s235 = sand.u32 51, %s234
    %s236 = sshrl.u32 %s235, 2
    %s237 = sor.u32 %s235, %s236
    %s238 = sand.u32 15, %s237
    %v239 = vld [vmem:[%s229] sm:%s238]
    %v240 = vunpack.c.l.bf16 %v239
    %v241 = vunpack.c.h.bf16 %v239
    %s242 = scalar_lea.vmem [#allocation1], 128
    %243 = vst [vmem:[%s242] sm:%s3] %v240
    %s244 = scalar_lea.vmem %s0, 60
    %s245 = sshrl.u32 %s3, 1
    %s246 = sor.u32 %s3, %s245
    %s247 = sand.u32 %s246, 85
    %s248 = sshrl.u32 %s247, 1
    %s249 = sor.u32 %s247, %s248
    %s250 = sand.u32 51, %s249
    %s251 = sshrl.u32 %s250, 2
    %s252 = sor.u32 %s250, %s251
    %s253 = sand.u32 15, %s252
    %v254 = vld [vmem:[%s244] sm:%s253]
    %v255 = vunpack.c.l.bf16 %v254
    %v256 = vunpack.c.h.bf16 %v254
    %s257 = scalar_lea.vmem [#allocation1], 120
    %258 = vst [vmem:[%s257] sm:%s3] %v255
    %s259 = scalar_lea.vmem %s0, 56
    %s260 = sshrl.u32 %s3, 1
    %s261 = sor.u32 %s3, %s260
    %s262 = sand.u32 %s261, 85
    %s263 = sshrl.u32 %s262, 1
    %s264 = sor.u32 %s262, %s263
    %s265 = sand.u32 51, %s264
    %s266 = sshrl.u32 %s265, 2
    %s267 = sor.u32 %s265, %s266
    %s268 = sand.u32 15, %s267
    %v269 = vld [vmem:[%s259] sm:%s268]
    %v270 = vunpack.c.l.bf16 %v269
    %v271 = vunpack.c.h.bf16 %v269
    %s272 = scalar_lea.vmem [#allocation1], 112
    %273 = vst [vmem:[%s272] sm:%s3] %v270
    %s274 = scalar_lea.vmem %s0, 52
    %s275 = sshrl.u32 %s3, 1
    %s276 = sor.u32 %s3, %s275
    %s277 = sand.u32 %s276, 85
    %s278 = sshrl.u32 %s277, 1
    %s279 = sor.u32 %s277, %s278
    %s280 = sand.u32 51, %s279
    %s281 = sshrl.u32 %s280, 2
    %s282 = sor.u32 %s280, %s281
    %s283 = sand.u32 15, %s282
    %v284 = vld [vmem:[%s274] sm:%s283]
    %v285 = vunpack.c.l.bf16 %v284
    %v286 = vunpack.c.h.bf16 %v284
    %s287 = scalar_lea.vmem [#allocation1], 104
    %288 = vst [vmem:[%s287] sm:%s3] %v285
    %s289 = scalar_lea.vmem %s0, 48
    %s290 = sshrl.u32 %s3, 1
    %s291 = sor.u32 %s3, %s290
    %s292 = sand.u32 %s291, 85
    %s293 = sshrl.u32 %s292, 1
    %s294 = sor.u32 %s292, %s293
    %s295 = sand.u32 51, %s294
    %s296 = sshrl.u32 %s295, 2
    %s297 = sor.u32 %s295, %s296
    %s298 = sand.u32 15, %s297
    %v299 = vld [vmem:[%s289] sm:%s298]
    %v300 = vunpack.c.l.bf16 %v299
    %v301 = vunpack.c.h.bf16 %v299
    %s302 = scalar_lea.vmem [#allocation1], 96
    %303 = vst [vmem:[%s302] sm:%s3] %v300
    %s304 = scalar_lea.vmem %s0, 44
    %s305 = sshrl.u32 %s3, 1
    %s306 = sor.u32 %s3, %s305
    %s307 = sand.u32 %s306, 85
    %s308 = sshrl.u32 %s307, 1
    %s309 = sor.u32 %s307, %s308
    %s310 = sand.u32 51, %s309
    %s311 = sshrl.u32 %s310, 2
    %s312 = sor.u32 %s310, %s311
    %s313 = sand.u32 15, %s312
    %v314 = vld [vmem:[%s304] sm:%s313]
    %v315 = vunpack.c.l.bf16 %v314
    %v316 = vunpack.c.h.bf16 %v314
    %s317 = scalar_lea.vmem [#allocation1], 88
    %318 = vst [vmem:[%s317] sm:%s3] %v315
    %s319 = scalar_lea.vmem %s0, 40
    %s320 = sshrl.u32 %s3, 1
    %s321 = sor.u32 %s3, %s320
    %s322 = sand.u32 %s321, 85
    %s323 = sshrl.u32 %s322, 1
    %s324 = sor.u32 %s322, %s323
    %s325 = sand.u32 51, %s324
    %s326 = sshrl.u32 %s325, 2
    %s327 = sor.u32 %s325, %s326
    %s328 = sand.u32 15, %s327
    %v329 = vld [vmem:[%s319] sm:%s328]
    %v330 = vunpack.c.l.bf16 %v329
    %v331 = vunpack.c.h.bf16 %v329
    %s332 = scalar_lea.vmem [#allocation1], 80
    %333 = vst [vmem:[%s332] sm:%s3] %v330
    %s334 = scalar_lea.vmem %s0, 36
    %s335 = sshrl.u32 %s3, 1
    %s336 = sor.u32 %s3, %s335
    %s337 = sand.u32 %s336, 85
    %s338 = sshrl.u32 %s337, 1
    %s339 = sor.u32 %s337, %s338
    %s340 = sand.u32 51, %s339
    %s341 = sshrl.u32 %s340, 2
    %s342 = sor.u32 %s340, %s341
    %s343 = sand.u32 15, %s342
    %v344 = vld [vmem:[%s334] sm:%s343]
    %v345 = vunpack.c.l.bf16 %v344
    %v346 = vunpack.c.h.bf16 %v344
    %s347 = scalar_lea.vmem [#allocation1], 72
    %348 = vst [vmem:[%s347] sm:%s3] %v345
    %s349 = scalar_lea.vmem %s0, 32
    %s350 = sshrl.u32 %s3, 1
    %s351 = sor.u32 %s3, %s350
    %s352 = sand.u32 %s351, 85
    %s353 = sshrl.u32 %s352, 1
    %s354 = sor.u32 %s352, %s353
    %s355 = sand.u32 51, %s354
    %s356 = sshrl.u32 %s355, 2
    %s357 = sor.u32 %s355, %s356
    %s358 = sand.u32 15, %s357
    %v359 = vld [vmem:[%s349] sm:%s358]
    %v360 = vunpack.c.l.bf16 %v359
    %v361 = vunpack.c.h.bf16 %v359
    %s362 = scalar_lea.vmem [#allocation1], 64
    %363 = vst [vmem:[%s362] sm:%s3] %v360
    %s364 = scalar_lea.vmem %s0, 28
    %s365 = sshrl.u32 %s3, 1
    %s366 = sor.u32 %s3, %s365
    %s367 = sand.u32 %s366, 85
    %s368 = sshrl.u32 %s367, 1
    %s369 = sor.u32 %s367, %s368
    %s370 = sand.u32 51, %s369
    %s371 = sshrl.u32 %s370, 2
    %s372 = sor.u32 %s370, %s371
    %s373 = sand.u32 15, %s372
    %v374 = vld [vmem:[%s364] sm:%s373]
    %v375 = vunpack.c.l.bf16 %v374
    %v376 = vunpack.c.h.bf16 %v374
    %s377 = scalar_lea.vmem [#allocation1], 56
    %378 = vst [vmem:[%s377] sm:%s3] %v375
    %s379 = scalar_lea.vmem %s0, 24
    %s380 = sshrl.u32 %s3, 1
    %s381 = sor.u32 %s3, %s380
    %s382 = sand.u32 %s381, 85
    %s383 = sshrl.u32 %s382, 1
    %s384 = sor.u32 %s382, %s383
    %s385 = sand.u32 51, %s384
    %s386 = sshrl.u32 %s385, 2
    %s387 = sor.u32 %s385, %s386
    %s388 = sand.u32 15, %s387
    %v389 = vld [vmem:[%s379] sm:%s388]
    %v390 = vunpack.c.l.bf16 %v389
    %v391 = vunpack.c.h.bf16 %v389
    %s392 = scalar_lea.vmem [#allocation1], 48
    %393 = vst [vmem:[%s392] sm:%s3] %v390
    %s394 = scalar_lea.vmem %s0, 20
    %s395 = sshrl.u32 %s3, 1
    %s396 = sor.u32 %s3, %s395
    %s397 = sand.u32 %s396, 85
    %s398 = sshrl.u32 %s397, 1
    %s399 = sor.u32 %s397, %s398
    %s400 = sand.u32 51, %s399
    %s401 = sshrl.u32 %s400, 2
    %s402 = sor.u32 %s400, %s401
    %s403 = sand.u32 15, %s402
    %v404 = vld [vmem:[%s394] sm:%s403]
    %v405 = vunpack.c.l.bf16 %v404
    %v406 = vunpack.c.h.bf16 %v404
    %s407 = scalar_lea.vmem [#allocation1], 40
    %408 = vst [vmem:[%s407] sm:%s3] %v405
    %s409 = scalar_lea.vmem %s0, 16
    %s410 = sshrl.u32 %s3, 1
    %s411 = sor.u32 %s3, %s410
    %s412 = sand.u32 %s411, 85
    %s413 = sshrl.u32 %s412, 1
    %s414 = sor.u32 %s412, %s413
    %s415 = sand.u32 51, %s414
    %s416 = sshrl.u32 %s415, 2
    %s417 = sor.u32 %s415, %s416
    %s418 = sand.u32 15, %s417
    %v419 = vld [vmem:[%s409] sm:%s418]
    %v420 = vunpack.c.l.bf16 %v419
    %v421 = vunpack.c.h.bf16 %v419
    %s422 = scalar_lea.vmem [#allocation1], 32
    %423 = vst [vmem:[%s422] sm:%s3] %v420
    %s424 = scalar_lea.vmem %s0, 12
    %s425 = sshrl.u32 %s3, 1
    %s426 = sor.u32 %s3, %s425
    %s427 = sand.u32 %s426, 85
    %s428 = sshrl.u32 %s427, 1
    %s429 = sor.u32 %s427, %s428
    %s430 = sand.u32 51, %s429
    %s431 = sshrl.u32 %s430, 2
    %s432 = sor.u32 %s430, %s431
    %s433 = sand.u32 15, %s432
    %v434 = vld [vmem:[%s424] sm:%s433]
    %v435 = vunpack.c.l.bf16 %v434
    %v436 = vunpack.c.h.bf16 %v434
    %s437 = scalar_lea.vmem [#allocation1], 24
    %438 = vst [vmem:[%s437] sm:%s3] %v435
    %s439 = scalar_lea.vmem %s0, 8
    %s440 = sshrl.u32 %s3, 1
    %s441 = sor.u32 %s3, %s440
    %s442 = sand.u32 %s441, 85
    %s443 = sshrl.u32 %s442, 1
    %s444 = sor.u32 %s442, %s443
    %s445 = sand.u32 51, %s444
    %s446 = sshrl.u32 %s445, 2
    %s447 = sor.u32 %s445, %s446
    %s448 = sand.u32 15, %s447
    %v449 = vld [vmem:[%s439] sm:%s448]
    %v450 = vunpack.c.l.bf16 %v449
    %v451 = vunpack.c.h.bf16 %v449
    %s452 = scalar_lea.vmem [#allocation1], 16
    %453 = vst [vmem:[%s452] sm:%s3] %v450
    %s454 = scalar_lea.vmem %s0, 4
    %s455 = sshrl.u32 %s3, 1
    %s456 = sor.u32 %s3, %s455
    %s457 = sand.u32 %s456, 85
    %s458 = sshrl.u32 %s457, 1
    %s459 = sor.u32 %s457, %s458
    %s460 = sand.u32 51, %s459
    %s461 = sshrl.u32 %s460, 2
    %s462 = sor.u32 %s460, %s461
    %s463 = sand.u32 15, %s462
    %v464 = vld [vmem:[%s454] sm:%s463]
    %v465 = vunpack.c.l.bf16 %v464
    %v466 = vunpack.c.h.bf16 %v464
    %s467 = scalar_lea.vmem [#allocation1], 8
    %468 = vst [vmem:[%s467] sm:%s3] %v465
    %s469 = sshrl.u32 %s3, 1
    %s470 = sor.u32 %s3, %s469
    %s471 = sand.u32 %s470, 85
    %s472 = sshrl.u32 %s471, 1
    %s473 = sor.u32 %s471, %s472
    %s474 = sand.u32 51, %s473
    %s475 = sshrl.u32 %s474, 2
    %s476 = sor.u32 %s474, %s475
    %s477 = sand.u32 15, %s476
    %v478 = vld [vmem:[%s0] sm:%s477]
    %v479 = vunpack.c.l.bf16 %v478
    %v480 = vunpack.c.h.bf16 %v478
    %481 = vst [vmem:[#allocation1] sm:%s3] %v479
    %v482 = vld [vmem:[#allocation1] ss:$8 sm:$0xf]
    %v483 = vld [vmem:[#allocation1] ss:$8 sm:$0xf0]
    %vm484 = vcmask 1047556
    %v485 = vsel %vm484, %v483, %v482
    %vm486 = vcmask 130048
    %487 = vst.msk [vmem:[#allocation0] ss:$8 sm:$0x3] %vm486, %v485
    %s488 = scalar_lea.vmem [#allocation0], 4294967281
    %489 = vst.msk [vmem:[%s488] ss:$8 sm:$0xc] %vm486, %v485
    %s490 = scalar_lea.vmem [#allocation0], 4294967266
    %491 = vst.msk [vmem:[%s490] ss:$8 sm:$0x30] %vm486, %v485
    %s492 = scalar_lea.vmem [#allocation0], 4294967251
    %493 = vst.msk [vmem:[%s492] ss:$8 sm:$0xc0] %vm486, %v485
    %s494 = scalar_lea.vmem [#allocation1], 64
    %v495 = vld [vmem:[%s494] ss:$8 sm:$0xf]
    %s496 = scalar_lea.vmem [#allocation1], 64
    %v497 = vld [vmem:[%s496] ss:$8 sm:$0xf0]
    %vm498 = vcmask 1047556
    %v499 = vsel %vm498, %v497, %v495
    %vm500 = vcmask 130048
    %s501 = scalar_lea.vmem [#allocation0], 4
    %502 = vst.msk [vmem:[%s501] ss:$8 sm:$0x3] %vm500, %v499
    %s503 = scalar_lea.vmem [#allocation0], 4294967285
    %504 = vst.msk [vmem:[%s503] ss:$8 sm:$0xc] %vm500, %v499
    %s505 = scalar_lea.vmem [#allocation0], 4294967270
    %506 = vst.msk [vmem:[%s505] ss:$8 sm:$0x30] %vm500, %v499
    %s507 = scalar_lea.vmem [#allocation0], 4294967255
    %508 = vst.msk [vmem:[%s507] ss:$8 sm:$0xc0] %vm500, %v499
    %s509 = scalar_lea.vmem [#allocation1], 128
    %v510 = vld [vmem:[%s509] ss:$8 sm:$0xf]
    %s511 = scalar_lea.vmem [#allocation1], 128
    %v512 = vld [vmem:[%s511] ss:$8 sm:$0xf0]
    %vm513 = vcmask 1047556
    %v514 = vsel %vm513, %v512, %v510
    %vm515 = vcmask 130048
    %s516 = scalar_lea.vmem [#allocation0], 16
    %517 = vst.msk [vmem:[%s516] ss:$8 sm:$0x3] %vm515, %v514
    %s518 = scalar_lea.vmem [#allocation0], 1
    %519 = vst.msk [vmem:[%s518] ss:$8 sm:$0xc] %vm515, %v514
    %s520 = scalar_lea.vmem [#allocation0], 4294967282
    %521 = vst.msk [vmem:[%s520] ss:$8 sm:$0x30] %vm515, %v514
    %s522 = scalar_lea.vmem [#allocation0], 4294967267
    %523 = vst.msk [vmem:[%s522] ss:$8 sm:$0xc0] %vm515, %v514
    %s524 = scalar_lea.vmem [#allocation1], 192
    %v525 = vld [vmem:[%s524] ss:$8 sm:$0xf]
    %s526 = scalar_lea.vmem [#allocation1], 192
    %v527 = vld [vmem:[%s526] ss:$8 sm:$0xf0]
    %vm528 = vcmask 1047556
    %v529 = vsel %vm528, %v527, %v525
    %vm530 = vcmask 130048
    %s531 = scalar_lea.vmem [#allocation0], 20
    %532 = vst.msk [vmem:[%s531] ss:$8 sm:$0x3] %vm530, %v529
    %s533 = scalar_lea.vmem [#allocation0], 5
    %534 = vst.msk [vmem:[%s533] ss:$8 sm:$0xc] %vm530, %v529
    %s535 = scalar_lea.vmem [#allocation0], 4294967286
    %536 = vst.msk [vmem:[%s535] ss:$8 sm:$0x30] %vm530, %v529
    %s537 = scalar_lea.vmem [#allocation0], 4294967271
    %538 = vst.msk [vmem:[%s537] ss:$8 sm:$0xc0] %vm530, %v529
    %s539 = scalar_lea.vmem [#allocation1], 7
    %s540 = smov 3
    %v541 = vld [vmem:[%s539] ss:$16 sm:%s540]
    %s542 = scalar_lea.vmem [#allocation1], 7
    %s543 = smov 12
    %v544 = vld [vmem:[%s542] ss:$16 sm:%s543]
    %vm545 = vcmask 1043458
    %v546 = vsel %vm545, %v544, %v541
    %s547 = scalar_lea.vmem [#allocation1], 7
    %s548 = smov 48
    %v549 = vld [vmem:[%s547] ss:$16 sm:%s548]
    %vm550 = vcmask 1045508
    %v551 = vsel %vm550, %v549, %v546
    %s552 = scalar_lea.vmem [#allocation1], 7
    %s553 = smov 192
    %v554 = vld [vmem:[%s552] ss:$16 sm:%s553]
    %vm555 = vcmask 1047558
    %v556 = vsel %vm555, %v554, %v551
    %557 = vrot.lane.b32.xlu0 %v556, 112
    %v558 = vpop.permute.xlu0 %557
    %vm559 = vcmask 1048448
    %560 = vst.msk [vmem:[#allocation0] sm:$0xff] %vm559, %v558
    %s561 = scalar_lea.vmem [#allocation1], 15
    %s562 = smov 3
    %v563 = vld [vmem:[%s561] ss:$16 sm:%s562]
    %s564 = scalar_lea.vmem [#allocation1], 15
    %s565 = smov 12
    %v566 = vld [vmem:[%s564] ss:$16 sm:%s565]
    %vm567 = vcmask 1043458
    %v568 = vsel %vm567, %v566, %v563
    %s569 = scalar_lea.vmem [#allocation1], 15
    %s570 = smov 48
    %v571 = vld [vmem:[%s569] ss:$16 sm:%s570]
    %vm572 = vcmask 1045508
    %v573 = vsel %vm572, %v571, %v568
    %s574 = scalar_lea.vmem [#allocation1], 15
    %s575 = smov 192
    %v576 = vld [vmem:[%s574] ss:$16 sm:%s575]
    %vm577 = vcmask 1047558
    %v578 = vsel %vm577, %v576, %v573
    %579 = vrot.lane.b32.xlu0 %v578, 112
    %v580 = vpop.permute.xlu0 %579
    %vm581 = vcmask 1048448
    %s582 = scalar_lea.vmem [#allocation0], 8
    %583 = vst.msk [vmem:[%s582] sm:$0xff] %vm581, %v580
    %s584 = scalar_lea.vmem [#allocation1], 135
    %s585 = smov 3
    %v586 = vld [vmem:[%s584] ss:$16 sm:%s585]
    %s587 = scalar_lea.vmem [#allocation1], 135
    %s588 = smov 12
    %v589 = vld [vmem:[%s587] ss:$16 sm:%s588]
    %vm590 = vcmask 1043458
    %v591 = vsel %vm590, %v589, %v586
    %s592 = scalar_lea.vmem [#allocation1], 135
    %s593 = smov 48
    %v594 = vld [vmem:[%s592] ss:$16 sm:%s593]
    %vm595 = vcmask 1045508
    %v596 = vsel %vm595, %v594, %v591
    %s597 = scalar_lea.vmem [#allocation1], 135
    %s598 = smov 192
    %v599 = vld [vmem:[%s597] ss:$16 sm:%s598]
    %vm600 = vcmask 1047558
    %v601 = vsel %vm600, %v599, %v596
    %602 = vrot.lane.b32.xlu0 %v601, 112
    %v603 = vpop.permute.xlu0 %602
    %vm604 = vcmask 1048448
    %s605 = scalar_lea.vmem [#allocation0], 16
    %606 = vst.msk [vmem:[%s605] sm:$0xff] %vm604, %v603
    %s607 = scalar_lea.vmem [#allocation1], 143
    %s608 = smov 3
    %v609 = vld [vmem:[%s607] ss:$16 sm:%s608]
    %s610 = scalar_lea.vmem [#allocation1], 143
    %s611 = smov 12
    %v612 = vld [vmem:[%s610] ss:$16 sm:%s611]
    %vm613 = vcmask 1043458
    %v614 = vsel %vm613, %v612, %v609
    %s615 = scalar_lea.vmem [#allocation1], 143
    %s616 = smov 48
    %v617 = vld [vmem:[%s615] ss:$16 sm:%s616]
    %vm618 = vcmask 1045508
    %v619 = vsel %vm618, %v617, %v614
    %s620 = scalar_lea.vmem [#allocation1], 143
    %s621 = smov 192
    %v622 = vld [vmem:[%s620] ss:$16 sm:%s621]
    %vm623 = vcmask 1047558
    %v624 = vsel %vm623, %v622, %v619
    %625 = vrot.lane.b32.xlu0 %v624, 112
    %v626 = vpop.permute.xlu0 %625
    %vm627 = vcmask 1048448
    %s628 = scalar_lea.vmem [#allocation0], 24
    %629 = vst.msk [vmem:[%s628] sm:$0xff] %vm627, %v626
    %s630 = scalar_lea.vmem [#allocation1], 6
    %s631 = smov 3
    %v632 = vld [vmem:[%s630] ss:$16 sm:%s631]
    %s633 = scalar_lea.vmem [#allocation1], 6
    %s634 = smov 12
    %v635 = vld [vmem:[%s633] ss:$16 sm:%s634]
    %vm636 = vcmask 1043458
    %v637 = vsel %vm636, %v635, %v632
    %s638 = scalar_lea.vmem [#allocation1], 6
    %s639 = smov 48
    %v640 = vld [vmem:[%s638] ss:$16 sm:%s639]
    %vm641 = vcmask 1045508
    %v642 = vsel %vm641, %v640, %v637
    %s643 = scalar_lea.vmem [#allocation1], 6
    %s644 = smov 192
    %v645 = vld [vmem:[%s643] ss:$16 sm:%s644]
    %vm646 = vcmask 1047558
    %v647 = vsel %vm646, %v645, %v642
    %648 = vrot.lane.b32.xlu0 %v647, 96
    %v649 = vpop.permute.xlu0 %648
    %vm650 = vcmask 917248
    %651 = vst.msk [vmem:[#allocation0] sm:$0xff] %vm650, %v649
    %s652 = scalar_lea.vmem [#allocation1], 14
    %s653 = smov 3
    %v654 = vld [vmem:[%s652] ss:$16 sm:%s653]
    %s655 = scalar_lea.vmem [#allocation1], 14
    %s656 = smov 12
    %v657 = vld [vmem:[%s655] ss:$16 sm:%s656]
    %vm658 = vcmask 1043458
    %v659 = vsel %vm658, %v657, %v654
    %s660 = scalar_lea.vmem [#allocation1], 14
    %s661 = smov 48
    %v662 = vld [vmem:[%s660] ss:$16 sm:%s661]
    %vm663 = vcmask 1045508
    %v664 = vsel %vm663, %v662, %v659
    %s665 = scalar_lea.vmem [#allocation1], 14
    %s666 = smov 192
    %v667 = vld [vmem:[%s665] ss:$16 sm:%s666]
    %vm668 = vcmask 1047558
    %v669 = vsel %vm668, %v667, %v664
    %670 = vrot.lane.b32.xlu0 %v669, 96
    %v671 = vpop.permute.xlu0 %670
    %vm672 = vcmask 917248
    %s673 = scalar_lea.vmem [#allocation0], 8
    %674 = vst.msk [vmem:[%s673] sm:$0xff] %vm672, %v671
    %s675 = scalar_lea.vmem [#allocation1], 134
    %s676 = smov 3
    %v677 = vld [vmem:[%s675] ss:$16 sm:%s676]
    %s678 = scalar_lea.vmem [#allocation1], 134
    %s679 = smov 12
    %v680 = vld [vmem:[%s678] ss:$16 sm:%s679]
    %vm681 = vcmask 1043458
    %v682 = vsel %vm681, %v680, %v677
    %s683 = scalar_lea.vmem [#allocation1], 134
    %s684 = smov 48
    %v685 = vld [vmem:[%s683] ss:$16 sm:%s684]
    %vm686 = vcmask 1045508
    %v687 = vsel %vm686, %v685, %v682
    %s688 = scalar_lea.vmem [#allocation1], 134
    %s689 = smov 192
    %v690 = vld [vmem:[%s688] ss:$16 sm:%s689]
    %vm691 = vcmask 1047558
    %v692 = vsel %vm691, %v690, %v687
    %693 = vrot.lane.b32.xlu0 %v692, 96
    %v694 = vpop.permute.xlu0 %693
    %vm695 = vcmask 917248
    %s696 = scalar_lea.vmem [#allocation0], 16
    %697 = vst.msk [vmem:[%s696] sm:$0xff] %vm695, %v694
    %s698 = scalar_lea.vmem [#allocation1], 142
    %s699 = smov 3
    %v700 = vld [vmem:[%s698] ss:$16 sm:%s699]
    %s701 = scalar_lea.vmem [#allocation1], 142
    %s702 = smov 12
    %v703 = vld [vmem:[%s701] ss:$16 sm:%s702]
    %vm704 = vcmask 1043458
    %v705 = vsel %vm704, %v703, %v700
    %s706 = scalar_lea.vmem [#allocation1], 142
    %s707 = smov 48
    %v708 = vld [vmem:[%s706] ss:$16 sm:%s707]
    %vm709 = vcmask 1045508
    %v710 = vsel %vm709, %v708, %v705
    %s711 = scalar_lea.vmem [#allocation1], 142
    %s712 = smov 192
    %v713 = vld [vmem:[%s711] ss:$16 sm:%s712]
    %vm714 = vcmask 1047558
    %v715 = vsel %vm714, %v713, %v710
    %716 = vrot.lane.b32.xlu0 %v715, 96
    %v717 = vpop.permute.xlu0 %716
    %vm718 = vcmask 917248
    %s719 = scalar_lea.vmem [#allocation0], 24
    %720 = vst.msk [vmem:[%s719] sm:$0xff] %vm718, %v717
    %s721 = scalar_lea.vmem [#allocation1], 5
    %s722 = smov 3
    %v723 = vld [vmem:[%s721] ss:$16 sm:%s722]
    %s724 = scalar_lea.vmem [#allocation1], 5
    %s725 = smov 12
    %v726 = vld [vmem:[%s724] ss:$16 sm:%s725]
    %vm727 = vcmask 1043458
    %v728 = vsel %vm727, %v726, %v723
    %s729 = scalar_lea.vmem [#allocation1], 5
    %s730 = smov 48
    %v731 = vld [vmem:[%s729] ss:$16 sm:%s730]
    %vm732 = vcmask 1045508
    %v733 = vsel %vm732, %v731, %v728
    %s734 = scalar_lea.vmem [#allocation1], 5
    %s735 = smov 192
    %v736 = vld [vmem:[%s734] ss:$16 sm:%s735]
    %vm737 = vcmask 1047558
    %v738 = vsel %vm737, %v736, %v733
    %739 = vrot.lane.b32.xlu0 %v738, 80
    %v740 = vpop.permute.xlu0 %739
    %vm741 = vcmask 786048
    %742 = vst.msk [vmem:[#allocation0] sm:$0xff] %vm741, %v740
    %s743 = scalar_lea.vmem [#allocation1], 13
    %s744 = smov 3
    %v745 = vld [vmem:[%s743] ss:$16 sm:%s744]
    %s746 = scalar_lea.vmem [#allocation1], 13
    %s747 = smov 12
    %v748 = vld [vmem:[%s746] ss:$16 sm:%s747]
    %vm749 = vcmask 1043458
    %v750 = vsel %vm749, %v748, %v745
    %s751 = scalar_lea.vmem [#allocation1], 13
    %s752 = smov 48
    %v753 = vld [vmem:[%s751] ss:$16 sm:%s752]
    %vm754 = vcmask 1045508
    %v755 = vsel %vm754, %v753, %v750
    %s756 = scalar_lea.vmem [#allocation1], 13
    %s757 = smov 192
    %v758 = vld [vmem:[%s756] ss:$16 sm:%s757]
    %vm759 = vcmask 1047558
    %v760 = vsel %vm759, %v758, %v755
    %761 = vrot.lane.b32.xlu0 %v760, 80
    %v762 = vpop.permute.xlu0 %761
    %vm763 = vcmask 786048
    %s764 = scalar_lea.vmem [#allocation0], 8
    %765 = vst.msk [vmem:[%s764] sm:$0xff] %vm763, %v762
    %s766 = scalar_lea.vmem [#allocation1], 133
    %s767 = smov 3
    %v768 = vld [vmem:[%s766] ss:$16 sm:%s767]
    %s769 = scalar_lea.vmem [#allocation1], 133
    %s770 = smov 12
    %v771 = vld [vmem:[%s769] ss:$16 sm:%s770]
    %vm772 = vcmask 1043458
    %v773 = vsel %vm772, %v771, %v768
    %s774 = scalar_lea.vmem [#allocation1], 133
    %s775 = smov 48
    %v776 = vld [vmem:[%s774] ss:$16 sm:%s775]
    %vm777 = vcmask 1045508
    %v778 = vsel %vm777, %v776, %v773
    %s779 = scalar_lea.vmem [#allocation1], 133
    %s780 = smov 192
    %v781 = vld [vmem:[%s779] ss:$16 sm:%s780]
    %vm782 = vcmask 1047558
    %v783 = vsel %vm782, %v781, %v778
    %784 = vrot.lane.b32.xlu0 %v783, 80
    %v785 = vpop.permute.xlu0 %784
    %vm786 = vcmask 786048
    %s787 = scalar_lea.vmem [#allocation0], 16
    %788 = vst.msk [vmem:[%s787] sm:$0xff] %vm786, %v785
    %s789 = scalar_lea.vmem [#allocation1], 141
    %s790 = smov 3
    %v791 = vld [vmem:[%s789] ss:$16 sm:%s790]
    %s792 = scalar_lea.vmem [#allocation1], 141
    %s793 = smov 12
    %v794 = vld [vmem:[%s792] ss:$16 sm:%s793]
    %vm795 = vcmask 1043458
    %v796 = vsel %vm795, %v794, %v791
    %s797 = scalar_lea.vmem [#allocation1], 141
    %s798 = smov 48
    %v799 = vld [vmem:[%s797] ss:$16 sm:%s798]
    %vm800 = vcmask 1045508
    %v801 = vsel %vm800, %v799, %v796
    %s802 = scalar_lea.vmem [#allocation1], 141
    %s803 = smov 192
    %v804 = vld [vmem:[%s802] ss:$16 sm:%s803]
    %vm805 = vcmask 1047558
    %v806 = vsel %vm805, %v804, %v801
    %807 = vrot.lane.b32.xlu0 %v806, 80
    %v808 = vpop.permute.xlu0 %807
    %vm809 = vcmask 786048
    %s810 = scalar_lea.vmem [#allocation0], 24
    %811 = vst.msk [vmem:[%s810] sm:$0xff] %vm809, %v808
    %s812 = scalar_lea.vmem [#allocation1], 4
    %s813 = smov 3
    %v814 = vld [vmem:[%s812] ss:$16 sm:%s813]
    %s815 = scalar_lea.vmem [#allocation1], 4
    %s816 = smov 12
    %v817 = vld [vmem:[%s815] ss:$16 sm:%s816]
    %vm818 = vcmask 1043458
    %v819 = vsel %vm818, %v817, %v814
    %s820 = scalar_lea.vmem [#allocation1], 4
    %s821 = smov 48
    %v822 = vld [vmem:[%s820] ss:$16 sm:%s821]
    %vm823 = vcmask 1045508
    %v824 = vsel %vm823, %v822, %v819
    %s825 = scalar_lea.vmem [#allocation1], 4
    %s826 = smov 192
    %v827 = vld [vmem:[%s825] ss:$16 sm:%s826]
    %vm828 = vcmask 1047558
    %v829 = vsel %vm828, %v827, %v824
    %830 = vrot.lane.b32.xlu0 %v829, 64
    %v831 = vpop.permute.xlu0 %830
    %vm832 = vcmask 654848
    %833 = vst.msk [vmem:[#allocation0] sm:$0xff] %vm832, %v831
    %s834 = scalar_lea.vmem [#allocation1], 12
    %s835 = smov 3
    %v836 = vld [vmem:[%s834] ss:$16 sm:%s835]
    %s837 = scalar_lea.vmem [#allocation1], 12
    %s838 = smov 12
    %v839 = vld [vmem:[%s837] ss:$16 sm:%s838]
    %vm840 = vcmask 1043458
    %v841 = vsel %vm840, %v839, %v836
    %s842 = scalar_lea.vmem [#allocation1], 12
    %s843 = smov 48
    %v844 = vld [vmem:[%s842] ss:$16 sm:%s843]
    %vm845 = vcmask 1045508
    %v846 = vsel %vm845, %v844, %v841
    %s847 = scalar_lea.vmem [#allocation1], 12
    %s848 = smov 192
    %v849 = vld [vmem:[%s847] ss:$16 sm:%s848]
    %vm850 = vcmask 1047558
    %v851 = vsel %vm850, %v849, %v846
    %852 = vrot.lane.b32.xlu0 %v851, 64
    %v853 = vpop.permute.xlu0 %852
    %vm854 = vcmask 654848
    %s855 = scalar_lea.vmem [#allocation0], 8
    %856 = vst.msk [vmem:[%s855] sm:$0xff] %vm854, %v853
    %s857 = scalar_lea.vmem [#allocation1], 132
    %s858 = smov 3
    %v859 = vld [vmem:[%s857] ss:$16 sm:%s858]
    %s860 = scalar_lea.vmem [#allocation1], 132
    %s861 = smov 12
    %v862 = vld [vmem:[%s860] ss:$16 sm:%s861]
    %vm863 = vcmask 1043458
    %v864 = vsel %vm863, %v862, %v859
    %s865 = scalar_lea.vmem [#allocation1], 132
    %s866 = smov 48
    %v867 = vld [vmem:[%s865] ss:$16 sm:%s866]
    %vm868 = vcmask 1045508
    %v869 = vsel %vm868, %v867, %v864
    %s870 = scalar_lea.vmem [#allocation1], 132
    %s871 = smov 192
    %v872 = vld [vmem:[%s870] ss:$16 sm:%s871]
    %vm873 = vcmask 1047558
    %v874 = vsel %vm873, %v872, %v869
    %875 = vrot.lane.b32.xlu0 %v874, 64
    %v876 = vpop.permute.xlu0 %875
    %vm877 = vcmask 654848
    %s878 = scalar_lea.vmem [#allocation0], 16
    %879 = vst.msk [vmem:[%s878] sm:$0xff] %vm877, %v876
    %s880 = scalar_lea.vmem [#allocation1], 140
    %s881 = smov 3
    %v882 = vld [vmem:[%s880] ss:$16 sm:%s881]
    %s883 = scalar_lea.vmem [#allocation1], 140
    %s884 = smov 12
    %v885 = vld [vmem:[%s883] ss:$16 sm:%s884]
    %vm886 = vcmask 1043458
    %v887 = vsel %vm886, %v885, %v882
    %s888 = scalar_lea.vmem [#allocation1], 140
    %s889 = smov 48
    %v890 = vld [vmem:[%s888] ss:$16 sm:%s889]
    %vm891 = vcmask 1045508
    %v892 = vsel %vm891, %v890, %v887
    %s893 = scalar_lea.vmem [#allocation1], 140
    %s894 = smov 192
    %v895 = vld [vmem:[%s893] ss:$16 sm:%s894]
    %vm896 = vcmask 1047558
    %v897 = vsel %vm896, %v895, %v892
    %898 = vrot.lane.b32.xlu0 %v897, 64
    %v899 = vpop.permute.xlu0 %898
    %vm900 = vcmask 654848
    %s901 = scalar_lea.vmem [#allocation0], 24
    %902 = vst.msk [vmem:[%s901] sm:$0xff] %vm900, %v899
    %s903 = scalar_lea.vmem [#allocation1], 3
    %s904 = smov 3
    %v905 = vld [vmem:[%s903] ss:$16 sm:%s904]
    %s906 = scalar_lea.vmem [#allocation1], 3
    %s907 = smov 12
    %v908 = vld [vmem:[%s906] ss:$16 sm:%s907]
    %vm909 = vcmask 1043458
    %v910 = vsel %vm909, %v908, %v905
    %s911 = scalar_lea.vmem [#allocation1], 3
    %s912 = smov 48
    %v913 = vld [vmem:[%s911] ss:$16 sm:%s912]
    %vm914 = vcmask 1045508
    %v915 = vsel %vm914, %v913, %v910
    %s916 = scalar_lea.vmem [#allocation1], 3
    %s917 = smov 192
    %v918 = vld [vmem:[%s916] ss:$16 sm:%s917]
    %vm919 = vcmask 1047558
    %v920 = vsel %vm919, %v918, %v915
    %921 = vrot.lane.b32.xlu0 %v920, 48
    %v922 = vpop.permute.xlu0 %921
    %vm923 = vcmask 523648
    %924 = vst.msk [vmem:[#allocation0] sm:$0xff] %vm923, %v922
    %s925 = scalar_lea.vmem [#allocation1], 11
    %s926 = smov 3
    %v927 = vld [vmem:[%s925] ss:$16 sm:%s926]
    %s928 = scalar_lea.vmem [#allocation1], 11
    %s929 = smov 12
    %v930 = vld [vmem:[%s928] ss:$16 sm:%s929]
    %vm931 = vcmask 1043458
    %v932 = vsel %vm931, %v930, %v927
    %s933 = scalar_lea.vmem [#allocation1], 11
    %s934 = smov 48
    %v935 = vld [vmem:[%s933] ss:$16 sm:%s934]
    %vm936 = vcmask 1045508
    %v937 = vsel %vm936, %v935, %v932
    %s938 = scalar_lea.vmem [#allocation1], 11
    %s939 = smov 192
    %v940 = vld [vmem:[%s938] ss:$16 sm:%s939]
    %vm941 = vcmask 1047558
    %v942 = vsel %vm941, %v940, %v937
    %943 = vrot.lane.b32.xlu0 %v942, 48
    %v944 = vpop.permute.xlu0 %943
    %vm945 = vcmask 523648
    %s946 = scalar_lea.vmem [#allocation0], 8
    %947 = vst.msk [vmem:[%s946] sm:$0xff] %vm945, %v944
    %s948 = scalar_lea.vmem [#allocation1], 131
    %s949 = smov 3
    %v950 = vld [vmem:[%s948] ss:$16 sm:%s949]
    %s951 = scalar_lea.vmem [#allocation1], 131
    %s952 = smov 12
    %v953 = vld [vmem:[%s951] ss:$16 sm:%s952]
    %vm954 = vcmask 1043458
    %v955 = vsel %vm954, %v953, %v950
    %s956 = scalar_lea.vmem [#allocation1], 131
    %s957 = smov 48
    %v958 = vld [vmem:[%s956] ss:$16 sm:%s957]
    %vm959 = vcmask 1045508
    %v960 = vsel %vm959, %v958, %v955
    %s961 = scalar_lea.vmem [#allocation1], 131
    %s962 = smov 192
    %v963 = vld [vmem:[%s961] ss:$16 sm:%s962]
    %vm964 = vcmask 1047558
    %v965 = vsel %vm964, %v963, %v960
    %966 = vrot.lane.b32.xlu0 %v965, 48
    %v967 = vpop.permute.xlu0 %966
    %vm968 = vcmask 523648
    %s969 = scalar_lea.vmem [#allocation0], 16
    %970 = vst.msk [vmem:[%s969] sm:$0xff] %vm968, %v967
    %s971 = scalar_lea.vmem [#allocation1], 139
    %s972 = smov 3
    %v973 = vld [vmem:[%s971] ss:$16 sm:%s972]
    %s974 = scalar_lea.vmem [#allocation1], 139
    %s975 = smov 12
    %v976 = vld [vmem:[%s974] ss:$16 sm:%s975]
    %vm977 = vcmask 1043458
    %v978 = vsel %vm977, %v976, %v973
    %s979 = scalar_lea.vmem [#allocation1], 139
    %s980 = smov 48
    %v981 = vld [vmem:[%s979] ss:$16 sm:%s980]
    %vm982 = vcmask 1045508
    %v983 = vsel %vm982, %v981, %v978
    %s984 = scalar_lea.vmem [#allocation1], 139
    %s985 = smov 192
    %v986 = vld [vmem:[%s984] ss:$16 sm:%s985]
    %vm987 = vcmask 1047558
    %v988 = vsel %vm987, %v986, %v983
    %989 = vrot.lane.b32.xlu0 %v988, 48
    %v990 = vpop.permute.xlu0 %989
    %vm991 = vcmask 523648
    %s992 = scalar_lea.vmem [#allocation0], 24
    %993 = vst.msk [vmem:[%s992] sm:$0xff] %vm991, %v990
    %s994 = scalar_lea.vmem [#allocation1], 2
    %s995 = smov 3
    %v996 = vld [vmem:[%s994] ss:$16 sm:%s995]
    %s997 = scalar_lea.vmem [#allocation1], 2
    %s998 = smov 12
    %v999 = vld [vmem:[%s997] ss:$16 sm:%s998]
    %vm1000 = vcmask 1043458
    %v1001 = vsel %vm1000, %v999, %v996
    %s1002 = scalar_lea.vmem [#allocation1], 2
    %s1003 = smov 48
    %v1004 = vld [vmem:[%s1002] ss:$16 sm:%s1003]
    %vm1005 = vcmask 1045508
    %v1006 = vsel %vm1005, %v1004, %v1001
    %s1007 = scalar_lea.vmem [#allocation1], 2
    %s1008 = smov 192
    %v1009 = vld [vmem:[%s1007] ss:$16 sm:%s1008]
    %vm1010 = vcmask 1047558
    %v1011 = vsel %vm1010, %v1009, %v1006
    %1012 = vrot.lane.b32.xlu0 %v1011, 32
    %v1013 = vpop.permute.xlu0 %1012
    %vm1014 = vcmask 392448
    %1015 = vst.msk [vmem:[#allocation0] sm:$0xff] %vm1014, %v1013
    %s1016 = scalar_lea.vmem [#allocation1], 10
    %s1017 = smov 3
    %v1018 = vld [vmem:[%s1016] ss:$16 sm:%s1017]
    %s1019 = scalar_lea.vmem [#allocation1], 10
    %s1020 = smov 12
    %v1021 = vld [vmem:[%s1019] ss:$16 sm:%s1020]
    %vm1022 = vcmask 1043458
    %v1023 = vsel %vm1022, %v1021, %v1018
    %s1024 = scalar_lea.vmem [#allocation1], 10
    %s1025 = smov 48
    %v1026 = vld [vmem:[%s1024] ss:$16 sm:%s1025]
    %vm1027 = vcmask 1045508
    %v1028 = vsel %vm1027, %v1026, %v1023
    %s1029 = scalar_lea.vmem [#allocation1], 10
    %s1030 = smov 192
    %v1031 = vld [vmem:[%s1029] ss:$16 sm:%s1030]
    %vm1032 = vcmask 1047558
    %v1033 = vsel %vm1032, %v1031, %v1028
    %1034 = vrot.lane.b32.xlu0 %v1033, 32
    %v1035 = vpop.permute.xlu0 %1034
    %vm1036 = vcmask 392448
    %s1037 = scalar_lea.vmem [#allocation0], 8
    %1038 = vst.msk [vmem:[%s1037] sm:$0xff] %vm1036, %v1035
    %s1039 = scalar_lea.vmem [#allocation1], 130
    %s1040 = smov 3
    %v1041 = vld [vmem:[%s1039] ss:$16 sm:%s1040]
    %s1042 = scalar_lea.vmem [#allocation1], 130
    %s1043 = smov 12
    %v1044 = vld [vmem:[%s1042] ss:$16 sm:%s1043]
    %vm1045 = vcmask 1043458
    %v1046 = vsel %vm1045, %v1044, %v1041
    %s1047 = scalar_lea.vmem [#allocation1], 130
    %s1048 = smov 48
    %v1049 = vld [vmem:[%s1047] ss:$16 sm:%s1048]
    %vm1050 = vcmask 1045508
    %v1051 = vsel %vm1050, %v1049, %v1046
    %s1052 = scalar_lea.vmem [#allocation1], 130
    %s1053 = smov 192
    %v1054 = vld [vmem:[%s1052] ss:$16 sm:%s1053]
    %vm1055 = vcmask 1047558
    %v1056 = vsel %vm1055, %v1054, %v1051
    %1057 = vrot.lane.b32.xlu0 %v1056, 32
    %v1058 = vpop.permute.xlu0 %1057
    %vm1059 = vcmask 392448
    %s1060 = scalar_lea.vmem [#allocation0], 16
    %1061 = vst.msk [vmem:[%s1060] sm:$0xff] %vm1059, %v1058
    %s1062 = scalar_lea.vmem [#allocation1], 138
    %s1063 = smov 3
    %v1064 = vld [vmem:[%s1062] ss:$16 sm:%s1063]
    %s1065 = scalar_lea.vmem [#allocation1], 138
    %s1066 = smov 12
    %v1067 = vld [vmem:[%s1065] ss:$16 sm:%s1066]
    %vm1068 = vcmask 1043458
    %v1069 = vsel %vm1068, %v1067, %v1064
    %s1070 = scalar_lea.vmem [#allocation1], 138
    %s1071 = smov 48
    %v1072 = vld [vmem:[%s1070] ss:$16 sm:%s1071]
    %vm1073 = vcmask 1045508
    %v1074 = vsel %vm1073, %v1072, %v1069
    %s1075 = scalar_lea.vmem [#allocation1], 138
    %s1076 = smov 192
    %v1077 = vld [vmem:[%s1075] ss:$16 sm:%s1076]
    %vm1078 = vcmask 1047558
    %v1079 = vsel %vm1078, %v1077, %v1074
    %1080 = vrot.lane.b32.xlu0 %v1079, 32
    %v1081 = vpop.permute.xlu0 %1080
    %vm1082 = vcmask 392448
    %s1083 = scalar_lea.vmem [#allocation0], 24
    %1084 = vst.msk [vmem:[%s1083] sm:$0xff] %vm1082, %v1081
    %s1085 = scalar_lea.vmem [#allocation1], 1
    %s1086 = smov 3
    %v1087 = vld [vmem:[%s1085] ss:$16 sm:%s1086]
    %s1088 = scalar_lea.vmem [#allocation1], 1
    %s1089 = smov 12
    %v1090 = vld [vmem:[%s1088] ss:$16 sm:%s1089]
    %vm1091 = vcmask 1043458
    %v1092 = vsel %vm1091, %v1090, %v1087
    %s1093 = scalar_lea.vmem [#allocation1], 1
    %s1094 = smov 48
    %v1095 = vld [vmem:[%s1093] ss:$16 sm:%s1094]
    %vm1096 = vcmask 1045508
    %v1097 = vsel %vm1096, %v1095, %v1092
    %s1098 = scalar_lea.vmem [#allocation1], 1
    %s1099 = smov 192
    %v1100 = vld [vmem:[%s1098] ss:$16 sm:%s1099]
    %vm1101 = vcmask 1047558
    %v1102 = vsel %vm1101, %v1100, %v1097
    %1103 = vrot.lane.b32.xlu0 %v1102, 16
    %v1104 = vpop.permute.xlu0 %1103
    %vm1105 = vcmask 261248
    %1106 = vst.msk [vmem:[#allocation0] sm:$0xff] %vm1105, %v1104
    %s1107 = scalar_lea.vmem [#allocation1], 9
    %s1108 = smov 3
    %v1109 = vld [vmem:[%s1107] ss:$16 sm:%s1108]
    %s1110 = scalar_lea.vmem [#allocation1], 9
    %s1111 = smov 12
    %v1112 = vld [vmem:[%s1110] ss:$16 sm:%s1111]
    %vm1113 = vcmask 1043458
    %v1114 = vsel %vm1113, %v1112, %v1109
    %s1115 = scalar_lea.vmem [#allocation1], 9
    %s1116 = smov 48
    %v1117 = vld [vmem:[%s1115] ss:$16 sm:%s1116]
    %vm1118 = vcmask 1045508
    %v1119 = vsel %vm1118, %v1117, %v1114
    %s1120 = scalar_lea.vmem [#allocation1], 9
    %s1121 = smov 192
    %v1122 = vld [vmem:[%s1120] ss:$16 sm:%s1121]
    %vm1123 = vcmask 1047558
    %v1124 = vsel %vm1123, %v1122, %v1119
    %1125 = vrot.lane.b32.xlu0 %v1124, 16
    %v1126 = vpop.permute.xlu0 %1125
    %vm1127 = vcmask 261248
    %s1128 = scalar_lea.vmem [#allocation0], 8
    %1129 = vst.msk [vmem:[%s1128] sm:$0xff] %vm1127, %v1126
    %s1130 = scalar_lea.vmem [#allocation1], 129
    %s1131 = smov 3
    %v1132 = vld [vmem:[%s1130] ss:$16 sm:%s1131]
    %s1133 = scalar_lea.vmem [#allocation1], 129
    %s1134 = smov 12
    %v1135 = vld [vmem:[%s1133] ss:$16 sm:%s1134]
    %vm1136 = vcmask 1043458
    %v1137 = vsel %vm1136, %v1135, %v1132
    %s1138 = scalar_lea.vmem [#allocation1], 129
    %s1139 = smov 48
    %v1140 = vld [vmem:[%s1138] ss:$16 sm:%s1139]
    %vm1141 = vcmask 1045508
    %v1142 = vsel %vm1141, %v1140, %v1137
    %s1143 = scalar_lea.vmem [#allocation1], 129
    %s1144 = smov 192
    %v1145 = vld [vmem:[%s1143] ss:$16 sm:%s1144]
    %vm1146 = vcmask 1047558
    %v1147 = vsel %vm1146, %v1145, %v1142
    %1148 = vrot.lane.b32.xlu0 %v1147, 16
    %v1149 = vpop.permute.xlu0 %1148
    %vm1150 = vcmask 261248
    %s1151 = scalar_lea.vmem [#allocation0], 16
    %1152 = vst.msk [vmem:[%s1151] sm:$0xff] %vm1150, %v1149
    %s1153 = scalar_lea.vmem [#allocation1], 137
    %s1154 = smov 3
    %v1155 = vld [vmem:[%s1153] ss:$16 sm:%s1154]
    %s1156 = scalar_lea.vmem [#allocation1], 137
    %s1157 = smov 12
    %v1158 = vld [vmem:[%s1156] ss:$16 sm:%s1157]
    %vm1159 = vcmask 1043458
    %v1160 = vsel %vm1159, %v1158, %v1155
    %s1161 = scalar_lea.vmem [#allocation1], 137
    %s1162 = smov 48
    %v1163 = vld [vmem:[%s1161] ss:$16 sm:%s1162]
    %vm1164 = vcmask 1045508
    %v1165 = vsel %vm1164, %v1163, %v1160
    %s1166 = scalar_lea.vmem [#allocation1], 137
    %s1167 = smov 192
    %v1168 = vld [vmem:[%s1166] ss:$16 sm:%s1167]
    %vm1169 = vcmask 1047558
    %v1170 = vsel %vm1169, %v1168, %v1165
    %1171 = vrot.lane.b32.xlu0 %v1170, 16
    %v1172 = vpop.permute.xlu0 %1171
    %vm1173 = vcmask 261248
    %s1174 = scalar_lea.vmem [#allocation0], 24
    %1175 = vst.msk [vmem:[%s1174] sm:$0xff] %vm1173, %v1172
    %s1177 = ssub.s32 256, 1
    %v1178 = vld [vmem:[#allocation0] sm:%s1177]
    %v1179 = vpack.c.bf16 0.0, %v1178
    %s1181 = ssub.s32 16, 1
    %1182 = vst [vmem:[%s1] sm:%s1181] %v1179
    %s1183 = scalar_lea.vmem [#allocation0], 8
    %v1184 = vld [vmem:[%s1183] sm:%s1177]
    %v1185 = vpack.c.bf16 0.0, %v1184
    %s1187 = ssub.s32 16, 1
    %s1188 = scalar_lea.vmem %s1, 4
    %1189 = vst [vmem:[%s1188] sm:%s1187] %v1185
    %s1190 = scalar_lea.vmem [#allocation0], 16
    %v1191 = vld [vmem:[%s1190] sm:%s1177]
    %v1192 = vpack.c.bf16 0.0, %v1191
    %s1194 = ssub.s32 16, 1
    %s1195 = scalar_lea.vmem %s1, 8
    %1196 = vst [vmem:[%s1195] sm:%s1194] %v1192
    %s1197 = scalar_lea.vmem [#allocation0], 24
    %v1198 = vld [vmem:[%s1197] sm:%s1177]
    %v1199 = vpack.c.bf16 0.0, %v1198
    %s1201 = ssub.s32 16, 1
    %s1202 = scalar_lea.vmem %s1, 12
    %1203 = vst [vmem:[%s1202] sm:%s1201] %v1199

// kernel: tile.49
$region0: #{tile.49}
  %s0 = inlined_call_operand.vmem [shape: f32[16,1,16,2,16], index: 0, kind: input, shape index: {}]
  %s1 = inlined_call_operand.vmem [shape: f32[256,32], index: 1, kind: output, shape index: {}]
  %v2 = vld [vmem:[%s0] ss:$8 sm:$0xf]
  %v3 = vld [vmem:[%s0] ss:$8 sm:$0xf0]
  %vm4 = vcmask 1047556
  %v5 = vsel %vm4, %v3, %v2
  %vm6 = vcmask 130048
  %7 = vst.msk [vmem:[%s1] ss:$8 sm:$0x3] %vm6, %v5
  %s8 = scalar_lea.vmem %s1, 4294967281
  %9 = vst.msk [vmem:[%s8] ss:$8 sm:$0xc] %vm6, %v5
  %s10 = scalar_lea.vmem %s1, 4294967266
  %11 = vst.msk [vmem:[%s10] ss:$8 sm:$0x30] %vm6, %v5
  %s12 = scalar_lea.vmem %s1, 4294967251
  %13 = vst.msk [vmem:[%s12] ss:$8 sm:$0xc0] %vm6, %v5
  %s14 = scalar_lea.vmem %s0, 64
  %v15 = vld [vmem:[%s14] ss:$8 sm:$0xf]
  %s16 = scalar_lea.vmem %s0, 64
  %v17 = vld [vmem:[%s16] ss:$8 sm:$0xf0]
  %vm18 = vcmask 1047556
  %v19 = vsel %vm18, %v17, %v15
  %vm20 = vcmask 130048
  %s21 = scalar_lea.vmem %s1, 4
  %22 = vst.msk [vmem:[%s21] ss:$8 sm:$0x3] %vm20, %v19
  %s23 = scalar_lea.vmem %s1, 4294967285
  %24 = vst.msk [vmem:[%s23] ss:$8 sm:$0xc] %vm20, %v19
  %s25 = scalar_lea.vmem %s1, 4294967270
  %26 = vst.msk [vmem:[%s25] ss:$8 sm:$0x30] %vm20, %v19
  %s27 = scalar_lea.vmem %s1, 4294967255
  %28 = vst.msk [vmem:[%s27] ss:$8 sm:$0xc0] %vm20, %v19
  %s29 = scalar_lea.vmem %s0, 128
  %v30 = vld [vmem:[%s29] ss:$8 sm:$0xf]
  %s31 = scalar_lea.vmem %s0, 128
  %v32 = vld [vmem:[%s31] ss:$8 sm:$0xf0]
  %vm33 = vcmask 1047556
  %v34 = vsel %vm33, %v32, %v30
  %vm35 = vcmask 130048
  %s36 = scalar_lea.vmem %s1, 16
  %37 = vst.msk [vmem:[%s36] ss:$8 sm:$0x3] %vm35, %v34
  %s38 = scalar_lea.vmem %s1, 1
  %39 = vst.msk [vmem:[%s38] ss:$8 sm:$0xc] %vm35, %v34
  %s40 = scalar_lea.vmem %s1, 4294967282
  %41 = vst.msk [vmem:[%s40] ss:$8 sm:$0x30] %vm35, %v34
  %s42 = scalar_lea.vmem %s1, 4294967267
  %43 = vst.msk [vmem:[%s42] ss:$8 sm:$0xc0] %vm35, %v34
  %s44 = scalar_lea.vmem %s0, 192
  %v45 = vld [vmem:[%s44] ss:$8 sm:$0xf]
  %s46 = scalar_lea.vmem %s0, 192
  %v47 = vld [vmem:[%s46] ss:$8 sm:$0xf0]
  %vm48 = vcmask 1047556
  %v49 = vsel %vm48, %v47, %v45
  %vm50 = vcmask 130048
  %s51 = scalar_lea.vmem %s1, 20
  %52 = vst.msk [vmem:[%s51] ss:$8 sm:$0x3] %vm50, %v49
  %s53 = scalar_lea.vmem %s1, 5
  %54 = vst.msk [vmem:[%s53] ss:$8 sm:$0xc] %vm50, %v49
  %s55 = scalar_lea.vmem %s1, 4294967286
  %56 = vst.msk [vmem:[%s55] ss:$8 sm:$0x30] %vm50, %v49
  %s57 = scalar_lea.vmem %s1, 4294967271
  %58 = vst.msk [vmem:[%s57] ss:$8 sm:$0xc0] %vm50, %v49
  %s59 = scalar_lea.vmem %s0, 256
  %v60 = vld [vmem:[%s59] ss:$8 sm:$0xf]
  %s61 = scalar_lea.vmem %s0, 256
  %v62 = vld [vmem:[%s61] ss:$8 sm:$0xf0]
  %vm63 = vcmask 1047556
  %v64 = vsel %vm63, %v62, %v60
  %vm65 = vcmask 130048
  %s66 = scalar_lea.vmem %s1, 32
  %67 = vst.msk [vmem:[%s66] ss:$8 sm:$0x3] %vm65, %v64
  %s68 = scalar_lea.vmem %s1, 17
  %69 = vst.msk [vmem:[%s68] ss:$8 sm:$0xc] %vm65, %v64
  %s70 = scalar_lea.vmem %s1, 2
  %71 = vst.msk [vmem:[%s70] ss:$8 sm:$0x30] %vm65, %v64
  %s72 = scalar_lea.vmem %s1, 4294967283
  %73 = vst.msk [vmem:[%s72] ss:$8 sm:$0xc0] %vm65, %v64
  %s74 = scalar_lea.vmem %s0, 320
  %v75 = vld [vmem:[%s74] ss:$8 sm:$0xf]
  %s76 = scalar_lea.vmem %s0, 320
  %v77 = vld [vmem:[%s76] ss:$8 sm:$0xf0]
  %vm78 = vcmask 1047556
  %v79 = vsel %vm78, %v77, %v75
  %vm80 = vcmask 130048
  %s81 = scalar_lea.vmem %s1, 36
  %82 = vst.msk [vmem:[%s81] ss:$8 sm:$0x3] %vm80, %v79
  %s83 = scalar_lea.vmem %s1, 21
  %84 = vst.msk [vmem:[%s83] ss:$8 sm:$0xc] %vm80, %v79
  %s85 = scalar_lea.vmem %s1, 6
  %86 = vst.msk [vmem:[%s85] ss:$8 sm:$0x30] %vm80, %v79
  %s87 = scalar_lea.vmem %s1, 4294967287
  %88 = vst.msk [vmem:[%s87] ss:$8 sm:$0xc0] %vm80, %v79
  %s89 = scalar_lea.vmem %s0, 384
  %v90 = vld [vmem:[%s89] ss:$8 sm:$0xf]
  %s91 = scalar_lea.vmem %s0, 384
  %v92 = vld [vmem:[%s91] ss:$8 sm:$0xf0]
  %vm93 = vcmask 1047556
  %v94 = vsel %vm93, %v92, %v90
  %vm95 = vcmask 130048
  %s96 = scalar_lea.vmem %s1, 48
  %97 = vst.msk [vmem:[%s96] ss:$8 sm:$0x3] %vm95, %v94
  %s98 = scalar_lea.vmem %s1, 33
  %99 = vst.msk [vmem:[%s98] ss:$8 sm:$0xc] %vm95, %v94
  %s100 = scalar_lea.vmem %s1, 18
  %101 = vst.msk [vmem:[%s100] ss:$8 sm:$0x30] %vm95, %v94
  %s102 = scalar_lea.vmem %s1, 3
  %103 = vst.msk [vmem:[%s102] ss:$8 sm:$0xc0] %vm95, %v94
  %s104 = scalar_lea.vmem %s0, 448
  %v105 = vld [vmem:[%s104] ss:$8 sm:$0xf]
  %s106 = scalar_lea.vmem %s0, 448
  %v107 = vld [vmem:[%s106] ss:$8 sm:$0xf0]
  %vm108 = vcmask 1047556
  %v109 = vsel %vm108, %v107, %v105
  %vm110 = vcmask 130048
  %s111 = scalar_lea.vmem %s1, 52
  %112 = vst.msk [vmem:[%s111] ss:$8 sm:$0x3] %vm110, %v109
  %s113 = scalar_lea.vmem %s1, 37
  %114 = vst.msk [vmem:[%s113] ss:$8 sm:$0xc] %vm110, %v109
  %s115 = scalar_lea.vmem %s1, 22
  %116 = vst.msk [vmem:[%s115] ss:$8 sm:$0x30] %vm110, %v109
  %s117 = scalar_lea.vmem %s1, 7
  %118 = vst.msk [vmem:[%s117] ss:$8 sm:$0xc0] %vm110, %v109
  %s119 = scalar_lea.vmem %s0, 7
  %s120 = smov 3
  %v121 = vld [vmem:[%s119] ss:$16 sm:%s120]
  %s122 = scalar_lea.vmem %s0, 7
  %s123 = smov 12
  %v124 = vld [vmem:[%s122] ss:$16 sm:%s123]
  %vm125 = vcmask 1043458
  %v126 = vsel %vm125, %v124, %v121
  %s127 = scalar_lea.vmem %s0, 7
  %s128 = smov 48
  %v129 = vld [vmem:[%s127] ss:$16 sm:%s128]
  %vm130 = vcmask 1045508
  %v131 = vsel %vm130, %v129, %v126
  %s132 = scalar_lea.vmem %s0, 7
  %s133 = smov 192
  %v134 = vld [vmem:[%s132] ss:$16 sm:%s133]
  %vm135 = vcmask 1047558
  %v136 = vsel %vm135, %v134, %v131
  %137 = vrot.lane.b32.xlu0 %v136, 112
  %v138 = vpop.permute.xlu0 %137
  %vm139 = vcmask 1048448
  %140 = vst.msk [vmem:[%s1] sm:$0xff] %vm139, %v138
  %s141 = scalar_lea.vmem %s0, 263
  %s142 = smov 3
  %v143 = vld [vmem:[%s141] ss:$16 sm:%s142]
  %s144 = scalar_lea.vmem %s0, 263
  %s145 = smov 12
  %v146 = vld [vmem:[%s144] ss:$16 sm:%s145]
  %vm147 = vcmask 1043458
  %v148 = vsel %vm147, %v146, %v143
  %s149 = scalar_lea.vmem %s0, 263
  %s150 = smov 48
  %v151 = vld [vmem:[%s149] ss:$16 sm:%s150]
  %vm152 = vcmask 1045508
  %v153 = vsel %vm152, %v151, %v148
  %s154 = scalar_lea.vmem %s0, 263
  %s155 = smov 192
  %v156 = vld [vmem:[%s154] ss:$16 sm:%s155]
  %vm157 = vcmask 1047558
  %v158 = vsel %vm157, %v156, %v153
  %159 = vrot.lane.b32.xlu0 %v158, 112
  %v160 = vpop.permute.xlu0 %159
  %vm161 = vcmask 1048448
  %s162 = scalar_lea.vmem %s1, 32
  %163 = vst.msk [vmem:[%s162] sm:$0xff] %vm161, %v160
  %s164 = scalar_lea.vmem %s0, 15
  %s165 = smov 3
  %v166 = vld [vmem:[%s164] ss:$16 sm:%s165]
  %s167 = scalar_lea.vmem %s0, 15
  %s168 = smov 12
  %v169 = vld [vmem:[%s167] ss:$16 sm:%s168]
  %vm170 = vcmask 1043458
  %v171 = vsel %vm170, %v169, %v166
  %s172 = scalar_lea.vmem %s0, 15
  %s173 = smov 48
  %v174 = vld [vmem:[%s172] ss:$16 sm:%s173]
  %vm175 = vcmask 1045508
  %v176 = vsel %vm175, %v174, %v171
  %s177 = scalar_lea.vmem %s0, 15
  %s178 = smov 192
  %v179 = vld [vmem:[%s177] ss:$16 sm:%s178]
  %vm180 = vcmask 1047558
  %v181 = vsel %vm180, %v179, %v176
  %182 = vrot.lane.b32.xlu0 %v181, 112
  %v183 = vpop.permute.xlu0 %182
  %vm184 = vcmask 1048448
  %s185 = scalar_lea.vmem %s1, 8
  %186 = vst.msk [vmem:[%s185] sm:$0xff] %vm184, %v183
  %s187 = scalar_lea.vmem %s0, 271
  %s188 = smov 3
  %v189 = vld [vmem:[%s187] ss:$16 sm:%s188]
  %s190 = scalar_lea.vmem %s0, 271
  %s191 = smov 12
  %v192 = vld [vmem:[%s190] ss:$16 sm:%s191]
  %vm193 = vcmask 1043458
  %v194 = vsel %vm193, %v192, %v189
  %s195 = scalar_lea.vmem %s0, 271
  %s196 = smov 48
  %v197 = vld [vmem:[%s195] ss:$16 sm:%s196]
  %vm198 = vcmask 1045508
  %v199 = vsel %vm198, %v197, %v194
  %s200 = scalar_lea.vmem %s0, 271
  %s201 = smov 192
  %v202 = vld [vmem:[%s200] ss:$16 sm:%s201]
  %vm203 = vcmask 1047558
  %v204 = vsel %vm203, %v202, %v199
  %205 = vrot.lane.b32.xlu0 %v204, 112
  %v206 = vpop.permute.xlu0 %205
  %vm207 = vcmask 1048448
  %s208 = scalar_lea.vmem %s1, 40
  %209 = vst.msk [vmem:[%s208] sm:$0xff] %vm207, %v206
  %s210 = scalar_lea.vmem %s0, 135
  %s211 = smov 3
  %v212 = vld [vmem:[%s210] ss:$16 sm:%s211]
  %s213 = scalar_lea.vmem %s0, 135
  %s214 = smov 12
  %v215 = vld [vmem:[%s213] ss:$16 sm:%s214]
  %vm216 = vcmask 1043458
  %v217 = vsel %vm216, %v215, %v212
  %s218 = scalar_lea.vmem %s0, 135
  %s219 = smov 48
  %v220 = vld [vmem:[%s218] ss:$16 sm:%s219]
  %vm221 = vcmask 1045508
  %v222 = vsel %vm221, %v220, %v217
  %s223 = scalar_lea.vmem %s0, 135
  %s224 = smov 192
  %v225 = vld [vmem:[%s223] ss:$16 sm:%s224]
  %vm226 = vcmask 1047558
  %v227 = vsel %vm226, %v225, %v222
  %228 = vrot.lane.b32.xlu0 %v227, 112
  %v229 = vpop.permute.xlu0 %228
  %vm230 = vcmask 1048448
  %s231 = scalar_lea.vmem %s1, 16
  %232 = vst.msk [vmem:[%s231] sm:$0xff] %vm230, %v229
  %s233 = scalar_lea.vmem %s0, 391
  %s234 = smov 3
  %v235 = vld [vmem:[%s233] ss:$16 sm:%s234]
  %s236 = scalar_lea.vmem %s0, 391
  %s237 = smov 12
  %v238 = vld [vmem:[%s236] ss:$16 sm:%s237]
  %vm239 = vcmask 1043458
  %v240 = vsel %vm239, %v238, %v235
  %s241 = scalar_lea.vmem %s0, 391
  %s242 = smov 48
  %v243 = vld [vmem:[%s241] ss:$16 sm:%s242]
  %vm244 = vcmask 1045508
  %v245 = vsel %vm244, %v243, %v240
  %s246 = scalar_lea.vmem %s0, 391
  %s247 = smov 192
  %v248 = vld [vmem:[%s246] ss:$16 sm:%s247]
  %vm249 = vcmask 1047558
  %v250 = vsel %vm249, %v248, %v245
  %251 = vrot.lane.b32.xlu0 %v250, 112
  %v252 = vpop.permute.xlu0 %251
  %vm253 = vcmask 1048448
  %s254 = scalar_lea.vmem %s1, 48
  %255 = vst.msk [vmem:[%s254] sm:$0xff] %vm253, %v252
  %s256 = scalar_lea.vmem %s0, 143
  %s257 = smov 3
  %v258 = vld [vmem:[%s256] ss:$16 sm:%s257]
  %s259 = scalar_lea.vmem %s0, 143
  %s260 = smov 12
  %v261 = vld [vmem:[%s259] ss:$16 sm:%s260]
  %vm262 = vcmask 1043458
  %v263 = vsel %vm262, %v261, %v258
  %s264 = scalar_lea.vmem %s0, 143
  %s265 = smov 48
  %v266 = vld [vmem:[%s264] ss:$16 sm:%s265]
  %vm267 = vcmask 1045508
  %v268 = vsel %vm267, %v266, %v263
  %s269 = scalar_lea.vmem %s0, 143
  %s270 = smov 192
  %v271 = vld [vmem:[%s269] ss:$16 sm:%s270]
  %vm272 = vcmask 1047558
  %v273 = vsel %vm272, %v271, %v268
  %274 = vrot.lane.b32.xlu0 %v273, 112
  %v275 = vpop.permute.xlu0 %274
  %vm276 = vcmask 1048448
  %s277 = scalar_lea.vmem %s1, 24
  %278 = vst.msk [vmem:[%s277] sm:$0xff] %vm276, %v275
  %s279 = scalar_lea.vmem %s0, 399
  %s280 = smov 3
  %v281 = vld [vmem:[%s279] ss:$16 sm:%s280]
  %s282 = scalar_lea.vmem %s0, 399
  %s283 = smov 12
  %v284 = vld [vmem:[%s282] ss:$16 sm:%s283]
  %vm285 = vcmask 1043458
  %v286 = vsel %vm285, %v284, %v281
  %s287 = scalar_lea.vmem %s0, 399
  %s288 = smov 48
  %v289 = vld [vmem:[%s287] ss:$16 sm:%s288]
  %vm290 = vcmask 1045508
  %v291 = vsel %vm290, %v289, %v286
  %s292 = scalar_lea.vmem %s0, 399
  %s293 = smov 192
  %v294 = vld [vmem:[%s292] ss:$16 sm:%s293]
  %vm295 = vcmask 1047558
  %v296 = vsel %vm295, %v294, %v291
  %297 = vrot.lane.b32.xlu0 %v296, 112
  %v298 = vpop.permute.xlu0 %297
  %vm299 = vcmask 1048448
  %s300 = scalar_lea.vmem %s1, 56
  %301 = vst.msk [vmem:[%s300] sm:$0xff] %vm299, %v298
  %s302 = scalar_lea.vmem %s0, 6
  %s303 = smov 3
  %v304 = vld [vmem:[%s302] ss:$16 sm:%s303]
  %s305 = scalar_lea.vmem %s0, 6
  %s306 = smov 12
  %v307 = vld [vmem:[%s305] ss:$16 sm:%s306]
  %vm308 = vcmask 1043458
  %v309 = vsel %vm308, %v307, %v304
  %s310 = scalar_lea.vmem %s0, 6
  %s311 = smov 48
  %v312 = vld [vmem:[%s310] ss:$16 sm:%s311]
  %vm313 = vcmask 1045508
  %v314 = vsel %vm313, %v312, %v309
  %s315 = scalar_lea.vmem %s0, 6
  %s316 = smov 192
  %v317 = vld [vmem:[%s315] ss:$16 sm:%s316]
  %vm318 = vcmask 1047558
  %v319 = vsel %vm318, %v317, %v314
  %320 = vrot.lane.b32.xlu0 %v319, 96
  %v321 = vpop.permute.xlu0 %320
  %vm322 = vcmask 917248
  %323 = vst.msk [vmem:[%s1] sm:$0xff] %vm322, %v321
  %s324 = scalar_lea.vmem %s0, 262
  %s325 = smov 3
  %v326 = vld [vmem:[%s324] ss:$16 sm:%s325]
  %s327 = scalar_lea.vmem %s0, 262
  %s328 = smov 12
  %v329 = vld [vmem:[%s327] ss:$16 sm:%s328]
  %vm330 = vcmask 1043458
  %v331 = vsel %vm330, %v329, %v326
  %s332 = scalar_lea.vmem %s0, 262
  %s333 = smov 48
  %v334 = vld [vmem:[%s332] ss:$16 sm:%s333]
  %vm335 = vcmask 1045508
  %v336 = vsel %vm335, %v334, %v331
  %s337 = scalar_lea.vmem %s0, 262
  %s338 = smov 192
  %v339 = vld [vmem:[%s337] ss:$16 sm:%s338]
  %vm340 = vcmask 1047558
  %v341 = vsel %vm340, %v339, %v336
  %342 = vrot.lane.b32.xlu0 %v341, 96
  %v343 = vpop.permute.xlu0 %342
  %vm344 = vcmask 917248
  %s345 = scalar_lea.vmem %s1, 32
  %346 = vst.msk [vmem:[%s345] sm:$0xff] %vm344, %v343
  %s347 = scalar_lea.vmem %s0, 14
  %s348 = smov 3
  %v349 = vld [vmem:[%s347] ss:$16 sm:%s348]
  %s350 = scalar_lea.vmem %s0, 14
  %s351 = smov 12
  %v352 = vld [vmem:[%s350] ss:$16 sm:%s351]
  %vm353 = vcmask 1043458
  %v354 = vsel %vm353, %v352, %v349
  %s355 = scalar_lea.vmem %s0, 14
  %s356 = smov 48
  %v357 = vld [vmem:[%s355] ss:$16 sm:%s356]
  %vm358 = vcmask 1045508
  %v359 = vsel %vm358, %v357, %v354
  %s360 = scalar_lea.vmem %s0, 14
  %s361 = smov 192
  %v362 = vld [vmem:[%s360] ss:$16 sm:%s361]
  %vm363 = vcmask 1047558
  %v364 = vsel %vm363, %v362, %v359
  %365 = vrot.lane.b32.xlu0 %v364, 96
  %v366 = vpop.permute.xlu0 %365
  %vm367 = vcmask 917248
  %s368 = scalar_lea.vmem %s1, 8
  %369 = vst.msk [vmem:[%s368] sm:$0xff] %vm367, %v366
  %s370 = scalar_lea.vmem %s0, 270
  %s371 = smov 3
  %v372 = vld [vmem:[%s370] ss:$16 sm:%s371]
  %s373 = scalar_lea.vmem %s0, 270
  %s374 = smov 12
  %v375 = vld [vmem:[%s373] ss:$16 sm:%s374]
  %vm376 = vcmask 1043458
  %v377 = vsel %vm376, %v375, %v372
  %s378 = scalar_lea.vmem %s0, 270
  %s379 = smov 48
  %v380 = vld [vmem:[%s378] ss:$16 sm:%s379]
  %vm381 = vcmask 1045508
  %v382 = vsel %vm381, %v380, %v377
  %s383 = scalar_lea.vmem %s0, 270
  %s384 = smov 192
  %v385 = vld [vmem:[%s383] ss:$16 sm:%s384]
  %vm386 = vcmask 1047558
  %v387 = vsel %vm386, %v385, %v382
  %388 = vrot.lane.b32.xlu0 %v387, 96
  %v389 = vpop.permute.xlu0 %388
  %vm390 = vcmask 917248
  %s391 = scalar_lea.vmem %s1, 40
  %392 = vst.msk [vmem:[%s391] sm:$0xff] %vm390, %v389
  %s393 = scalar_lea.vmem %s0, 134
  %s394 = smov 3
  %v395 = vld [vmem:[%s393] ss:$16 sm:%s394]
  %s396 = scalar_lea.vmem %s0, 134
  %s397 = smov 12
  %v398 = vld [vmem:[%s396] ss:$16 sm:%s397]
  %vm399 = vcmask 1043458
  %v400 = vsel %vm399, %v398, %v395
  %s401 = scalar_lea.vmem %s0, 134
  %s402 = smov 48
  %v403 = vld [vmem:[%s401] ss:$16 sm:%s402]
  %vm404 = vcmask 1045508
  %v405 = vsel %vm404, %v403, %v400
  %s406 = scalar_lea.vmem %s0, 134
  %s407 = smov 192
  %v408 = vld [vmem:[%s406] ss:$16 sm:%s407]
  %vm409 = vcmask 1047558
  %v410 = vsel %vm409, %v408, %v405
  %411 = vrot.lane.b32.xlu0 %v410, 96
  %v412 = vpop.permute.xlu0 %411
  %vm413 = vcmask 917248
  %s414 = scalar_lea.vmem %s1, 16
  %415 = vst.msk [vmem:[%s414] sm:$0xff] %vm413, %v412
  %s416 = scalar_lea.vmem %s0, 390
  %s417 = smov 3
  %v418 = vld [vmem:[%s416] ss:$16 sm:%s417]
  %s419 = scalar_lea.vmem %s0, 390
  %s420 = smov 12
  %v421 = vld [vmem:[%s419] ss:$16 sm:%s420]
  %vm422 = vcmask 1043458
  %v423 = vsel %vm422, %v421, %v418
  %s424 = scalar_lea.vmem %s0, 390
  %s425 = smov 48
  %v426 = vld [vmem:[%s424] ss:$16 sm:%s425]
  %vm427 = vcmask 1045508
  %v428 = vsel %vm427, %v426, %v423
  %s429 = scalar_lea.vmem %s0, 390
  %s430 = smov 192
  %v431 = vld [vmem:[%s429] ss:$16 sm:%s430]
  %vm432 = vcmask 1047558
  %v433 = vsel %vm432, %v431, %v428
  %434 = vrot.lane.b32.xlu0 %v433, 96
  %v435 = vpop.permute.xlu0 %434
  %vm436 = vcmask 917248
  %s437 = scalar_lea.vmem %s1, 48
  %438 = vst.msk [vmem:[%s437] sm:$0xff] %vm436, %v435
  %s439 = scalar_lea.vmem %s0, 142
  %s440 = smov 3
  %v441 = vld [vmem:[%s439] ss:$16 sm:%s440]
  %s442 = scalar_lea.vmem %s0, 142
  %s443 = smov 12
  %v444 = vld [vmem:[%s442] ss:$16 sm:%s443]
  %vm445 = vcmask 1043458
  %v446 = vsel %vm445, %v444, %v441
  %s447 = scalar_lea.vmem %s0, 142
  %s448 = smov 48
  %v449 = vld [vmem:[%s447] ss:$16 sm:%s448]
  %vm450 = vcmask 1045508
  %v451 = vsel %vm450, %v449, %v446
  %s452 = scalar_lea.vmem %s0, 142
  %s453 = smov 192
  %v454 = vld [vmem:[%s452] ss:$16 sm:%s453]
  %vm455 = vcmask 1047558
  %v456 = vsel %vm455, %v454, %v451
  %457 = vrot.lane.b32.xlu0 %v456, 96
  %v458 = vpop.permute.xlu0 %457
  %vm459 = vcmask 917248
  %s460 = scalar_lea.vmem %s1, 24
  %461 = vst.msk [vmem:[%s460] sm:$0xff] %vm459, %v458
  %s462 = scalar_lea.vmem %s0, 398
  %s463 = smov 3
  %v464 = vld [vmem:[%s462] ss:$16 sm:%s463]
  %s465 = scalar_lea.vmem %s0, 398
  %s466 = smov 12
  %v467 = vld [vmem:[%s465] ss:$16 sm:%s466]
  %vm468 = vcmask 1043458
  %v469 = vsel %vm468, %v467, %v464
  %s470 = scalar_lea.vmem %s0, 398
  %s471 = smov 48
  %v472 = vld [vmem:[%s470] ss:$16 sm:%s471]
  %vm473 = vcmask 1045508
  %v474 = vsel %vm473, %v472, %v469
  %s475 = scalar_lea.vmem %s0, 398
  %s476 = smov 192
  %v477 = vld [vmem:[%s475] ss:$16 sm:%s476]
  %vm478 = vcmask 1047558
  %v479 = vsel %vm478, %v477, %v474
  %480 = vrot.lane.b32.xlu0 %v479, 96
  %v481 = vpop.permute.xlu0 %480
  %vm482 = vcmask 917248
  %s483 = scalar_lea.vmem %s1, 56
  %484 = vst.msk [vmem:[%s483] sm:$0xff] %vm482, %v481
  %s485 = scalar_lea.vmem %s0, 5
  %s486 = smov 3
  %v487 = vld [vmem:[%s485] ss:$16 sm:%s486]
  %s488 = scalar_lea.vmem %s0, 5
  %s489 = smov 12
  %v490 = vld [vmem:[%s488] ss:$16 sm:%s489]
  %vm491 = vcmask 1043458
  %v492 = vsel %vm491, %v490, %v487
  %s493 = scalar_lea.vmem %s0, 5
  %s494 = smov 48
  %v495 = vld [vmem:[%s493] ss:$16 sm:%s494]
  %vm496 = vcmask 1045508
  %v497 = vsel %vm496, %v495, %v492
  %s498 = scalar_lea.vmem %s0, 5
  %s499 = smov 192
  %v500 = vld [vmem:[%s498] ss:$16 sm:%s499]
  %vm501 = vcmask 1047558
  %v502 = vsel %vm501, %v500, %v497
  %503 = vrot.lane.b32.xlu0 %v502, 80
  %v504 = vpop.permute.xlu0 %503
  %vm505 = vcmask 786048
  %506 = vst.msk [vmem:[%s1] sm:$0xff] %vm505, %v504
  %s507 = scalar_lea.vmem %s0, 261
  %s508 = smov 3
  %v509 = vld [vmem:[%s507] ss:$16 sm:%s508]
  %s510 = scalar_lea.vmem %s0, 261
  %s511 = smov 12
  %v512 = vld [vmem:[%s510] ss:$16 sm:%s511]
  %vm513 = vcmask 1043458
  %v514 = vsel %vm513, %v512, %v509
  %s515 = scalar_lea.vmem %s0, 261
  %s516 = smov 48
  %v517 = vld [vmem:[%s515] ss:$16 sm:%s516]
  %vm518 = vcmask 1045508
  %v519 = vsel %vm518, %v517, %v514
  %s520 = scalar_lea.vmem %s0, 261
  %s521 = smov 192
  %v522 = vld [vmem:[%s520] ss:$16 sm:%s521]
  %vm523 = vcmask 1047558
  %v524 = vsel %vm523, %v522, %v519
  %525 = vrot.lane.b32.xlu0 %v524, 80
  %v526 = vpop.permute.xlu0 %525
  %vm527 = vcmask 786048
  %s528 = scalar_lea.vmem %s1, 32
  %529 = vst.msk [vmem:[%s528] sm:$0xff] %vm527, %v526
  %s530 = scalar_lea.vmem %s0, 13
  %s531 = smov 3
  %v532 = vld [vmem:[%s530] ss:$16 sm:%s531]
  %s533 = scalar_lea.vmem %s0, 13
  %s534 = smov 12
  %v535 = vld [vmem:[%s533] ss:$16 sm:%s534]
  %vm536 = vcmask 1043458
  %v537 = vsel %vm536, %v535, %v532
  %s538 = scalar_lea.vmem %s0, 13
  %s539 = smov 48
  %v540 = vld [vmem:[%s538] ss:$16 sm:%s539]
  %vm541 = vcmask 1045508
  %v542 = vsel %vm541, %v540, %v537
  %s543 = scalar_lea.vmem %s0, 13
  %s544 = smov 192
  %v545 = vld [vmem:[%s543] ss:$16 sm:%s544]
  %vm546 = vcmask 1047558
  %v547 = vsel %vm546, %v545, %v542
  %548 = vrot.lane.b32.xlu0 %v547, 80
  %v549 = vpop.permute.xlu0 %548
  %vm550 = vcmask 786048
  %s551 = scalar_lea.vmem %s1, 8
  %552 = vst.msk [vmem:[%s551] sm:$0xff] %vm550, %v549
  %s553 = scalar_lea.vmem %s0, 269
  %s554 = smov 3
  %v555 = vld [vmem:[%s553] ss:$16 sm:%s554]
  %s556 = scalar_lea.vmem %s0, 269
  %s557 = smov 12
  %v558 = vld [vmem:[%s556] ss:$16 sm:%s557]
  %vm559 = vcmask 1043458
  %v560 = vsel %vm559, %v558, %v555
  %s561 = scalar_lea.vmem %s0, 269
  %s562 = smov 48
  %v563 = vld [vmem:[%s561] ss:$16 sm:%s562]
  %vm564 = vcmask 1045508
  %v565 = vsel %vm564, %v563, %v560
  %s566 = scalar_lea.vmem %s0, 269
  %s567 = smov 192
  %v568 = vld [vmem:[%s566] ss:$16 sm:%s567]
  %vm569 = vcmask 1047558
  %v570 = vsel %vm569, %v568, %v565
  %571 = vrot.lane.b32.xlu0 %v570, 80
  %v572 = vpop.permute.xlu0 %571
  %vm573 = vcmask 786048
  %s574 = scalar_lea.vmem %s1, 40
  %575 = vst.msk [vmem:[%s574] sm:$0xff] %vm573, %v572
  %s576 = scalar_lea.vmem %s0, 133
  %s577 = smov 3
  %v578 = vld [vmem:[%s576] ss:$16 sm:%s577]
  %s579 = scalar_lea.vmem %s0, 133
  %s580 = smov 12
  %v581 = vld [vmem:[%s579] ss:$16 sm:%s580]
  %vm582 = vcmask 1043458
  %v583 = vsel %vm582, %v581, %v578
  %s584 = scalar_lea.vmem %s0, 133
  %s585 = smov 48
  %v586 = vld [vmem:[%s584] ss:$16 sm:%s585]
  %vm587 = vcmask 1045508
  %v588 = vsel %vm587, %v586, %v583
  %s589 = scalar_lea.vmem %s0, 133
  %s590 = smov 192
  %v591 = vld [vmem:[%s589] ss:$16 sm:%s590]
  %vm592 = vcmask 1047558
  %v593 = vsel %vm592, %v591, %v588
  %594 = vrot.lane.b32.xlu0 %v593, 80
  %v595 = vpop.permute.xlu0 %594
  %vm596 = vcmask 786048
  %s597 = scalar_lea.vmem %s1, 16
  %598 = vst.msk [vmem:[%s597] sm:$0xff] %vm596, %v595
  %s599 = scalar_lea.vmem %s0, 389
  %s600 = smov 3
  %v601 = vld [vmem:[%s599] ss:$16 sm:%s600]
  %s602 = scalar_lea.vmem %s0, 389
  %s603 = smov 12
  %v604 = vld [vmem:[%s602] ss:$16 sm:%s603]
  %vm605 = vcmask 1043458
  %v606 = vsel %vm605, %v604, %v601
  %s607 = scalar_lea.vmem %s0, 389
  %s608 = smov 48
  %v609 = vld [vmem:[%s607] ss:$16 sm:%s608]
  %vm610 = vcmask 1045508
  %v611 = vsel %vm610, %v609, %v606
  %s612 = scalar_lea.vmem %s0, 389
  %s613 = smov 192
  %v614 = vld [vmem:[%s612] ss:$16 sm:%s613]
  %vm615 = vcmask 1047558
  %v616 = vsel %vm615, %v614, %v611
  %617 = vrot.lane.b32.xlu0 %v616, 80
  %v618 = vpop.permute.xlu0 %617
  %vm619 = vcmask 786048
  %s620 = scalar_lea.vmem %s1, 48
  %621 = vst.msk [vmem:[%s620] sm:$0xff] %vm619, %v618
  %s622 = scalar_lea.vmem %s0, 141
  %s623 = smov 3
  %v624 = vld [vmem:[%s622] ss:$16 sm:%s623]
  %s625 = scalar_lea.vmem %s0, 141
  %s626 = smov 12
  %v627 = vld [vmem:[%s625] ss:$16 sm:%s626]
  %vm628 = vcmask 1043458
  %v629 = vsel %vm628, %v627, %v624
  %s630 = scalar_lea.vmem %s0, 141
  %s631 = smov 48
  %v632 = vld [vmem:[%s630] ss:$16 sm:%s631]
  %vm633 = vcmask 1045508
  %v634 = vsel %vm633, %v632, %v629
  %s635 = scalar_lea.vmem %s0, 141
  %s636 = smov 192
  %v637 = vld [vmem:[%s635] ss:$16 sm:%s636]
  %vm638 = vcmask 1047558
  %v639 = vsel %vm638, %v637, %v634
  %640 = vrot.lane.b32.xlu0 %v639, 80
  %v641 = vpop.permute.xlu0 %640
  %vm642 = vcmask 786048
  %s643 = scalar_lea.vmem %s1, 24
  %644 = vst.msk [vmem:[%s643] sm:$0xff] %vm642, %v641
  %s645 = scalar_lea.vmem %s0, 397
  %s646 = smov 3
  %v647 = vld [vmem:[%s645] ss:$16 sm:%s646]
  %s648 = scalar_lea.vmem %s0, 397
  %s649 = smov 12
  %v650 = vld [vmem:[%s648] ss:$16 sm:%s649]
  %vm651 = vcmask 1043458
  %v652 = vsel %vm651, %v650, %v647
  %s653 = scalar_lea.vmem %s0, 397
  %s654 = smov 48
  %v655 = vld [vmem:[%s653] ss:$16 sm:%s654]
  %vm656 = vcmask 1045508
  %v657 = vsel %vm656, %v655, %v652
  %s658 = scalar_lea.vmem %s0, 397
  %s659 = smov 192
  %v660 = vld [vmem:[%s658] ss:$16 sm:%s659]
  %vm661 = vcmask 1047558
  %v662 = vsel %vm661, %v660, %v657
  %663 = vrot.lane.b32.xlu0 %v662, 80
  %v664 = vpop.permute.xlu0 %663
  %vm665 = vcmask 786048
  %s666 = scalar_lea.vmem %s1, 56
  %667 = vst.msk [vmem:[%s666] sm:$0xff] %vm665, %v664
  %s668 = scalar_lea.vmem %s0, 4
  %s669 = smov 3
  %v670 = vld [vmem:[%s668] ss:$16 sm:%s669]
  %s671 = scalar_lea.vmem %s0, 4
  %s672 = smov 12
  %v673 = vld [vmem:[%s671] ss:$16 sm:%s672]
  %vm674 = vcmask 1043458
  %v675 = vsel %vm674, %v673, %v670
  %s676 = scalar_lea.vmem %s0, 4
  %s677 = smov 48
  %v678 = vld [vmem:[%s676] ss:$16 sm:%s677]
  %vm679 = vcmask 1045508
  %v680 = vsel %vm679, %v678, %v675
  %s681 = scalar_lea.vmem %s0, 4
  %s682 = smov 192
  %v683 = vld [vmem:[%s681] ss:$16 sm:%s682]
  %vm684 = vcmask 1047558
  %v685 = vsel %vm684, %v683, %v680
  %686 = vrot.lane.b32.xlu0 %v685, 64
  %v687 = vpop.permute.xlu0 %686
  %vm688 = vcmask 654848
  %689 = vst.msk [vmem:[%s1] sm:$0xff] %vm688, %v687
  %s690 = scalar_lea.vmem %s0, 260
  %s691 = smov 3
  %v692 = vld [vmem:[%s690] ss:$16 sm:%s691]
  %s693 = scalar_lea.vmem %s0, 260
  %s694 = smov 12
  %v695 = vld [vmem:[%s693] ss:$16 sm:%s694]
  %vm696 = vcmask 1043458
  %v697 = vsel %vm696, %v695, %v692
  %s698 = scalar_lea.vmem %s0, 260
  %s699 = smov 48
  %v700 = vld [vmem:[%s698] ss:$16 sm:%s699]
  %vm701 = vcmask 1045508
  %v702 = vsel %vm701, %v700, %v697
  %s703 = scalar_lea.vmem %s0, 260
  %s704 = smov 192
  %v705 = vld [vmem:[%s703] ss:$16 sm:%s704]
  %vm706 = vcmask 1047558
  %v707 = vsel %vm706, %v705, %v702
  %708 = vrot.lane.b32.xlu0 %v707, 64
  %v709 = vpop.permute.xlu0 %708
  %vm710 = vcmask 654848
  %s711 = scalar_lea.vmem %s1, 32
  %712 = vst.msk [vmem:[%s711] sm:$0xff] %vm710, %v709
  %s713 = scalar_lea.vmem %s0, 12
  %s714 = smov 3
  %v715 = vld [vmem:[%s713] ss:$16 sm:%s714]
  %s716 = scalar_lea.vmem %s0, 12
  %s717 = smov 12
  %v718 = vld [vmem:[%s716] ss:$16 sm:%s717]
  %vm719 = vcmask 1043458
  %v720 = vsel %vm719, %v718, %v715
  %s721 = scalar_lea.vmem %s0, 12
  %s722 = smov 48
  %v723 = vld [vmem:[%s721] ss:$16 sm:%s722]
  %vm724 = vcmask 1045508
  %v725 = vsel %vm724, %v723, %v720
  %s726 = scalar_lea.vmem %s0, 12
  %s727 = smov 192
  %v728 = vld [vmem:[%s726] ss:$16 sm:%s727]
  %vm729 = vcmask 1047558
  %v730 = vsel %vm729, %v728, %v725
  %731 = vrot.lane.b32.xlu0 %v730, 64
  %v732 = vpop.permute.xlu0 %731
  %vm733 = vcmask 654848
  %s734 = scalar_lea.vmem %s1, 8
  %735 = vst.msk [vmem:[%s734] sm:$0xff] %vm733, %v732
  %s736 = scalar_lea.vmem %s0, 268
  %s737 = smov 3
  %v738 = vld [vmem:[%s736] ss:$16 sm:%s737]
  %s739 = scalar_lea.vmem %s0, 268
  %s740 = smov 12
  %v741 = vld [vmem:[%s739] ss:$16 sm:%s740]
  %vm742 = vcmask 1043458
  %v743 = vsel %vm742, %v741, %v738
  %s744 = scalar_lea.vmem %s0, 268
  %s745 = smov 48
  %v746 = vld [vmem:[%s744] ss:$16 sm:%s745]
  %vm747 = vcmask 1045508
  %v748 = vsel %vm747, %v746, %v743
  %s749 = scalar_lea.vmem %s0, 268
  %s750 = smov 192
  %v751 = vld [vmem:[%s749] ss:$16 sm:%s750]
  %vm752 = vcmask 1047558
  %v753 = vsel %vm752, %v751, %v748
  %754 = vrot.lane.b32.xlu0 %v753, 64
  %v755 = vpop.permute.xlu0 %754
  %vm756 = vcmask 654848
  %s757 = scalar_lea.vmem %s1, 40
  %758 = vst.msk [vmem:[%s757] sm:$0xff] %vm756, %v755
  %s759 = scalar_lea.vmem %s0, 132
  %s760 = smov 3
  %v761 = vld [vmem:[%s759] ss:$16 sm:%s760]
  %s762 = scalar_lea.vmem %s0, 132
  %s763 = smov 12
  %v764 = vld [vmem:[%s762] ss:$16 sm:%s763]
  %vm765 = vcmask 1043458
  %v766 = vsel %vm765, %v764, %v761
  %s767 = scalar_lea.vmem %s0, 132
  %s768 = smov 48
  %v769 = vld [vmem:[%s767] ss:$16 sm:%s768]
  %vm770 = vcmask 1045508
  %v771 = vsel %vm770, %v769, %v766
  %s772 = scalar_lea.vmem %s0, 132
  %s773 = smov 192
  %v774 = vld [vmem:[%s772] ss:$16 sm:%s773]
  %vm775 = vcmask 1047558
  %v776 = vsel %vm775, %v774, %v771
  %777 = vrot.lane.b32.xlu0 %v776, 64
  %v778 = vpop.permute.xlu0 %777
  %vm779 = vcmask 654848
  %s780 = scalar_lea.vmem %s1, 16
  %781 = vst.msk [vmem:[%s780] sm:$0xff] %vm779, %v778
  %s782 = scalar_lea.vmem %s0, 388
  %s783 = smov 3
  %v784 = vld [vmem:[%s782] ss:$16 sm:%s783]
  %s785 = scalar_lea.vmem %s0, 388
  %s786 = smov 12
  %v787 = vld [vmem:[%s785] ss:$16 sm:%s786]
  %vm788 = vcmask 1043458
  %v789 = vsel %vm788, %v787, %v784
  %s790 = scalar_lea.vmem %s0, 388
  %s791 = smov 48
  %v792 = vld [vmem:[%s790] ss:$16 sm:%s791]
  %vm793 = vcmask 1045508
  %v794 = vsel %vm793, %v792, %v789
  %s795 = scalar_lea.vmem %s0, 388
  %s796 = smov 192
  %v797 = vld [vmem:[%s795] ss:$16 sm:%s796]
  %vm798 = vcmask 1047558
  %v799 = vsel %vm798, %v797, %v794
  %800 = vrot.lane.b32.xlu0 %v799, 64
  %v801 = vpop.permute.xlu0 %800
  %vm802 = vcmask 654848
  %s803 = scalar_lea.vmem %s1, 48
  %804 = vst.msk [vmem:[%s803] sm:$0xff] %vm802, %v801
  %s805 = scalar_lea.vmem %s0, 140
  %s806 = smov 3
  %v807 = vld [vmem:[%s805] ss:$16 sm:%s806]
  %s808 = scalar_lea.vmem %s0, 140
  %s809 = smov 12
  %v810 = vld [vmem:[%s808] ss:$16 sm:%s809]
  %vm811 = vcmask 1043458
  %v812 = vsel %vm811, %v810, %v807
  %s813 = scalar_lea.vmem %s0, 140
  %s814 = smov 48
  %v815 = vld [vmem:[%s813] ss:$16 sm:%s814]
  %vm816 = vcmask 1045508
  %v817 = vsel %vm816, %v815, %v812
  %s818 = scalar_lea.vmem %s0, 140
  %s819 = smov 192
  %v820 = vld [vmem:[%s818] ss:$16 sm:%s819]
  %vm821 = vcmask 1047558
  %v822 = vsel %vm821, %v820, %v817
  %823 = vrot.lane.b32.xlu0 %v822, 64
  %v824 = vpop.permute.xlu0 %823
  %vm825 = vcmask 654848
  %s826 = scalar_lea.vmem %s1, 24
  %827 = vst.msk [vmem:[%s826] sm:$0xff] %vm825, %v824
  %s828 = scalar_lea.vmem %s0, 396
  %s829 = smov 3
  %v830 = vld [vmem:[%s828] ss:$16 sm:%s829]
  %s831 = scalar_lea.vmem %s0, 396
  %s832 = smov 12
  %v833 = vld [vmem:[%s831] ss:$16 sm:%s832]
  %vm834 = vcmask 1043458
  %v835 = vsel %vm834, %v833, %v830
  %s836 = scalar_lea.vmem %s0, 396
  %s837 = smov 48
  %v838 = vld [vmem:[%s836] ss:$16 sm:%s837]
  %vm839 = vcmask 1045508
  %v840 = vsel %vm839, %v838, %v835
  %s841 = scalar_lea.vmem %s0, 396
  %s842 = smov 192
  %v843 = vld [vmem:[%s841] ss:$16 sm:%s842]
  %vm844 = vcmask 1047558
  %v845 = vsel %vm844, %v843, %v840
  %846 = vrot.lane.b32.xlu0 %v845, 64
  %v847 = vpop.permute.xlu0 %846
  %vm848 = vcmask 654848
  %s849 = scalar_lea.vmem %s1, 56
  %850 = vst.msk [vmem:[%s849] sm:$0xff] %vm848, %v847
  %s851 = scalar_lea.vmem %s0, 3
  %s852 = smov 3
  %v853 = vld [vmem:[%s851] ss:$16 sm:%s852]
  %s854 = scalar_lea.vmem %s0, 3
  %s855 = smov 12
  %v856 = vld [vmem:[%s854] ss:$16 sm:%s855]
  %vm857 = vcmask 1043458
  %v858 = vsel %vm857, %v856, %v853
  %s859 = scalar_lea.vmem %s0, 3
  %s860 = smov 48
  %v861 = vld [vmem:[%s859] ss:$16 sm:%s860]
  %vm862 = vcmask 1045508
  %v863 = vsel %vm862, %v861, %v858
  %s864 = scalar_lea.vmem %s0, 3
  %s865 = smov 192
  %v866 = vld [vmem:[%s864] ss:$16 sm:%s865]
  %vm867 = vcmask 1047558
  %v868 = vsel %vm867, %v866, %v863
  %869 = vrot.lane.b32.xlu0 %v868, 48
  %v870 = vpop.permute.xlu0 %869
  %vm871 = vcmask 523648
  %872 = vst.msk [vmem:[%s1] sm:$0xff] %vm871, %v870
  %s873 = scalar_lea.vmem %s0, 259
  %s874 = smov 3
  %v875 = vld [vmem:[%s873] ss:$16 sm:%s874]
  %s876 = scalar_lea.vmem %s0, 259
  %s877 = smov 12
  %v878 = vld [vmem:[%s876] ss:$16 sm:%s877]
  %vm879 = vcmask 1043458
  %v880 = vsel %vm879, %v878, %v875
  %s881 = scalar_lea.vmem %s0, 259
  %s882 = smov 48
  %v883 = vld [vmem:[%s881] ss:$16 sm:%s882]
  %vm884 = vcmask 1045508
  %v885 = vsel %vm884, %v883, %v880
  %s886 = scalar_lea.vmem %s0, 259
  %s887 = smov 192
  %v888 = vld [vmem:[%s886] ss:$16 sm:%s887]
  %vm889 = vcmask 1047558
  %v890 = vsel %vm889, %v888, %v885
  %891 = vrot.lane.b32.xlu0 %v890, 48
  %v892 = vpop.permute.xlu0 %891
  %vm893 = vcmask 523648
  %s894 = scalar_lea.vmem %s1, 32
  %895 = vst.msk [vmem:[%s894] sm:$0xff] %vm893, %v892
  %s896 = scalar_lea.vmem %s0, 11
  %s897 = smov 3
  %v898 = vld [vmem:[%s896] ss:$16 sm:%s897]
  %s899 = scalar_lea.vmem %s0, 11
  %s900 = smov 12
  %v901 = vld [vmem:[%s899] ss:$16 sm:%s900]
  %vm902 = vcmask 1043458
  %v903 = vsel %vm902, %v901, %v898
  %s904 = scalar_lea.vmem %s0, 11
  %s905 = smov 48
  %v906 = vld [vmem:[%s904] ss:$16 sm:%s905]
  %vm907 = vcmask 1045508
  %v908 = vsel %vm907, %v906, %v903
  %s909 = scalar_lea.vmem %s0, 11
  %s910 = smov 192
  %v911 = vld [vmem:[%s909] ss:$16 sm:%s910]
  %vm912 = vcmask 1047558
  %v913 = vsel %vm912, %v911, %v908
  %914 = vrot.lane.b32.xlu0 %v913, 48
  %v915 = vpop.permute.xlu0 %914
  %vm916 = vcmask 523648
  %s917 = scalar_lea.vmem %s1, 8
  %918 = vst.msk [vmem:[%s917] sm:$0xff] %vm916, %v915
  %s919 = scalar_lea.vmem %s0, 267
  %s920 = smov 3
  %v921 = vld [vmem:[%s919] ss:$16 sm:%s920]
  %s922 = scalar_lea.vmem %s0, 267
  %s923 = smov 12
  %v924 = vld [vmem:[%s922] ss:$16 sm:%s923]
  %vm925 = vcmask 1043458
  %v926 = vsel %vm925, %v924, %v921
  %s927 = scalar_lea.vmem %s0, 267
  %s928 = smov 48
  %v929 = vld [vmem:[%s927] ss:$16 sm:%s928]
  %vm930 = vcmask 1045508
  %v931 = vsel %vm930, %v929, %v926
  %s932 = scalar_lea.vmem %s0, 267
  %s933 = smov 192
  %v934 = vld [vmem:[%s932] ss:$16 sm:%s933]
  %vm935 = vcmask 1047558
  %v936 = vsel %vm935, %v934, %v931
  %937 = vrot.lane.b32.xlu0 %v936, 48
  %v938 = vpop.permute.xlu0 %937
  %vm939 = vcmask 523648
  %s940 = scalar_lea.vmem %s1, 40
  %941 = vst.msk [vmem:[%s940] sm:$0xff] %vm939, %v938
  %s942 = scalar_lea.vmem %s0, 131
  %s943 = smov 3
  %v944 = vld [vmem:[%s942] ss:$16 sm:%s943]
  %s945 = scalar_lea.vmem %s0, 131
  %s946 = smov 12
  %v947 = vld [vmem:[%s945] ss:$16 sm:%s946]
  %vm948 = vcmask 1043458
  %v949 = vsel %vm948, %v947, %v944
  %s950 = scalar_lea.vmem %s0, 131
  %s951 = smov 48
  %v952 = vld [vmem:[%s950] ss:$16 sm:%s951]
  %vm953 = vcmask 1045508
  %v954 = vsel %vm953, %v952, %v949
  %s955 = scalar_lea.vmem %s0, 131
  %s956 = smov 192
  %v957 = vld [vmem:[%s955] ss:$16 sm:%s956]
  %vm958 = vcmask 1047558
  %v959 = vsel %vm958, %v957, %v954
  %960 = vrot.lane.b32.xlu0 %v959, 48
  %v961 = vpop.permute.xlu0 %960
  %vm962 = vcmask 523648
  %s963 = scalar_lea.vmem %s1, 16
  %964 = vst.msk [vmem:[%s963] sm:$0xff] %vm962, %v961
  %s965 = scalar_lea.vmem %s0, 387
  %s966 = smov 3
  %v967 = vld [vmem:[%s965] ss:$16 sm:%s966]
  %s968 = scalar_lea.vmem %s0, 387
  %s969 = smov 12
  %v970 = vld [vmem:[%s968] ss:$16 sm:%s969]
  %vm971 = vcmask 1043458
  %v972 = vsel %vm971, %v970, %v967
  %s973 = scalar_lea.vmem %s0, 387
  %s974 = smov 48
  %v975 = vld [vmem:[%s973] ss:$16 sm:%s974]
  %vm976 = vcmask 1045508
  %v977 = vsel %vm976, %v975, %v972
  %s978 = scalar_lea.vmem %s0, 387
  %s979 = smov 192
  %v980 = vld [vmem:[%s978] ss:$16 sm:%s979]
  %vm981 = vcmask 1047558
  %v982 = vsel %vm981, %v980, %v977
  %983 = vrot.lane.b32.xlu0 %v982, 48
  %v984 = vpop.permute.xlu0 %983
  %vm985 = vcmask 523648
  %s986 = scalar_lea.vmem %s1, 48
  %987 = vst.msk [vmem:[%s986] sm:$0xff] %vm985, %v984
  %s988 = scalar_lea.vmem %s0, 139
  %s989 = smov 3
  %v990 = vld [vmem:[%s988] ss:$16 sm:%s989]
  %s991 = scalar_lea.vmem %s0, 139
  %s992 = smov 12
  %v993 = vld [vmem:[%s991] ss:$16 sm:%s992]
  %vm994 = vcmask 1043458
  %v995 = vsel %vm994, %v993, %v990
  %s996 = scalar_lea.vmem %s0, 139
  %s997 = smov 48
  %v998 = vld [vmem:[%s996] ss:$16 sm:%s997]
  %vm999 = vcmask 1045508
  %v1000 = vsel %vm999, %v998, %v995
  %s1001 = scalar_lea.vmem %s0, 139
  %s1002 = smov 192
  %v1003 = vld [vmem:[%s1001] ss:$16 sm:%s1002]
  %vm1004 = vcmask 1047558
  %v1005 = vsel %vm1004, %v1003, %v1000
  %1006 = vrot.lane.b32.xlu0 %v1005, 48
  %v1007 = vpop.permute.xlu0 %1006
  %vm1008 = vcmask 523648
  %s1009 = scalar_lea.vmem %s1, 24
  %1010 = vst.msk [vmem:[%s1009] sm:$0xff] %vm1008, %v1007
  %s1011 = scalar_lea.vmem %s0, 395
  %s1012 = smov 3
  %v1013 = vld [vmem:[%s1011] ss:$16 sm:%s1012]
  %s1014 = scalar_lea.vmem %s0, 395
  %s1015 = smov 12
  %v1016 = vld [vmem:[%s1014] ss:$16 sm:%s1015]
  %vm1017 = vcmask 1043458
  %v1018 = vsel %vm1017, %v1016, %v1013
  %s1019 = scalar_lea.vmem %s0, 395
  %s1020 = smov 48
  %v1021 = vld [vmem:[%s1019] ss:$16 sm:%s1020]
  %vm1022 = vcmask 1045508
  %v1023 = vsel %vm1022, %v1021, %v1018
  %s1024 = scalar_lea.vmem %s0, 395
  %s1025 = smov 192
  %v1026 = vld [vmem:[%s1024] ss:$16 sm:%s1025]
  %vm1027 = vcmask 1047558
  %v1028 = vsel %vm1027, %v1026, %v1023
  %1029 = vrot.lane.b32.xlu0 %v1028, 48
  %v1030 = vpop.permute.xlu0 %1029
  %vm1031 = vcmask 523648
  %s1032 = scalar_lea.vmem %s1, 56
  %1033 = vst.msk [vmem:[%s1032] sm:$0xff] %vm1031, %v1030
  %s1034 = scalar_lea.vmem %s0, 2
  %s1035 = smov 3
  %v1036 = vld [vmem:[%s1034] ss:$16 sm:%s1035]
  %s1037 = scalar_lea.vmem %s0, 2
  %s1038 = smov 12
  %v1039 = vld [vmem:[%s1037] ss:$16 sm:%s1038]
  %vm1040 = vcmask 1043458
  %v1041 = vsel %vm1040, %v1039, %v1036
  %s1042 = scalar_lea.vmem %s0, 2
  %s1043 = smov 48
  %v1044 = vld [vmem:[%s1042] ss:$16 sm:%s1043]
  %vm1045 = vcmask 1045508
  %v1046 = vsel %vm1045, %v1044, %v1041
  %s1047 = scalar_lea.vmem %s0, 2
  %s1048 = smov 192
  %v1049 = vld [vmem:[%s1047] ss:$16 sm:%s1048]
  %vm1050 = vcmask 1047558
  %v1051 = vsel %vm1050, %v1049, %v1046
  %1052 = vrot.lane.b32.xlu0 %v1051, 32
  %v1053 = vpop.permute.xlu0 %1052
  %vm1054 = vcmask 392448
  %1055 = vst.msk [vmem:[%s1] sm:$0xff] %vm1054, %v1053
  %s1056 = scalar_lea.vmem %s0, 258
  %s1057 = smov 3
  %v1058 = vld [vmem:[%s1056] ss:$16 sm:%s1057]
  %s1059 = scalar_lea.vmem %s0, 258
  %s1060 = smov 12
  %v1061 = vld [vmem:[%s1059] ss:$16 sm:%s1060]
  %vm1062 = vcmask 1043458
  %v1063 = vsel %vm1062, %v1061, %v1058
  %s1064 = scalar_lea.vmem %s0, 258
  %s1065 = smov 48
  %v1066 = vld [vmem:[%s1064] ss:$16 sm:%s1065]
  %vm1067 = vcmask 1045508
  %v1068 = vsel %vm1067, %v1066, %v1063
  %s1069 = scalar_lea.vmem %s0, 258
  %s1070 = smov 192
  %v1071 = vld [vmem:[%s1069] ss:$16 sm:%s1070]
  %vm1072 = vcmask 1047558
  %v1073 = vsel %vm1072, %v1071, %v1068
  %1074 = vrot.lane.b32.xlu0 %v1073, 32
  %v1075 = vpop.permute.xlu0 %1074
  %vm1076 = vcmask 392448
  %s1077 = scalar_lea.vmem %s1, 32
  %1078 = vst.msk [vmem:[%s1077] sm:$0xff] %vm1076, %v1075
  %s1079 = scalar_lea.vmem %s0, 10
  %s1080 = smov 3
  %v1081 = vld [vmem:[%s1079] ss:$16 sm:%s1080]
  %s1082 = scalar_lea.vmem %s0, 10
  %s1083 = smov 12
  %v1084 = vld [vmem:[%s1082] ss:$16 sm:%s1083]
  %vm1085 = vcmask 1043458
  %v1086 = vsel %vm1085, %v1084, %v1081
  %s1087 = scalar_lea.vmem %s0, 10
  %s1088 = smov 48
  %v1089 = vld [vmem:[%s1087] ss:$16 sm:%s1088]
  %vm1090 = vcmask 1045508
  %v1091 = vsel %vm1090, %v1089, %v1086
  %s1092 = scalar_lea.vmem %s0, 10
  %s1093 = smov 192
  %v1094 = vld [vmem:[%s1092] ss:$16 sm:%s1093]
  %vm1095 = vcmask 1047558
  %v1096 = vsel %vm1095, %v1094, %v1091
  %1097 = vrot.lane.b32.xlu0 %v1096, 32
  %v1098 = vpop.permute.xlu0 %1097
  %vm1099 = vcmask 392448
  %s1100 = scalar_lea.vmem %s1, 8
  %1101 = vst.msk [vmem:[%s1100] sm:$0xff] %vm1099, %v1098
  %s1102 = scalar_lea.vmem %s0, 266
  %s1103 = smov 3
  %v1104 = vld [vmem:[%s1102] ss:$16 sm:%s1103]
  %s1105 = scalar_lea.vmem %s0, 266
  %s1106 = smov 12
  %v1107 = vld [vmem:[%s1105] ss:$16 sm:%s1106]
  %vm1108 = vcmask 1043458
  %v1109 = vsel %vm1108, %v1107, %v1104
  %s1110 = scalar_lea.vmem %s0, 266
  %s1111 = smov 48
  %v1112 = vld [vmem:[%s1110] ss:$16 sm:%s1111]
  %vm1113 = vcmask 1045508
  %v1114 = vsel %vm1113, %v1112, %v1109
  %s1115 = scalar_lea.vmem %s0, 266
  %s1116 = smov 192
  %v1117 = vld [vmem:[%s1115] ss:$16 sm:%s1116]
  %vm1118 = vcmask 1047558
  %v1119 = vsel %vm1118, %v1117, %v1114
  %1120 = vrot.lane.b32.xlu0 %v1119, 32
  %v1121 = vpop.permute.xlu0 %1120
  %vm1122 = vcmask 392448
  %s1123 = scalar_lea.vmem %s1, 40
  %1124 = vst.msk [vmem:[%s1123] sm:$0xff] %vm1122, %v1121
  %s1125 = scalar_lea.vmem %s0, 130
  %s1126 = smov 3
  %v1127 = vld [vmem:[%s1125] ss:$16 sm:%s1126]
  %s1128 = scalar_lea.vmem %s0, 130
  %s1129 = smov 12
  %v1130 = vld [vmem:[%s1128] ss:$16 sm:%s1129]
  %vm1131 = vcmask 1043458
  %v1132 = vsel %vm1131, %v1130, %v1127
  %s1133 = scalar_lea.vmem %s0, 130
  %s1134 = smov 48
  %v1135 = vld [vmem:[%s1133] ss:$16 sm:%s1134]
  %vm1136 = vcmask 1045508
  %v1137 = vsel %vm1136, %v1135, %v1132
  %s1138 = scalar_lea.vmem %s0, 130
  %s1139 = smov 192
  %v1140 = vld [vmem:[%s1138] ss:$16 sm:%s1139]
  %vm1141 = vcmask 1047558
  %v1142 = vsel %vm1141, %v1140, %v1137
  %1143 = vrot.lane.b32.xlu0 %v1142, 32
  %v1144 = vpop.permute.xlu0 %1143
  %vm1145 = vcmask 392448
  %s1146 = scalar_lea.vmem %s1, 16
  %1147 = vst.msk [vmem:[%s1146] sm:$0xff] %vm1145, %v1144
  %s1148 = scalar_lea.vmem %s0, 386
  %s1149 = smov 3
  %v1150 = vld [vmem:[%s1148] ss:$16 sm:%s1149]
  %s1151 = scalar_lea.vmem %s0, 386
  %s1152 = smov 12
  %v1153 = vld [vmem:[%s1151] ss:$16 sm:%s1152]
  %vm1154 = vcmask 1043458
  %v1155 = vsel %vm1154, %v1153, %v1150
  %s1156 = scalar_lea.vmem %s0, 386
  %s1157 = smov 48
  %v1158 = vld [vmem:[%s1156] ss:$16 sm:%s1157]
  %vm1159 = vcmask 1045508
  %v1160 = vsel %vm1159, %v1158, %v1155
  %s1161 = scalar_lea.vmem %s0, 386
  %s1162 = smov 192
  %v1163 = vld [vmem:[%s1161] ss:$16 sm:%s1162]
  %vm1164 = vcmask 1047558
  %v1165 = vsel %vm1164, %v1163, %v1160
  %1166 = vrot.lane.b32.xlu0 %v1165, 32
  %v1167 = vpop.permute.xlu0 %1166
  %vm1168 = vcmask 392448
  %s1169 = scalar_lea.vmem %s1, 48
  %1170 = vst.msk [vmem:[%s1169] sm:$0xff] %vm1168, %v1167
  %s1171 = scalar_lea.vmem %s0, 138
  %s1172 = smov 3
  %v1173 = vld [vmem:[%s1171] ss:$16 sm:%s1172]
  %s1174 = scalar_lea.vmem %s0, 138
  %s1175 = smov 12
  %v1176 = vld [vmem:[%s1174] ss:$16 sm:%s1175]
  %vm1177 = vcmask 1043458
  %v1178 = vsel %vm1177, %v1176, %v1173
  %s1179 = scalar_lea.vmem %s0, 138
  %s1180 = smov 48
  %v1181 = vld [vmem:[%s1179] ss:$16 sm:%s1180]
  %vm1182 = vcmask 1045508
  %v1183 = vsel %vm1182, %v1181, %v1178
  %s1184 = scalar_lea.vmem %s0, 138
  %s1185 = smov 192
  %v1186 = vld [vmem:[%s1184] ss:$16 sm:%s1185]
  %vm1187 = vcmask 1047558
  %v1188 = vsel %vm1187, %v1186, %v1183
  %1189 = vrot.lane.b32.xlu0 %v1188, 32
  %v1190 = vpop.permute.xlu0 %1189
  %vm1191 = vcmask 392448
  %s1192 = scalar_lea.vmem %s1, 24
  %1193 = vst.msk [vmem:[%s1192] sm:$0xff] %vm1191, %v1190
  %s1194 = scalar_lea.vmem %s0, 394
  %s1195 = smov 3
  %v1196 = vld [vmem:[%s1194] ss:$16 sm:%s1195]
  %s1197 = scalar_lea.vmem %s0, 394
  %s1198 = smov 12
  %v1199 = vld [vmem:[%s1197] ss:$16 sm:%s1198]
  %vm1200 = vcmask 1043458
  %v1201 = vsel %vm1200, %v1199, %v1196
  %s1202 = scalar_lea.vmem %s0, 394
  %s1203 = smov 48
  %v1204 = vld [vmem:[%s1202] ss:$16 sm:%s1203]
  %vm1205 = vcmask 1045508
  %v1206 = vsel %vm1205, %v1204, %v1201
  %s1207 = scalar_lea.vmem %s0, 394
  %s1208 = smov 192
  %v1209 = vld [vmem:[%s1207] ss:$16 sm:%s1208]
  %vm1210 = vcmask 1047558
  %v1211 = vsel %vm1210, %v1209, %v1206
  %1212 = vrot.lane.b32.xlu0 %v1211, 32
  %v1213 = vpop.permute.xlu0 %1212
  %vm1214 = vcmask 392448
  %s1215 = scalar_lea.vmem %s1, 56
  %1216 = vst.msk [vmem:[%s1215] sm:$0xff] %vm1214, %v1213
  %s1217 = scalar_lea.vmem %s0, 1
  %s1218 = smov 3
  %v1219 = vld [vmem:[%s1217] ss:$16 sm:%s1218]
  %s1220 = scalar_lea.vmem %s0, 1
  %s1221 = smov 12
  %v1222 = vld [vmem:[%s1220] ss:$16 sm:%s1221]
  %vm1223 = vcmask 1043458
  %v1224 = vsel %vm1223, %v1222, %v1219
  %s1225 = scalar_lea.vmem %s0, 1
  %s1226 = smov 48
  %v1227 = vld [vmem:[%s1225] ss:$16 sm:%s1226]
  %vm1228 = vcmask 1045508
  %v1229 = vsel %vm1228, %v1227, %v1224
  %s1230 = scalar_lea.vmem %s0, 1
  %s1231 = smov 192
  %v1232 = vld [vmem:[%s1230] ss:$16 sm:%s1231]
  %vm1233 = vcmask 1047558
  %v1234 = vsel %vm1233, %v1232, %v1229
  %1235 = vrot.lane.b32.xlu0 %v1234, 16
  %v1236 = vpop.permute.xlu0 %1235
  %vm1237 = vcmask 261248
  %1238 = vst.msk [vmem:[%s1] sm:$0xff] %vm1237, %v1236
  %s1239 = scalar_lea.vmem %s0, 257
  %s1240 = smov 3
  %v1241 = vld [vmem:[%s1239] ss:$16 sm:%s1240]
  %s1242 = scalar_lea.vmem %s0, 257
  %s1243 = smov 12
  %v1244 = vld [vmem:[%s1242] ss:$16 sm:%s1243]
  %vm1245 = vcmask 1043458
  %v1246 = vsel %vm1245, %v1244, %v1241
  %s1247 = scalar_lea.vmem %s0, 257
  %s1248 = smov 48
  %v1249 = vld [vmem:[%s1247] ss:$16 sm:%s1248]
  %vm1250 = vcmask 1045508
  %v1251 = vsel %vm1250, %v1249, %v1246
  %s1252 = scalar_lea.vmem %s0, 257
  %s1253 = smov 192
  %v1254 = vld [vmem:[%s1252] ss:$16 sm:%s1253]
  %vm1255 = vcmask 1047558
  %v1256 = vsel %vm1255, %v1254, %v1251
  %1257 = vrot.lane.b32.xlu0 %v1256, 16
  %v1258 = vpop.permute.xlu0 %1257
  %vm1259 = vcmask 261248
  %s1260 = scalar_lea.vmem %s1, 32
  %1261 = vst.msk [vmem:[%s1260] sm:$0xff] %vm1259, %v1258
  %s1262 = scalar_lea.vmem %s0, 9
  %s1263 = smov 3
  %v1264 = vld [vmem:[%s1262] ss:$16 sm:%s1263]
  %s1265 = scalar_lea.vmem %s0, 9
  %s1266 = smov 12
  %v1267 = vld [vmem:[%s1265] ss:$16 sm:%s1266]
  %vm1268 = vcmask 1043458
  %v1269 = vsel %vm1268, %v1267, %v1264
  %s1270 = scalar_lea.vmem %s0, 9
  %s1271 = smov 48
  %v1272 = vld [vmem:[%s1270] ss:$16 sm:%s1271]
  %vm1273 = vcmask 1045508
  %v1274 = vsel %vm1273, %v1272, %v1269
  %s1275 = scalar_lea.vmem %s0, 9
  %s1276 = smov 192
  %v1277 = vld [vmem:[%s1275] ss:$16 sm:%s1276]
  %vm1278 = vcmask 1047558
  %v1279 = vsel %vm1278, %v1277, %v1274
  %1280 = vrot.lane.b32.xlu0 %v1279, 16
  %v1281 = vpop.permute.xlu0 %1280
  %vm1282 = vcmask 261248
  %s1283 = scalar_lea.vmem %s1, 8
  %1284 = vst.msk [vmem:[%s1283] sm:$0xff] %vm1282, %v1281
  %s1285 = scalar_lea.vmem %s0, 265
  %s1286 = smov 3
  %v1287 = vld [vmem:[%s1285] ss:$16 sm:%s1286]
  %s1288 = scalar_lea.vmem %s0, 265
  %s1289 = smov 12
  %v1290 = vld [vmem:[%s1288] ss:$16 sm:%s1289]
  %vm1291 = vcmask 1043458
  %v1292 = vsel %vm1291, %v1290, %v1287
  %s1293 = scalar_lea.vmem %s0, 265
  %s1294 = smov 48
  %v1295 = vld [vmem:[%s1293] ss:$16 sm:%s1294]
  %vm1296 = vcmask 1045508
  %v1297 = vsel %vm1296, %v1295, %v1292
  %s1298 = scalar_lea.vmem %s0, 265
  %s1299 = smov 192
  %v1300 = vld [vmem:[%s1298] ss:$16 sm:%s1299]
  %vm1301 = vcmask 1047558
  %v1302 = vsel %vm1301, %v1300, %v1297
  %1303 = vrot.lane.b32.xlu0 %v1302, 16
  %v1304 = vpop.permute.xlu0 %1303
  %vm1305 = vcmask 261248
  %s1306 = scalar_lea.vmem %s1, 40
  %1307 = vst.msk [vmem:[%s1306] sm:$0xff] %vm1305, %v1304
  %s1308 = scalar_lea.vmem %s0, 129
  %s1309 = smov 3
  %v1310 = vld [vmem:[%s1308] ss:$16 sm:%s1309]
  %s1311 = scalar_lea.vmem %s0, 129
  %s1312 = smov 12
  %v1313 = vld [vmem:[%s1311] ss:$16 sm:%s1312]
  %vm1314 = vcmask 1043458
  %v1315 = vsel %vm1314, %v1313, %v1310
  %s1316 = scalar_lea.vmem %s0, 129
  %s1317 = smov 48
  %v1318 = vld [vmem:[%s1316] ss:$16 sm:%s1317]
  %vm1319 = vcmask 1045508
  %v1320 = vsel %vm1319, %v1318, %v1315
  %s1321 = scalar_lea.vmem %s0, 129
  %s1322 = smov 192
  %v1323 = vld [vmem:[%s1321] ss:$16 sm:%s1322]
  %vm1324 = vcmask 1047558
  %v1325 = vsel %vm1324, %v1323, %v1320
  %1326 = vrot.lane.b32.xlu0 %v1325, 16
  %v1327 = vpop.permute.xlu0 %1326
  %vm1328 = vcmask 261248
  %s1329 = scalar_lea.vmem %s1, 16
  %1330 = vst.msk [vmem:[%s1329] sm:$0xff] %vm1328, %v1327
  %s1331 = scalar_lea.vmem %s0, 385
  %s1332 = smov 3
  %v1333 = vld [vmem:[%s1331] ss:$16 sm:%s1332]
  %s1334 = scalar_lea.vmem %s0, 385
  %s1335 = smov 12
  %v1336 = vld [vmem:[%s1334] ss:$16 sm:%s1335]
  %vm1337 = vcmask 1043458
  %v1338 = vsel %vm1337, %v1336, %v1333
  %s1339 = scalar_lea.vmem %s0, 385
  %s1340 = smov 48
  %v1341 = vld [vmem:[%s1339] ss:$16 sm:%s1340]
  %vm1342 = vcmask 1045508
  %v1343 = vsel %vm1342, %v1341, %v1338
  %s1344 = scalar_lea.vmem %s0, 385
  %s1345 = smov 192
  %v1346 = vld [vmem:[%s1344] ss:$16 sm:%s1345]
  %vm1347 = vcmask 1047558
  %v1348 = vsel %vm1347, %v1346, %v1343
  %1349 = vrot.lane.b32.xlu0 %v1348, 16
  %v1350 = vpop.permute.xlu0 %1349
  %vm1351 = vcmask 261248
  %s1352 = scalar_lea.vmem %s1, 48
  %1353 = vst.msk [vmem:[%s1352] sm:$0xff] %vm1351, %v1350
  %s1354 = scalar_lea.vmem %s0, 137
  %s1355 = smov 3
  %v1356 = vld [vmem:[%s1354] ss:$16 sm:%s1355]
  %s1357 = scalar_lea.vmem %s0, 137
  %s1358 = smov 12
  %v1359 = vld [vmem:[%s1357] ss:$16 sm:%s1358]
  %vm1360 = vcmask 1043458
  %v1361 = vsel %vm1360, %v1359, %v1356
  %s1362 = scalar_lea.vmem %s0, 137
  %s1363 = smov 48
  %v1364 = vld [vmem:[%s1362] ss:$16 sm:%s1363]
  %vm1365 = vcmask 1045508
  %v1366 = vsel %vm1365, %v1364, %v1361
  %s1367 = scalar_lea.vmem %s0, 137
  %s1368 = smov 192
  %v1369 = vld [vmem:[%s1367] ss:$16 sm:%s1368]
  %vm1370 = vcmask 1047558
  %v1371 = vsel %vm1370, %v1369, %v1366
  %1372 = vrot.lane.b32.xlu0 %v1371, 16
  %v1373 = vpop.permute.xlu0 %1372
  %vm1374 = vcmask 261248
  %s1375 = scalar_lea.vmem %s1, 24
  %1376 = vst.msk [vmem:[%s1375] sm:$0xff] %vm1374, %v1373
  %s1377 = scalar_lea.vmem %s0, 393
  %s1378 = smov 3
  %v1379 = vld [vmem:[%s1377] ss:$16 sm:%s1378]
  %s1380 = scalar_lea.vmem %s0, 393
  %s1381 = smov 12
  %v1382 = vld [vmem:[%s1380] ss:$16 sm:%s1381]
  %vm1383 = vcmask 1043458
  %v1384 = vsel %vm1383, %v1382, %v1379
  %s1385 = scalar_lea.vmem %s0, 393
  %s1386 = smov 48
  %v1387 = vld [vmem:[%s1385] ss:$16 sm:%s1386]
  %vm1388 = vcmask 1045508
  %v1389 = vsel %vm1388, %v1387, %v1384
  %s1390 = scalar_lea.vmem %s0, 393
  %s1391 = smov 192
  %v1392 = vld [vmem:[%s1390] ss:$16 sm:%s1391]
  %vm1393 = vcmask 1047558
  %v1394 = vsel %vm1393, %v1392, %v1389
  %1395 = vrot.lane.b32.xlu0 %v1394, 16
  %v1396 = vpop.permute.xlu0 %1395
  %vm1397 = vcmask 261248
  %s1398 = scalar_lea.vmem %s1, 56
  %1399 = vst.msk [vmem:[%s1398] sm:$0xff] %vm1397, %v1396

// kernel: gatv2conv_forward.1
$region0: #{gatv2conv_forward.1}
  #allocation0 [shape = 'u32[]', space=smem, size = 0x4, offset = 0x4, fixed_abs, tag = 'smem constant byte address 0x4 - core index']
  #allocation1 [shape = 'u32[72,128]{1,0:T(1,128)}', space=vmem, size = 0x9000, scoped, tag = 'internal scratch']
  %s0 = inlined_call_operand.vmem [shape: f32[256,8], index: 0, kind: input, shape index: {}]
  %s1 = inlined_call_operand.vmem [shape: f32[16,128], index: 1, kind: input, shape index: {}]
  %s2 = inlined_call_operand.vmem [shape: f32[256,32], index: 2, kind: input, shape index: {}]
  %s3 = inlined_call_operand.vmem [shape: f32[8,256], index: 3, kind: input, shape index: {}]
  %s4 = inlined_call_operand.vmem [shape: f32[1,256], index: 4, kind: input, shape index: {}]
  %s5 = inlined_call_operand.vmem [shape: f32[128,256], index: 5, kind: input, shape index: {}]
  %s6 = inlined_call_operand.vmem [shape: f32[1,256], index: 6, kind: input, shape index: {}]
  %s7 = inlined_call_operand.vmem [shape: f32[256,32], index: 7, kind: input, shape index: {}]
  %s8 = inlined_call_operand.vmem [shape: f32[32,256], index: 8, kind: input, shape index: {}]
  %s9 = inlined_call_operand.vmem [shape: f32[256,8], index: 9, kind: input, shape index: {}]
  %s10 = inlined_call_operand.vmem [shape: f32[1,8], index: 10, kind: input, shape index: {}]
  %s11 = inlined_call_operand.vmem [shape: f32[256,8], index: 11, kind: output, shape index: {}]
  %s12 = sld [smem:[#allocation0]]
  $region77: #{gatv2conv_forward.1} parent=0
    _
  %s14 = ssub.s32 1, %s12
  %s15 = scalar_select 0, %s14, %s12
  loop: start=0, step=1, limit=4
  $region2: #{gatv2conv_forward.1} parent=0 // loop_pre_header
    _
  $region3: #{gatv2conv_forward.1} parent=0 // loop_header
    %s17 = sphi 0, %s21
    %p18 = scmp.ge.s32.totalorder %s17, 4
    %s27 = sphi 0, %s29
    %s30 = sphi 0, %s27
    %s31 = sphi 0, %s30
    %s47 = sphi 0, %s31
    %s53 = sphi 0, %s55
    %s56 = sphi 0, %s53
    %s57 = sphi 0, %s56
    %s73 = sphi 0, %s57
    %s79 = sphi 0, %s81
    %s82 = sphi 0, %s79
    %s83 = sphi 0, %s82
    %s99 = sphi 0, %s83
    %s103 = sphi 0, %s103
    %s105 = sphi 0, %s103
    %s106 = sphi 0, %s105
    %s120 = sphi 0, %s106
    %s124 = sphi 0, %s124
    %s126 = sphi 0, %s124
    %s127 = sphi 0, %s126
    %s141 = sphi 0, %s127
    %s145 = sphi 0, %s145
    %s147 = sphi 0, %s145
    %s148 = sphi 0, %s147
    %s162 = sphi 0, %s148
    %s166 = sphi 0, %s166
    %s168 = sphi 0, %s166
    %s169 = sphi 0, %s168
    %s183 = sphi 0, %s169
    %s187 = sphi 0, %s187
    %s189 = sphi 0, %s187
    %s190 = sphi 0, %s189
    %s204 = sphi 0, %s190
    %s208 = sphi 0, %s208
    %s210 = sphi 0, %s208
    %s211 = sphi 0, %s210
    %s225 = sphi 0, %s211
    %s229 = sphi 0, %s229
    %s231 = sphi 0, %s229
    %s232 = sphi 0, %s231
    %s246 = sphi 0, %s232
    %s250 = sphi 0, %s250
    %s252 = sphi 0, %s250
    %s253 = sphi 0, %s252
    %s267 = sphi 0, %s253
    %s273 = sphi 0, %s275
    %s276 = sphi 0, %s273
    %s277 = sphi 0, %s276
    %s293 = sphi 0, %s277
  $region4: #{gatv2conv_forward.1} parent=0 // loop_header_branch
    %20 = sbr.rel (%p18) target = $region8
  $region5: #{gatv2conv_forward.1} parent=0 // loop_body
    %s22 = ssub.s32 %s17, 1
    %s23 = ssub.s32 %s17, 2
    %s24 = sadd.s32 %s17, 1
    %s25 = ssub.s32 %s17, %s24
    %p26 = scmp.eq.s32.totalorder %s25, 0
    %s28 = sadd.s32 %s27, 1
    %s29 = scalar_select %p26, %s27, %s28
    %p32 = pneg %p26
    %p33 = scmp.eq.s32.totalorder %s17, 1
    %p34 = por %p32, %p33
    %p35 = scmp.ne.s32.totalorder %s27, %s30
    %p36 = scmp.eq.s32.totalorder %s17, 0
    %p37 = por %p35, %p36
    %p38 = scmp.ne.s32.totalorder %s27, %s30
    %p39 = scmp.eq.s32.totalorder %s22, 1
    %p40 = por %p38, %p39
    %p41 = scmp.ne.s32.totalorder %s30, %s31
    %p42 = scmp.eq.s32.totalorder %s22, 0
    %p43 = por %p41, %p42
    %p44 = scmp.ne.s32.totalorder %s30, %s31
    %p45 = scmp.eq.s32.totalorder %s23, 1
    %p46 = por %p44, %p45
    %p48 = scmp.ne.s32.totalorder %s31, %s47
    %p49 = scmp.eq.s32.totalorder %s23, 0
    %p50 = por %p48, %p49
    %s51 = ssub.s32 %s17, %s24
    %p52 = scmp.eq.s32.totalorder %s51, 0
    %s54 = sadd.s32 %s53, 1
    %s55 = scalar_select %p52, %s53, %s54
    %p58 = pneg %p52
    %p59 = scmp.eq.s32.totalorder %s17, 1
    %p60 = por %p58, %p59
    %p61 = scmp.ne.s32.totalorder %s53, %s56
    %p62 = scmp.eq.s32.totalorder %s17, 0
    %p63 = por %p61, %p62
    %p64 = scmp.ne.s32.totalorder %s53, %s56
    %p65 = scmp.eq.s32.totalorder %s22, 1
    %p66 = por %p64, %p65
    %p67 = scmp.ne.s32.totalorder %s56, %s57
    %p68 = scmp.eq.s32.totalorder %s22, 0
    %p69 = por %p67, %p68
    %p70 = scmp.ne.s32.totalorder %s56, %s57
    %p71 = scmp.eq.s32.totalorder %s23, 1
    %p72 = por %p70, %p71
    %p74 = scmp.ne.s32.totalorder %s57, %s73
    %p75 = scmp.eq.s32.totalorder %s23, 0
    %p76 = por %p74, %p75
    %s77 = ssub.s32 %s17, %s24
    %p78 = scmp.eq.s32.totalorder %s77, 0
    %s80 = sadd.s32 %s79, 1
    %s81 = scalar_select %p78, %s79, %s80
    %p84 = pneg %p78
    %p85 = scmp.eq.s32.totalorder %s17, 1
    %p86 = por %p84, %p85
    %p87 = scmp.ne.s32.totalorder %s79, %s82
    %p88 = scmp.eq.s32.totalorder %s17, 0
    %p89 = por %p87, %p88
    %p90 = scmp.ne.s32.totalorder %s79, %s82
    %p91 = scmp.eq.s32.totalorder %s22, 1
    %p92 = por %p90, %p91
    %p93 = scmp.ne.s32.totalorder %s82, %s83
    %p94 = scmp.eq.s32.totalorder %s22, 0
    %p95 = por %p93, %p94
    %p96 = scmp.ne.s32.totalorder %s82, %s83
    %p97 = scmp.eq.s32.totalorder %s23, 1
    %p98 = por %p96, %p97
    %p100 = scmp.ne.s32.totalorder %s83, %s99
    %p101 = scmp.eq.s32.totalorder %s23, 0
    %p102 = por %p100, %p101
    %s104 = sadd.s32 %s103, 1
    %p107 = scmp.eq.s32.totalorder %s17, 1
    %p108 = scmp.ne.s32.totalorder %s103, %s105
    %p109 = scmp.eq.s32.totalorder %s17, 0
    %p110 = por %p108, %p109
    %p111 = scmp.ne.s32.totalorder %s103, %s105
    %p112 = scmp.eq.s32.totalorder %s22, 1
    %p113 = por %p111, %p112
    %p114 = scmp.ne.s32.totalorder %s105, %s106
    %p115 = scmp.eq.s32.totalorder %s22, 0
    %p116 = por %p114, %p115
    %p117 = scmp.ne.s32.totalorder %s105, %s106
    %p118 = scmp.eq.s32.totalorder %s23, 1
    %p119 = por %p117, %p118
    %p121 = scmp.ne.s32.totalorder %s106, %s120
    %p122 = scmp.eq.s32.totalorder %s23, 0
    %p123 = por %p121, %p122
    %s125 = sadd.s32 %s124, 1
    %p128 = scmp.eq.s32.totalorder %s17, 1
    %p129 = scmp.ne.s32.totalorder %s124, %s126
    %p130 = scmp.eq.s32.totalorder %s17, 0
    %p131 = por %p129, %p130
    %p132 = scmp.ne.s32.totalorder %s124, %s126
    %p133 = scmp.eq.s32.totalorder %s22, 1
    %p134 = por %p132, %p133
    %p135 = scmp.ne.s32.totalorder %s126, %s127
    %p136 = scmp.eq.s32.totalorder %s22, 0
    %p137 = por %p135, %p136
    %p138 = scmp.ne.s32.totalorder %s126, %s127
    %p139 = scmp.eq.s32.totalorder %s23, 1
    %p140 = por %p138, %p139
    %p142 = scmp.ne.s32.totalorder %s127, %s141
    %p143 = scmp.eq.s32.totalorder %s23, 0
    %p144 = por %p142, %p143
    %s146 = sadd.s32 %s145, 1
    %p149 = scmp.eq.s32.totalorder %s17, 1
    %p150 = scmp.ne.s32.totalorder %s145, %s147
    %p151 = scmp.eq.s32.totalorder %s17, 0
    %p152 = por %p150, %p151
    %p153 = scmp.ne.s32.totalorder %s145, %s147
    %p154 = scmp.eq.s32.totalorder %s22, 1
    %p155 = por %p153, %p154
    %p156 = scmp.ne.s32.totalorder %s147, %s148
    %p157 = scmp.eq.s32.totalorder %s22, 0
    %p158 = por %p156, %p157
    %p159 = scmp.ne.s32.totalorder %s147, %s148
    %p160 = scmp.eq.s32.totalorder %s23, 1
    %p161 = por %p159, %p160
    %p163 = scmp.ne.s32.totalorder %s148, %s162
    %p164 = scmp.eq.s32.totalorder %s23, 0
    %p165 = por %p163, %p164
    %s167 = sadd.s32 %s166, 1
    %p170 = scmp.eq.s32.totalorder %s17, 1
    %p171 = scmp.ne.s32.totalorder %s166, %s168
    %p172 = scmp.eq.s32.totalorder %s17, 0
    %p173 = por %p171, %p172
    %p174 = scmp.ne.s32.totalorder %s166, %s168
    %p175 = scmp.eq.s32.totalorder %s22, 1
    %p176 = por %p174, %p175
    %p177 = scmp.ne.s32.totalorder %s168, %s169
    %p178 = scmp.eq.s32.totalorder %s22, 0
    %p179 = por %p177, %p178
    %p180 = scmp.ne.s32.totalorder %s168, %s169
    %p181 = scmp.eq.s32.totalorder %s23, 1
    %p182 = por %p180, %p181
    %p184 = scmp.ne.s32.totalorder %s169, %s183
    %p185 = scmp.eq.s32.totalorder %s23, 0
    %p186 = por %p184, %p185
    %s188 = sadd.s32 %s187, 1
    %p191 = scmp.eq.s32.totalorder %s17, 1
    %p192 = scmp.ne.s32.totalorder %s187, %s189
    %p193 = scmp.eq.s32.totalorder %s17, 0
    %p194 = por %p192, %p193
    %p195 = scmp.ne.s32.totalorder %s187, %s189
    %p196 = scmp.eq.s32.totalorder %s22, 1
    %p197 = por %p195, %p196
    %p198 = scmp.ne.s32.totalorder %s189, %s190
    %p199 = scmp.eq.s32.totalorder %s22, 0
    %p200 = por %p198, %p199
    %p201 = scmp.ne.s32.totalorder %s189, %s190
    %p202 = scmp.eq.s32.totalorder %s23, 1
    %p203 = por %p201, %p202
    %p205 = scmp.ne.s32.totalorder %s190, %s204
    %p206 = scmp.eq.s32.totalorder %s23, 0
    %p207 = por %p205, %p206
    %s209 = sadd.s32 %s208, 1
    %p212 = scmp.eq.s32.totalorder %s17, 1
    %p213 = scmp.ne.s32.totalorder %s208, %s210
    %p214 = scmp.eq.s32.totalorder %s17, 0
    %p215 = por %p213, %p214
    %p216 = scmp.ne.s32.totalorder %s208, %s210
    %p217 = scmp.eq.s32.totalorder %s22, 1
    %p218 = por %p216, %p217
    %p219 = scmp.ne.s32.totalorder %s210, %s211
    %p220 = scmp.eq.s32.totalorder %s22, 0
    %p221 = por %p219, %p220
    %p222 = scmp.ne.s32.totalorder %s210, %s211
    %p223 = scmp.eq.s32.totalorder %s23, 1
    %p224 = por %p222, %p223
    %p226 = scmp.ne.s32.totalorder %s211, %s225
    %p227 = scmp.eq.s32.totalorder %s23, 0
    %p228 = por %p226, %p227
    %s230 = sadd.s32 %s229, 1
    %p233 = scmp.eq.s32.totalorder %s17, 1
    %p234 = scmp.ne.s32.totalorder %s229, %s231
    %p235 = scmp.eq.s32.totalorder %s17, 0
    %p236 = por %p234, %p235
    %p237 = scmp.ne.s32.totalorder %s229, %s231
    %p238 = scmp.eq.s32.totalorder %s22, 1
    %p239 = por %p237, %p238
    %p240 = scmp.ne.s32.totalorder %s231, %s232
    %p241 = scmp.eq.s32.totalorder %s22, 0
    %p242 = por %p240, %p241
    %p243 = scmp.ne.s32.totalorder %s231, %s232
    %p244 = scmp.eq.s32.totalorder %s23, 1
    %p245 = por %p243, %p244
    %p247 = scmp.ne.s32.totalorder %s232, %s246
    %p248 = scmp.eq.s32.totalorder %s23, 0
    %p249 = por %p247, %p248
    %s251 = sadd.s32 %s250, 1
    %p254 = scmp.eq.s32.totalorder %s17, 1
    %p255 = scmp.ne.s32.totalorder %s250, %s252
    %p256 = scmp.eq.s32.totalorder %s17, 0
    %p257 = por %p255, %p256
    %p258 = scmp.ne.s32.totalorder %s250, %s252
    %p259 = scmp.eq.s32.totalorder %s22, 1
    %p260 = por %p258, %p259
    %p261 = scmp.ne.s32.totalorder %s252, %s253
    %p262 = scmp.eq.s32.totalorder %s22, 0
    %p263 = por %p261, %p262
    %p264 = scmp.ne.s32.totalorder %s252, %s253
    %p265 = scmp.eq.s32.totalorder %s23, 1
    %p266 = por %p264, %p265
    %p268 = scmp.ne.s32.totalorder %s253, %s267
    %p269 = scmp.eq.s32.totalorder %s23, 0
    %p270 = por %p268, %p269
    %s271 = ssub.s32 %s17, %s24
    %p272 = scmp.eq.s32.totalorder %s271, 0
    %s274 = sadd.s32 %s273, 1
    %s275 = scalar_select %p272, %s273, %s274
    %p278 = pneg %p272
    %p279 = scmp.eq.s32.totalorder %s17, 1
    %p280 = por %p278, %p279
    %p281 = scmp.ne.s32.totalorder %s273, %s276
    %p282 = scmp.eq.s32.totalorder %s17, 0
    %p283 = por %p281, %p282
    %p284 = scmp.ne.s32.totalorder %s273, %s276
    %p285 = scmp.eq.s32.totalorder %s22, 1
    %p286 = por %p284, %p285
    %p287 = scmp.ne.s32.totalorder %s276, %s277
    %p288 = scmp.eq.s32.totalorder %s22, 0
    %p289 = por %p287, %p288
    %p290 = scmp.ne.s32.totalorder %s276, %s277
    %p291 = scmp.eq.s32.totalorder %s23, 1
    %p292 = por %p290, %p291
    %p294 = scmp.ne.s32.totalorder %s277, %s293
    %p295 = scmp.eq.s32.totalorder %s23, 0
    %p296 = por %p294, %p295
    %p297 = scmp.le.s32.totalorder 1, %s17
    %p298 = scmp.lt.s32.totalorder %s17, 3
    %p299 = pnand %p297, %p298
    %p300 = pneg %p299
    // Predicated region
    $region9: #{gatv2conv_forward.1} parent=5 // pred_check
      _
    $region10: #{gatv2conv_forward.1} parent=5 // pred_check_branch
      %302 = sbr.rel (%p299) target = $region12
    $region11: #{gatv2conv_forward.1} parent=5 // pred_region
      %s303 = ssub.s32 %s17, 1
      // Predicated region
      $region13: #{gatv2conv_forward.1} parent=11 // pred_check
        %p304 = pneg %p116
      $region14: #{gatv2conv_forward.1} parent=11 // pred_check_branch
        %306 = sbr.rel (%p304) target = $region16
      $region15: #{gatv2conv_forward.1} parent=11 // pred_region
        _
      $region16: #{gatv2conv_forward.1} parent=11 // pred_fallthru
        _
      // Predicated region
      $region17: #{gatv2conv_forward.1} parent=11 // pred_check
        %p307 = pneg %p137
      $region18: #{gatv2conv_forward.1} parent=11 // pred_check_branch
        %309 = sbr.rel (%p307) target = $region20
      $region19: #{gatv2conv_forward.1} parent=11 // pred_region
        _
      $region20: #{gatv2conv_forward.1} parent=11 // pred_fallthru
        _
      // Predicated region
      $region21: #{gatv2conv_forward.1} parent=11 // pred_check
        %p310 = pneg %p158
      $region22: #{gatv2conv_forward.1} parent=11 // pred_check_branch
        %312 = sbr.rel (%p310) target = $region24
      $region23: #{gatv2conv_forward.1} parent=11 // pred_region
        _
      $region24: #{gatv2conv_forward.1} parent=11 // pred_fallthru
        _
      // Predicated region
      $region25: #{gatv2conv_forward.1} parent=11 // pred_check
        %p313 = pneg %p179
      $region26: #{gatv2conv_forward.1} parent=11 // pred_check_branch
        %315 = sbr.rel (%p313) target = $region28
      $region27: #{gatv2conv_forward.1} parent=11 // pred_region
        _
      $region28: #{gatv2conv_forward.1} parent=11 // pred_fallthru
        _
      // Predicated region
      $region29: #{gatv2conv_forward.1} parent=11 // pred_check
        %p316 = pneg %p200
      $region30: #{gatv2conv_forward.1} parent=11 // pred_check_branch
        %318 = sbr.rel (%p316) target = $region32
      $region31: #{gatv2conv_forward.1} parent=11 // pred_region
        _
      $region32: #{gatv2conv_forward.1} parent=11 // pred_fallthru
        _
      // Predicated region
      $region33: #{gatv2conv_forward.1} parent=11 // pred_check
        %p319 = pneg %p221
      $region34: #{gatv2conv_forward.1} parent=11 // pred_check_branch
        %321 = sbr.rel (%p319) target = $region36
      $region35: #{gatv2conv_forward.1} parent=11 // pred_region
        _
      $region36: #{gatv2conv_forward.1} parent=11 // pred_fallthru
        _
      // Predicated region
      $region37: #{gatv2conv_forward.1} parent=11 // pred_check
        %p322 = pneg %p242
      $region38: #{gatv2conv_forward.1} parent=11 // pred_check_branch
        %324 = sbr.rel (%p322) target = $region40
      $region39: #{gatv2conv_forward.1} parent=11 // pred_region
        _
      $region40: #{gatv2conv_forward.1} parent=11 // pred_fallthru
        _
      // Predicated region
      $region41: #{gatv2conv_forward.1} parent=11 // pred_check
        %p325 = pneg %p263
      $region42: #{gatv2conv_forward.1} parent=11 // pred_check_branch
        %327 = sbr.rel (%p325) target = $region44
      $region43: #{gatv2conv_forward.1} parent=11 // pred_region
        _
      $region44: #{gatv2conv_forward.1} parent=11 // pred_fallthru
        _
    $region12: #{gatv2conv_forward.1} parent=5 // pred_fallthru
      _
    %p328 = scmp.lt.s32.totalorder %s17, 2
    // Predicated region
    $region45: #{gatv2conv_forward.1} parent=5 // pred_check
      %p329 = pneg %p328
    $region46: #{gatv2conv_forward.1} parent=5 // pred_check_branch
      %331 = sbr.rel (%p329) target = $region48
    $region47: #{gatv2conv_forward.1} parent=5 // pred_region
      // Predicated region
      $region49: #{gatv2conv_forward.1} parent=47 // pred_check
        %p332 = pneg %p37
      $region50: #{gatv2conv_forward.1} parent=47 // pred_check_branch
        %334 = sbr.rel (%p332) target = $region52
      $region51: #{gatv2conv_forward.1} parent=47 // pred_region
        %s335 = smul.u32 16, %s17
        %p336 = scmp.lt.s32.totalorder %s335, 31
        %s337 = scalar_select %p336, %s335, 31
        %s338 = smul.addr %s337, 8
        %s339 = scalar_lea.vmem %s0, %s338
        %s340 = smul.u32 16, %s17
      $region52: #{gatv2conv_forward.1} parent=47 // pred_fallthru
        _
      // Predicated region
      $region53: #{gatv2conv_forward.1} parent=47 // pred_check
        %p341 = pneg %p63
      $region54: #{gatv2conv_forward.1} parent=47 // pred_check_branch
        %343 = sbr.rel (%p341) target = $region56
      $region55: #{gatv2conv_forward.1} parent=47 // pred_region
        %p344 = scmp.lt.s32.totalorder %s17, 1
        %s345 = scalar_select %p344, %s17, 1
        %s346 = smul.addr %s345, 8
        %s347 = scalar_lea.vmem %s1, %s346
      $region56: #{gatv2conv_forward.1} parent=47 // pred_fallthru
        _
      // Predicated region
      $region57: #{gatv2conv_forward.1} parent=47 // pred_check
        %p348 = pneg %p89
      $region58: #{gatv2conv_forward.1} parent=47 // pred_check_branch
        %350 = sbr.rel (%p348) target = $region60
      $region59: #{gatv2conv_forward.1} parent=47 // pred_region
        %s351 = smul.u32 16, %s17
        %p352 = scmp.lt.s32.totalorder %s351, 31
        %s353 = scalar_select %p352, %s351, 31
        %s354 = smul.addr %s353, 8
        %s355 = scalar_lea.vmem %s2, %s354
        %s356 = smul.u32 16, %s17
      $region60: #{gatv2conv_forward.1} parent=47 // pred_fallthru
        _
    $region48: #{gatv2conv_forward.1} parent=5 // pred_fallthru
      _
    %p357 = scmp.le.s32.totalorder 1, %s17
    %p358 = scmp.lt.s32.totalorder %s17, 3
    %p359 = pnand %p357, %p358
    %p360 = pneg %p359
    // Predicated region
    $region61: #{gatv2conv_forward.1} parent=5 // pred_check
      _
    $region62: #{gatv2conv_forward.1} parent=5 // pred_check_branch
      %362 = sbr.rel (%p359) target = $region64
    $region63: #{gatv2conv_forward.1} parent=5 // pred_region
      %s363 = ssub.s32 %s17, 1
      %s364 = smul.u32 16, %s22
      %p365 = scmp.lt.s32.totalorder %s364, 31
      %s366 = scalar_select %p365, %s364, 31
      %s367 = smul.addr %s366, 8
      %s368 = scalar_lea.vmem %s0, %s367
      %p369 = pneg %p43
      %p370 = pneg %p40
      %p371 = scmp.lt.s32.totalorder %s22, 1
      %s372 = scalar_select %p371, %s22, 1
      %s373 = smul.addr %s372, 8
      %s374 = scalar_lea.vmem %s1, %s373
      %p375 = pneg %p69
      %p376 = pneg %p66
      %s377 = smul.u32 16, %s22
      %p378 = scmp.lt.s32.totalorder %s377, 31
      %s379 = scalar_select %p378, %s377, 31
      %s380 = smul.addr %s379, 8
      %s381 = scalar_lea.vmem %s2, %s380
      %p382 = pneg %p95
      %p383 = pneg %p92
      %p384 = pneg %p116
      %p385 = pneg %p113
      %p386 = pneg %p137
      %p387 = pneg %p134
      %p388 = pneg %p158
      %p389 = pneg %p155
      %p390 = pneg %p179
      %p391 = pneg %p176
      %p392 = pneg %p200
      %p393 = pneg %p197
      %p394 = pneg %p221
      %p395 = pneg %p218
      %p396 = pneg %p242
      %p397 = pneg %p239
      %p398 = pneg %p263
      %p399 = pneg %p260
      %p400 = pneg %p289
      %p401 = pneg %p286
      %s402 = smul.u32 16, %s22
      %p403 = scmp.lt.s32.totalorder %s402, 31
      %s404 = scalar_select %p403, %s402, 31
      %s405 = smul.addr %s404, 8
      %s406 = scalar_lea.vmem %s11, %s405
      %s407 = smul.u32 16, %s22
      %p408 = scmp.lt.s32.totalorder %s407, 31
      %s409 = scalar_select %p408, %s407, 31
      %s410 = smul.addr %s409, 8
      %s411 = scalar_lea.vmem %s0, %s410
      %s412 = smul.u32 16, %s22
      %p413 = scmp.lt.s32.totalorder %s22, 1
      %s414 = scalar_select %p413, %s22, 1
      %s415 = smul.addr %s414, 8
      %s416 = scalar_lea.vmem %s1, %s415
      %s417 = smul.u32 16, %s22
      %p418 = scmp.lt.s32.totalorder %s417, 31
      %s419 = scalar_select %p418, %s417, 31
      %s420 = smul.addr %s419, 8
      %s421 = scalar_lea.vmem %s2, %s420
      %s422 = smul.u32 16, %s22
      %s423 = smul.u32 16, %s22
      %p424 = scmp.lt.s32.totalorder %s423, 31
      %s425 = scalar_select %p424, %s423, 31
      %s426 = smul.addr %s425, 8
      %s427 = scalar_lea.vmem %s11, %s426
      %s428 = smul.u32 16, %s22
      %v430 = vld [vmem:[%s411] sm:$0xff]
      %v431 = vld [vmem:[%s411 + $0x8] sm:$0xff]
      %v432 = vld [vmem:[%s411 + $0x10] sm:$0xff]
      %v433 = vld [vmem:[%s411 + $0x18] sm:$0xff]
      %v434 = vld [vmem:[%s411 + $0x20] sm:$0xff]
      %v435 = vld [vmem:[%s411 + $0x28] sm:$0xff]
      %v436 = vld [vmem:[%s411 + $0x30] sm:$0xff]
      %v437 = vld [vmem:[%s411 + $0x38] sm:$0xff]
      %v438 = vld [vmem:[%s411 + $0x40] sm:$0xff]
      %v439 = vld [vmem:[%s411 + $0x48] sm:$0xff]
      %v440 = vld [vmem:[%s411 + $0x50] sm:$0xff]
      %v441 = vld [vmem:[%s411 + $0x58] sm:$0xff]
      %v442 = vld [vmem:[%s411 + $0x60] sm:$0xff]
      %v443 = vld [vmem:[%s411 + $0x68] sm:$0xff]
      %v444 = vld [vmem:[%s411 + $0x70] sm:$0xff]
      %v445 = vld [vmem:[%s411 + $0x78] sm:$0xff]
      %v446 = vpack.c.bf16 %v431, %v430
      %v447 = vpack.c.bf16 %v433, %v432
      %v448 = vpack.c.bf16 %v435, %v434
      %v449 = vpack.c.bf16 %v437, %v436
      %v450 = vpack.c.bf16 %v439, %v438
      %v451 = vpack.c.bf16 %v441, %v440
      %v452 = vpack.c.bf16 %v443, %v442
      %v453 = vpack.c.bf16 %v445, %v444
      %v454 = vld [vmem:[%s3] sm:$0xff]
      %v455 = vld [vmem:[%s3 + $0x8] sm:$0xff]
      %v456 = vpack.c.bf16 %v454, %v454
      %v457 = vpack.c.bf16 %v455, %v455
      %v458 = vld [vmem:[%s4] sm:$0x3]
      %v460 = vperm.slane %v458, 0
      %v461 = vperm.slane %v458, 1
      %vm464 = vcmask 64512
      %v466 = vsel %vm464, %v446, 0
      %v469 = vsel %vm464, %v447, 0
      %v472 = vsel %vm464, %v448, 0
      %v475 = vsel %vm464, %v449, 0
      %v478 = vsel %vm464, %v450, 0
      %v481 = vsel %vm464, %v451, 0
      %v484 = vsel %vm464, %v452, 0
      %v487 = vsel %vm464, %v453, 0
      %vm489 = vcmask 1043456
      %v491 = vsel %vm489, %v456, 0
      %v494 = vsel %vm489, %v457, 0
      %496 = vmatpush.bf16.msra.mxu0 0
      %497 = vmatpush.bf16.msra.mxu0 0
      %498 = vmatpush.bf16.msra.mxu0 0
      %499 = vmatpush.bf16.msra.mxu0 0
      %500 = vmatpush.bf16.msra.mxu0 0
      %501 = vmatpush.bf16.msra.mxu0 0
      %502 = vmatpush.bf16.msra.mxu0 0
      %503 = vmatpush.bf16.msra.mxu0 %v491
      %504 = vmatmul.bf16.gmra.mxu0 %v466
      %v505 = vpop.f32.mrf.mxu0
      %v506 = vadd.f32 %v460, %v505
      %v507 = vpop.f32.mrf.mxu0
      %v508 = vadd.f32 %v460, %v507
      %509 = vmatmul.bf16.gmra.mxu0 %v469
      %v510 = vpop.f32.mrf.mxu0
      %v511 = vadd.f32 %v460, %v510
      %v512 = vpop.f32.mrf.mxu0
      %v513 = vadd.f32 %v460, %v512
      %514 = vmatmul.bf16.gmra.mxu0 %v472
      %v515 = vpop.f32.mrf.mxu0
      %v516 = vadd.f32 %v460, %v515
      %v517 = vpop.f32.mrf.mxu0
      %v518 = vadd.f32 %v460, %v517
      %519 = vmatmul.bf16.gmra.mxu0 %v475
      %v520 = vpop.f32.mrf.mxu0
      %v521 = vadd.f32 %v460, %v520
      %v522 = vpop.f32.mrf.mxu0
      %v523 = vadd.f32 %v460, %v522
      %524 = vmatmul.bf16.gmra.mxu0 %v478
      %v525 = vpop.f32.mrf.mxu0
      %v526 = vadd.f32 %v460, %v525
      %v527 = vpop.f32.mrf.mxu0
      %v528 = vadd.f32 %v460, %v527
      %529 = vmatmul.bf16.gmra.mxu0 %v481
      %v530 = vpop.f32.mrf.mxu0
      %v531 = vadd.f32 %v460, %v530
      %v532 = vpop.f32.mrf.mxu0
      %v533 = vadd.f32 %v460, %v532
      %534 = vmatmul.bf16.gmra.mxu0 %v484
      %v535 = vpop.f32.mrf.mxu0
      %v536 = vadd.f32 %v460, %v535
      %v537 = vpop.f32.mrf.mxu0
      %v538 = vadd.f32 %v460, %v537
      %539 = vmatmul.bf16.gmra.mxu0 %v487
      %v540 = vpop.f32.mrf.mxu0
      %v541 = vadd.f32 %v460, %v540
      %v542 = vpop.f32.mrf.mxu0
      %v543 = vadd.f32 %v460, %v542
      %544 = vdwg.mxu0
      %545 = vmatpush.bf16.msra.mxu0 0
      %546 = vmatpush.bf16.msra.mxu0 0
      %547 = vmatpush.bf16.msra.mxu0 0
      %548 = vmatpush.bf16.msra.mxu0 0
      %549 = vmatpush.bf16.msra.mxu0 0
      %550 = vmatpush.bf16.msra.mxu0 0
      %551 = vmatpush.bf16.msra.mxu0 0
      %552 = vmatpush.bf16.msra.mxu0 %v494
      %553 = vmatmul.bf16.gmra.mxu0 %v466
      %v554 = vpop.f32.mrf.mxu0
      %v555 = vadd.f32 %v461, %v554
      %v556 = vpop.f32.mrf.mxu0
      %v557 = vadd.f32 %v461, %v556
      %558 = vmatmul.bf16.gmra.mxu0 %v469
      %v559 = vpop.f32.mrf.mxu0
      %v560 = vadd.f32 %v461, %v559
      %v561 = vpop.f32.mrf.mxu0
      %v562 = vadd.f32 %v461, %v561
      %563 = vmatmul.bf16.gmra.mxu0 %v472
      %v564 = vpop.f32.mrf.mxu0
      %v565 = vadd.f32 %v461, %v564
      %v566 = vpop.f32.mrf.mxu0
      %v567 = vadd.f32 %v461, %v566
      %568 = vmatmul.bf16.gmra.mxu0 %v475
      %v569 = vpop.f32.mrf.mxu0
      %v570 = vadd.f32 %v461, %v569
      %v571 = vpop.f32.mrf.mxu0
      %v572 = vadd.f32 %v461, %v571
      %573 = vmatmul.bf16.gmra.mxu0 %v478
      %v574 = vpop.f32.mrf.mxu0
      %v575 = vadd.f32 %v461, %v574
      %v576 = vpop.f32.mrf.mxu0
      %v577 = vadd.f32 %v461, %v576
      %578 = vmatmul.bf16.gmra.mxu0 %v481
      %v579 = vpop.f32.mrf.mxu0
      %v580 = vadd.f32 %v461, %v579
      %v581 = vpop.f32.mrf.mxu0
      %v582 = vadd.f32 %v461, %v581
      %583 = vmatmul.bf16.gmra.mxu0 %v484
      %v584 = vpop.f32.mrf.mxu0
      %v585 = vadd.f32 %v461, %v584
      %v586 = vpop.f32.mrf.mxu0
      %v587 = vadd.f32 %v461, %v586
      %588 = vmatmul.bf16.gmra.mxu0 %v487
      %v589 = vpop.f32.mrf.mxu0
      %v590 = vadd.f32 %v461, %v589
      %v591 = vpop.f32.mrf.mxu0
      %v592 = vadd.f32 %v461, %v591
      %593 = vdwg.mxu0
      %v594 = vld [vmem:[%s416] sm:$0xff]
      %v595 = vpack.c.bf16 %v594, %v594
      %v596 = vld [vmem:[%s5] sm:$0xff]
      %v597 = vld [vmem:[%s5 + $0x8] sm:$0xff]
      %v598 = vld [vmem:[%s5 + $0x10] sm:$0xff]
      %v599 = vld [vmem:[%s5 + $0x18] sm:$0xff]
      %v600 = vld [vmem:[%s5 + $0x20] sm:$0xff]
      %v601 = vld [vmem:[%s5 + $0x28] sm:$0xff]
      %v602 = vld [vmem:[%s5 + $0x30] sm:$0xff]
      %v603 = vld [vmem:[%s5 + $0x38] sm:$0xff]
      %v604 = vld [vmem:[%s5 + $0x40] sm:$0xff]
      %v605 = vld [vmem:[%s5 + $0x48] sm:$0xff]
      %v606 = vld [vmem:[%s5 + $0x50] sm:$0xff]
      %v607 = vld [vmem:[%s5 + $0x58] sm:$0xff]
      %v608 = vld [vmem:[%s5 + $0x60] sm:$0xff]
      %v609 = vld [vmem:[%s5 + $0x68] sm:$0xff]
      %v610 = vld [vmem:[%s5 + $0x70] sm:$0xff]
      %v611 = vld [vmem:[%s5 + $0x78] sm:$0xff]
      %v612 = vld [vmem:[%s5 + $0x80] sm:$0xff]
      %v613 = vld [vmem:[%s5 + $0x88] sm:$0xff]
      %v614 = vld [vmem:[%s5 + $0x90] sm:$0xff]
      %v615 = vld [vmem:[%s5 + $0x98] sm:$0xff]
      %v616 = vld [vmem:[%s5 + $0xa0] sm:$0xff]
      %v617 = vld [vmem:[%s5 + $0xa8] sm:$0xff]
      %v618 = vld [vmem:[%s5 + $0xb0] sm:$0xff]
      %v619 = vld [vmem:[%s5 + $0xb8] sm:$0xff]
      %v620 = vld [vmem:[%s5 + $0xc0] sm:$0xff]
      %v621 = vld [vmem:[%s5 + $0xc8] sm:$0xff]
      %v622 = vld [vmem:[%s5 + $0xd0] sm:$0xff]
      %v623 = vld [vmem:[%s5 + $0xd8] sm:$0xff]
      %v624 = vld [vmem:[%s5 + $0xe0] sm:$0xff]
      %v625 = vld [vmem:[%s5 + $0xe8] sm:$0xff]
      %v626 = vld [vmem:[%s5 + $0xf0] sm:$0xff]
      %v627 = vld [vmem:[%s5 + $0xf8] sm:$0xff]
      %v628 = vpack.c.bf16 %v598, %v596
      %v629 = vpack.c.bf16 %v599, %v597
      %v630 = vpack.c.bf16 %v602, %v600
      %v631 = vpack.c.bf16 %v603, %v601
      %v632 = vpack.c.bf16 %v606, %v604
      %v633 = vpack.c.bf16 %v607, %v605
      %v634 = vpack.c.bf16 %v610, %v608
      %v635 = vpack.c.bf16 %v611, %v609
      %v636 = vpack.c.bf16 %v614, %v612
      %v637 = vpack.c.bf16 %v615, %v613
      %v638 = vpack.c.bf16 %v618, %v616
      %v639 = vpack.c.bf16 %v619, %v617
      %v640 = vpack.c.bf16 %v622, %v620
      %v641 = vpack.c.bf16 %v623, %v621
      %v642 = vpack.c.bf16 %v626, %v624
      %v643 = vpack.c.bf16 %v627, %v625
      %v644 = vld [vmem:[%s6] sm:$0x3]
      %v646 = vperm.slane %v644, 0
      %v647 = vperm.slane %v644, 1
      %650 = vmatpush.bf16.msra.mxu0 %v642
      %651 = vmatpush.bf16.msra.mxu0 %v640
      %652 = vmatpush.bf16.msra.mxu0 %v638
      %653 = vmatpush.bf16.msra.mxu0 %v636
      %654 = vmatpush.bf16.msra.mxu0 %v634
      %655 = vmatpush.bf16.msra.mxu0 %v632
      %656 = vmatpush.bf16.msra.mxu0 %v630
      %657 = vmatpush.bf16.msra.mxu0 %v628
      %658 = vmatmul.bf16.gmra.mxu0 %v595
      %v659 = vpop.f32.mrf.mxu0
      %v660 = vadd.f32 %v646, %v659
      %v661 = vpop.f32.mrf.mxu0
      %662 = vdwg.mxu0
      %663 = vmatpush.bf16.msra.mxu0 %v643
      %664 = vmatpush.bf16.msra.mxu0 %v641
      %665 = vmatpush.bf16.msra.mxu0 %v639
      %666 = vmatpush.bf16.msra.mxu0 %v637
      %667 = vmatpush.bf16.msra.mxu0 %v635
      %668 = vmatpush.bf16.msra.mxu0 %v633
      %669 = vmatpush.bf16.msra.mxu0 %v631
      %670 = vmatpush.bf16.msra.mxu0 %v629
      %671 = vmatmul.bf16.gmra.mxu0 %v595
      %v672 = vpop.f32.mrf.mxu0
      %v673 = vadd.f32 %v647, %v672
      %v674 = vpop.f32.mrf.mxu0
      %675 = vdwg.mxu0
      %v678 = vrot.slane %v673, 7
      %vm679 = vcmask 1040384
      %v680 = vsel %vm679, %v660, %v678
      %vm681 = vcmask 1041409
      %v682 = vsel %vm681, %v660, %v678
      %v683 = vrot.slane %v682, 1
      %vm684 = vcmask 1042434
      %v685 = vsel %vm684, %v660, %v678
      %v686 = vrot.slane %v685, 2
      %vm687 = vcmask 1043459
      %v688 = vsel %vm687, %v660, %v678
      %v689 = vrot.slane %v688, 3
      %vm690 = vcmask 1044484
      %v691 = vsel %vm690, %v660, %v678
      %v692 = vrot.slane %v691, 4
      %vm693 = vcmask 1045509
      %v694 = vsel %vm693, %v660, %v678
      %v695 = vrot.slane %v694, 5
      %vm696 = vcmask 1046534
      %v697 = vsel %vm696, %v660, %v678
      %v698 = vrot.slane %v697, 6
      %vm699 = vcmask 1046528
      %v700 = vsel %vm699, %v678, %v660
      %v701 = vrot.slane %v700, 7
      %v702 = vperm.slane %v680, 0
      %v703 = vperm.slane %v680, 1
      %v704 = vperm.slane %v683, 0
      %v705 = vperm.slane %v683, 1
      %v706 = vperm.slane %v686, 0
      %v707 = vperm.slane %v686, 1
      %v708 = vperm.slane %v689, 0
      %v709 = vperm.slane %v689, 1
      %v710 = vperm.slane %v692, 0
      %v711 = vperm.slane %v692, 1
      %v712 = vperm.slane %v695, 0
      %v713 = vperm.slane %v695, 1
      %v714 = vperm.slane %v698, 0
      %v715 = vperm.slane %v698, 1
      %v716 = vperm.slane %v701, 0
      %v717 = vperm.slane %v701, 1
      %v734 = vadd.f32 %v506, %v702
      %v735 = vadd.f32 %v555, %v703
      %v736 = vadd.f32 %v508, %v702
      %v737 = vadd.f32 %v557, %v703
      %v738 = vadd.f32 %v511, %v704
      %v739 = vadd.f32 %v560, %v705
      %v740 = vadd.f32 %v513, %v704
      %v741 = vadd.f32 %v562, %v705
      %v742 = vadd.f32 %v516, %v706
      %v743 = vadd.f32 %v565, %v707
      %v744 = vadd.f32 %v518, %v706
      %v745 = vadd.f32 %v567, %v707
      %v746 = vadd.f32 %v521, %v708
      %v747 = vadd.f32 %v570, %v709
      %v748 = vadd.f32 %v523, %v708
      %v749 = vadd.f32 %v572, %v709
      %v750 = vadd.f32 %v526, %v710
      %v751 = vadd.f32 %v575, %v711
      %v752 = vadd.f32 %v528, %v710
      %v753 = vadd.f32 %v577, %v711
      %v754 = vadd.f32 %v531, %v712
      %v755 = vadd.f32 %v580, %v713
      %v756 = vadd.f32 %v533, %v712
      %v757 = vadd.f32 %v582, %v713
      %v758 = vadd.f32 %v536, %v714
      %v759 = vadd.f32 %v585, %v715
      %v760 = vadd.f32 %v538, %v714
      %v761 = vadd.f32 %v587, %v715
      %v762 = vadd.f32 %v541, %v716
      %v763 = vadd.f32 %v590, %v717
      %v764 = vadd.f32 %v543, %v716
      %v765 = vadd.f32 %v592, %v717
      %vm766 = vcmp.ge.f32.partialorder %v734, 0.0
      %vm767 = vcmp.ge.f32.partialorder %v735, 0.0
      %vm768 = vcmp.ge.f32.partialorder %v736, 0.0
      %vm769 = vcmp.ge.f32.partialorder %v737, 0.0
      %vm770 = vcmp.ge.f32.partialorder %v738, 0.0
      %vm771 = vcmp.ge.f32.partialorder %v739, 0.0
      %vm772 = vcmp.ge.f32.partialorder %v740, 0.0
      %vm773 = vcmp.ge.f32.partialorder %v741, 0.0
      %vm774 = vcmp.ge.f32.partialorder %v742, 0.0
      %vm775 = vcmp.ge.f32.partialorder %v743, 0.0
      %vm776 = vcmp.ge.f32.partialorder %v744, 0.0
      %vm777 = vcmp.ge.f32.partialorder %v745, 0.0
      %vm778 = vcmp.ge.f32.partialorder %v746, 0.0
      %vm779 = vcmp.ge.f32.partialorder %v747, 0.0
      %vm780 = vcmp.ge.f32.partialorder %v748, 0.0
      %vm781 = vcmp.ge.f32.partialorder %v749, 0.0
      %vm782 = vcmp.ge.f32.partialorder %v750, 0.0
      %vm783 = vcmp.ge.f32.partialorder %v751, 0.0
      %vm784 = vcmp.ge.f32.partialorder %v752, 0.0
      %vm785 = vcmp.ge.f32.partialorder %v753, 0.0
      %vm786 = vcmp.ge.f32.partialorder %v754, 0.0
      %vm787 = vcmp.ge.f32.partialorder %v755, 0.0
      %vm788 = vcmp.ge.f32.partialorder %v756, 0.0
      %vm789 = vcmp.ge.f32.partialorder %v757, 0.0
      %vm790 = vcmp.ge.f32.partialorder %v758, 0.0
      %vm791 = vcmp.ge.f32.partialorder %v759, 0.0
      %vm792 = vcmp.ge.f32.partialorder %v760, 0.0
      %vm793 = vcmp.ge.f32.partialorder %v761, 0.0
      %vm794 = vcmp.ge.f32.partialorder %v762, 0.0
      %vm795 = vcmp.ge.f32.partialorder %v763, 0.0
      %vm796 = vcmp.ge.f32.partialorder %v764, 0.0
      %vm797 = vcmp.ge.f32.partialorder %v765, 0.0
      %v798 = vmul.f32 %v734, 0.2
      %v799 = vmul.f32 %v735, 0.2
      %v800 = vmul.f32 %v736, 0.2
      %v801 = vmul.f32 %v737, 0.2
      %v802 = vmul.f32 %v738, 0.2
      %v803 = vmul.f32 %v739, 0.2
      %v804 = vmul.f32 %v740, 0.2
      %v805 = vmul.f32 %v741, 0.2
      %v806 = vmul.f32 %v742, 0.2
      %v807 = vmul.f32 %v743, 0.2
      %v808 = vmul.f32 %v744, 0.2
      %v809 = vmul.f32 %v745, 0.2
      %v810 = vmul.f32 %v746, 0.2
      %v811 = vmul.f32 %v747, 0.2
      %v812 = vmul.f32 %v748, 0.2
      %v813 = vmul.f32 %v749, 0.2
      %v814 = vmul.f32 %v750, 0.2
      %v815 = vmul.f32 %v751, 0.2
      %v816 = vmul.f32 %v752, 0.2
      %v817 = vmul.f32 %v753, 0.2
      %v818 = vmul.f32 %v754, 0.2
      %v819 = vmul.f32 %v755, 0.2
      %v820 = vmul.f32 %v756, 0.2
      %v821 = vmul.f32 %v757, 0.2
      %v822 = vmul.f32 %v758, 0.2
      %v823 = vmul.f32 %v759, 0.2
      %v824 = vmul.f32 %v760, 0.2
      %v825 = vmul.f32 %v761, 0.2
      %v826 = vmul.f32 %v762, 0.2
      %v827 = vmul.f32 %v763, 0.2
      %v828 = vmul.f32 %v764, 0.2
      %v829 = vmul.f32 %v765, 0.2
      %v830 = vsel %vm766, %v734, %v798
      %v831 = vsel %vm767, %v735, %v799
      %v832 = vsel %vm768, %v736, %v800
      %v833 = vsel %vm769, %v737, %v801
      %v834 = vsel %vm770, %v738, %v802
      %v835 = vsel %vm771, %v739, %v803
      %v836 = vsel %vm772, %v740, %v804
      %v837 = vsel %vm773, %v741, %v805
      %v838 = vsel %vm774, %v742, %v806
      %v839 = vsel %vm775, %v743, %v807
      %v840 = vsel %vm776, %v744, %v808
      %v841 = vsel %vm777, %v745, %v809
      %v842 = vsel %vm778, %v746, %v810
      %v843 = vsel %vm779, %v747, %v811
      %v844 = vsel %vm780, %v748, %v812
      %v845 = vsel %vm781, %v749, %v813
      %v846 = vsel %vm782, %v750, %v814
      %v847 = vsel %vm783, %v751, %v815
      %v848 = vsel %vm784, %v752, %v816
      %v849 = vsel %vm785, %v753, %v817
      %v850 = vsel %vm786, %v754, %v818
      %v851 = vsel %vm787, %v755, %v819
      %v852 = vsel %vm788, %v756, %v820
      %v853 = vsel %vm789, %v757, %v821
      %v854 = vsel %vm790, %v758, %v822
      %v855 = vsel %vm791, %v759, %v823
      %v856 = vsel %vm792, %v760, %v824
      %v857 = vsel %vm793, %v761, %v825
      %v858 = vsel %vm794, %v762, %v826
      %v859 = vsel %vm795, %v763, %v827
      %v860 = vsel %vm796, %v764, %v828
      %v861 = vsel %vm797, %v765, %v829
      %v862 = vpack.c.bf16 %v832, %v830
      %v863 = vpack.c.bf16 %v833, %v831
      %v864 = vpack.c.bf16 %v836, %v834
      %v865 = vpack.c.bf16 %v837, %v835
      %v866 = vpack.c.bf16 %v840, %v838
      %v867 = vpack.c.bf16 %v841, %v839
      %v868 = vpack.c.bf16 %v844, %v842
      %v869 = vpack.c.bf16 %v845, %v843
      %v870 = vpack.c.bf16 %v848, %v846
      %v871 = vpack.c.bf16 %v849, %v847
      %v872 = vpack.c.bf16 %v852, %v850
      %v873 = vpack.c.bf16 %v853, %v851
      %v874 = vpack.c.bf16 %v856, %v854
      %v875 = vpack.c.bf16 %v857, %v855
      %v876 = vpack.c.bf16 %v860, %v858
      %v877 = vpack.c.bf16 %v861, %v859
      %v878 = vld [vmem:[%s7] sm:$0xff]
      %v879 = vld [vmem:[%s7 + $0x8] sm:$0xff]
      %v880 = vld [vmem:[%s7 + $0x10] sm:$0xff]
      %v881 = vld [vmem:[%s7 + $0x18] sm:$0xff]
      %v882 = vld [vmem:[%s7 + $0x20] sm:$0xff]
      %v883 = vld [vmem:[%s7 + $0x28] sm:$0xff]
      %v884 = vld [vmem:[%s7 + $0x30] sm:$0xff]
      %v885 = vld [vmem:[%s7 + $0x38] sm:$0xff]
      %v886 = vld [vmem:[%s7 + $0x40] sm:$0xff]
      %v887 = vld [vmem:[%s7 + $0x48] sm:$0xff]
      %v888 = vld [vmem:[%s7 + $0x50] sm:$0xff]
      %v889 = vld [vmem:[%s7 + $0x58] sm:$0xff]
      %v890 = vld [vmem:[%s7 + $0x60] sm:$0xff]
      %v891 = vld [vmem:[%s7 + $0x68] sm:$0xff]
      %v892 = vld [vmem:[%s7 + $0x70] sm:$0xff]
      %v893 = vld [vmem:[%s7 + $0x78] sm:$0xff]
      %v894 = vld [vmem:[%s7 + $0x80] sm:$0xff]
      %v895 = vld [vmem:[%s7 + $0x88] sm:$0xff]
      %v896 = vld [vmem:[%s7 + $0x90] sm:$0xff]
      %v897 = vld [vmem:[%s7 + $0x98] sm:$0xff]
      %v898 = vld [vmem:[%s7 + $0xa0] sm:$0xff]
      %v899 = vld [vmem:[%s7 + $0xa8] sm:$0xff]
      %v900 = vld [vmem:[%s7 + $0xb0] sm:$0xff]
      %v901 = vld [vmem:[%s7 + $0xb8] sm:$0xff]
      %v902 = vld [vmem:[%s7 + $0xc0] sm:$0xff]
      %v903 = vld [vmem:[%s7 + $0xc8] sm:$0xff]
      %v904 = vld [vmem:[%s7 + $0xd0] sm:$0xff]
      %v905 = vld [vmem:[%s7 + $0xd8] sm:$0xff]
      %v906 = vld [vmem:[%s7 + $0xe0] sm:$0xff]
      %v907 = vld [vmem:[%s7 + $0xe8] sm:$0xff]
      %v908 = vld [vmem:[%s7 + $0xf0] sm:$0xff]
      %v909 = vld [vmem:[%s7 + $0xf8] sm:$0xff]
      %v910 = vpack.c.bf16 %v879, %v878
      %v911 = vpack.c.bf16 %v881, %v880
      %v912 = vpack.c.bf16 %v883, %v882
      %v913 = vpack.c.bf16 %v885, %v884
      %v914 = vpack.c.bf16 %v887, %v886
      %v915 = vpack.c.bf16 %v889, %v888
      %v916 = vpack.c.bf16 %v891, %v890
      %v917 = vpack.c.bf16 %v893, %v892
      %v918 = vpack.c.bf16 %v895, %v894
      %v919 = vpack.c.bf16 %v897, %v896
      %v920 = vpack.c.bf16 %v899, %v898
      %v921 = vpack.c.bf16 %v901, %v900
      %v922 = vpack.c.bf16 %v903, %v902
      %v923 = vpack.c.bf16 %v905, %v904
      %v924 = vpack.c.bf16 %v907, %v906
      %v925 = vpack.c.bf16 %v909, %v908
      %v926 = vld [vmem:[%s421] sm:$0xff]
      %v927 = vld [vmem:[%s421 + $0x8] sm:$0xff]
      %v928 = vld [vmem:[%s421 + $0x10] sm:$0xff]
      %v929 = vld [vmem:[%s421 + $0x18] sm:$0xff]
      %v930 = vld [vmem:[%s421 + $0x20] sm:$0xff]
      %v931 = vld [vmem:[%s421 + $0x28] sm:$0xff]
      %v932 = vld [vmem:[%s421 + $0x30] sm:$0xff]
      %v933 = vld [vmem:[%s421 + $0x38] sm:$0xff]
      %v934 = vld [vmem:[%s421 + $0x40] sm:$0xff]
      %v935 = vld [vmem:[%s421 + $0x48] sm:$0xff]
      %v936 = vld [vmem:[%s421 + $0x50] sm:$0xff]
      %v937 = vld [vmem:[%s421 + $0x58] sm:$0xff]
      %v938 = vld [vmem:[%s421 + $0x60] sm:$0xff]
      %v939 = vld [vmem:[%s421 + $0x68] sm:$0xff]
      %v940 = vld [vmem:[%s421 + $0x70] sm:$0xff]
      %v941 = vld [vmem:[%s421 + $0x78] sm:$0xff]
      %942 = vmatpush.bf16.msra.mxu0 %v917
      %943 = vmatpush.bf16.msra.mxu0 %v916
      %944 = vmatpush.bf16.msra.mxu0 %v915
      %945 = vmatpush.bf16.msra.mxu0 %v914
      %946 = vmatpush.bf16.msra.mxu0 %v913
      %947 = vmatpush.bf16.msra.mxu0 %v912
      %948 = vmatpush.bf16.msra.mxu0 %v911
      %949 = vmatpush.bf16.msra.mxu0 %v910
      %950 = vmatmul.bf16.gmra.mxu0 %v862
      %v951 = vpop.f32.mrf.mxu0
      %v952 = vadd.f32 %v926, %v951
      %v953 = vpop.f32.mrf.mxu0
      %v954 = vadd.f32 %v927, %v953
      %955 = vmatmul.bf16.gmra.mxu0 %v864
      %v956 = vpop.f32.mrf.mxu0
      %v957 = vadd.f32 %v928, %v956
      %v958 = vpop.f32.mrf.mxu0
      %v959 = vadd.f32 %v929, %v958
      %960 = vmatmul.bf16.gmra.mxu0 %v866
      %v961 = vpop.f32.mrf.mxu0
      %v962 = vadd.f32 %v930, %v961
      %v963 = vpop.f32.mrf.mxu0
      %v964 = vadd.f32 %v931, %v963
      %965 = vmatmul.bf16.gmra.mxu0 %v868
      %v966 = vpop.f32.mrf.mxu0
      %v967 = vadd.f32 %v932, %v966
      %v968 = vpop.f32.mrf.mxu0
      %v969 = vadd.f32 %v933, %v968
      %970 = vmatmul.bf16.gmra.mxu0 %v870
      %v971 = vpop.f32.mrf.mxu0
      %v972 = vadd.f32 %v934, %v971
      %v973 = vpop.f32.mrf.mxu0
      %v974 = vadd.f32 %v935, %v973
      %975 = vmatmul.bf16.gmra.mxu0 %v872
      %v976 = vpop.f32.mrf.mxu0
      %v977 = vadd.f32 %v936, %v976
      %v978 = vpop.f32.mrf.mxu0
      %v979 = vadd.f32 %v937, %v978
      %980 = vmatmul.bf16.gmra.mxu0 %v874
      %v981 = vpop.f32.mrf.mxu0
      %v982 = vadd.f32 %v938, %v981
      %v983 = vpop.f32.mrf.mxu0
      %v984 = vadd.f32 %v939, %v983
      %985 = vmatmul.bf16.gmra.mxu0 %v876
      %v986 = vpop.f32.mrf.mxu0
      %v987 = vadd.f32 %v940, %v986
      %v988 = vpop.f32.mrf.mxu0
      %v989 = vadd.f32 %v941, %v988
      %990 = vdwg.mxu0
      %991 = vmatpush.bf16.msra.mxu0 %v925
      %992 = vmatpush.bf16.msra.mxu0 %v924
      %993 = vmatpush.bf16.msra.mxu0 %v923
      %994 = vmatpush.bf16.msra.mxu0 %v922
      %995 = vmatpush.bf16.msra.mxu0 %v921
      %996 = vmatpush.bf16.msra.mxu0 %v920
      %997 = vmatpush.bf16.msra.mxu0 %v919
      %998 = vmatpush.bf16.msra.mxu0 %v918
      %999 = vmatmul.bf16.gmra.mxu0 %v863
      %v1000 = vpop.f32.mrf.mxu0
      %v1001 = vadd.f32 %v952, %v1000
      %v1002 = vpop.f32.mrf.mxu0
      %v1003 = vadd.f32 %v954, %v1002
      %1004 = vmatmul.bf16.gmra.mxu0 %v865
      %v1005 = vpop.f32.mrf.mxu0
      %v1006 = vadd.f32 %v957, %v1005
      %v1007 = vpop.f32.mrf.mxu0
      %v1008 = vadd.f32 %v959, %v1007
      %1009 = vmatmul.bf16.gmra.mxu0 %v867
      %v1010 = vpop.f32.mrf.mxu0
      %v1011 = vadd.f32 %v962, %v1010
      %v1012 = vpop.f32.mrf.mxu0
      %v1013 = vadd.f32 %v964, %v1012
      %1014 = vmatmul.bf16.gmra.mxu0 %v869
      %v1015 = vpop.f32.mrf.mxu0
      %v1016 = vadd.f32 %v967, %v1015
      %v1017 = vpop.f32.mrf.mxu0
      %v1018 = vadd.f32 %v969, %v1017
      %1019 = vmatmul.bf16.gmra.mxu0 %v871
      %v1020 = vpop.f32.mrf.mxu0
      %v1021 = vadd.f32 %v972, %v1020
      %v1022 = vpop.f32.mrf.mxu0
      %v1023 = vadd.f32 %v974, %v1022
      %1024 = vmatmul.bf16.gmra.mxu0 %v873
      %v1025 = vpop.f32.mrf.mxu0
      %v1026 = vadd.f32 %v977, %v1025
      %v1027 = vpop.f32.mrf.mxu0
      %v1028 = vadd.f32 %v979, %v1027
      %1029 = vmatmul.bf16.gmra.mxu0 %v875
      %v1030 = vpop.f32.mrf.mxu0
      %v1031 = vadd.f32 %v982, %v1030
      %v1032 = vpop.f32.mrf.mxu0
      %v1033 = vadd.f32 %v984, %v1032
      %1034 = vmatmul.bf16.gmra.mxu0 %v877
      %v1035 = vpop.f32.mrf.mxu0
      %v1036 = vadd.f32 %v987, %v1035
      %v1037 = vpop.f32.mrf.mxu0
      %v1038 = vadd.f32 %v989, %v1037
      %1039 = vdwg.mxu0
      %vm1040 = vcmask 130048
      %v1041 = vsel %vm1040, %v1001, -inf
      %1042 = vmax.xlane.f32.xlu0 %v1041
      %v1043 = vpop.xlane.xlu0 %1042
      %v1044 = vsel %vm1040, %v1003, -inf
      %1045 = vmax.xlane.f32.xlu0 %v1044
      %v1046 = vpop.xlane.xlu0 %1045
      %v1047 = vsel %vm1040, %v1006, -inf
      %1048 = vmax.xlane.f32.xlu0 %v1047
      %v1049 = vpop.xlane.xlu0 %1048
      %v1050 = vsel %vm1040, %v1008, -inf
      %1051 = vmax.xlane.f32.xlu0 %v1050
      %v1052 = vpop.xlane.xlu0 %1051
      %v1053 = vsel %vm1040, %v1011, -inf
      %1054 = vmax.xlane.f32.xlu0 %v1053
      %v1055 = vpop.xlane.xlu0 %1054
      %v1056 = vsel %vm1040, %v1013, -inf
      %1057 = vmax.xlane.f32.xlu0 %v1056
      %v1058 = vpop.xlane.xlu0 %1057
      %v1059 = vsel %vm1040, %v1016, -inf
      %1060 = vmax.xlane.f32.xlu0 %v1059
      %v1061 = vpop.xlane.xlu0 %1060
      %v1062 = vsel %vm1040, %v1018, -inf
      %1063 = vmax.xlane.f32.xlu0 %v1062
      %v1064 = vpop.xlane.xlu0 %1063
      %v1065 = vsel %vm1040, %v1021, -inf
      %1066 = vmax.xlane.f32.xlu0 %v1065
      %v1067 = vpop.xlane.xlu0 %1066
      %v1068 = vsel %vm1040, %v1023, -inf
      %1069 = vmax.xlane.f32.xlu0 %v1068
      %v1070 = vpop.xlane.xlu0 %1069
      %v1071 = vsel %vm1040, %v1026, -inf
      %1072 = vmax.xlane.f32.xlu0 %v1071
      %v1073 = vpop.xlane.xlu0 %1072
      %v1074 = vsel %vm1040, %v1028, -inf
      %1075 = vmax.xlane.f32.xlu0 %v1074
      %v1076 = vpop.xlane.xlu0 %1075
      %v1077 = vsel %vm1040, %v1031, -inf
      %1078 = vmax.xlane.f32.xlu0 %v1077
      %v1079 = vpop.xlane.xlu0 %1078
      %v1080 = vsel %vm1040, %v1033, -inf
      %1081 = vmax.xlane.f32.xlu0 %v1080
      %v1082 = vpop.xlane.xlu0 %1081
      %v1083 = vsel %vm1040, %v1036, -inf
      %1084 = vmax.xlane.f32.xlu0 %v1083
      %v1085 = vpop.xlane.xlu0 %1084
      %v1086 = vsel %vm1040, %v1038, -inf
      %1087 = vmax.xlane.f32.xlu0 %v1086
      %v1088 = vpop.xlane.xlu0 %1087
      %v1089 = vsub.f32 %v1001, %v1043
      %v1090 = vsub.f32 %v1003, %v1046
      %v1091 = vsub.f32 %v1006, %v1049
      %v1092 = vsub.f32 %v1008, %v1052
      %v1093 = vsub.f32 %v1011, %v1055
      %v1094 = vsub.f32 %v1013, %v1058
      %v1095 = vsub.f32 %v1016, %v1061
      %v1096 = vsub.f32 %v1018, %v1064
      %v1097 = vsub.f32 %v1021, %v1067
      %v1098 = vsub.f32 %v1023, %v1070
      %v1099 = vsub.f32 %v1026, %v1073
      %v1100 = vsub.f32 %v1028, %v1076
      %v1101 = vsub.f32 %v1031, %v1079
      %v1102 = vsub.f32 %v1033, %v1082
      %v1103 = vsub.f32 %v1036, %v1085
      %v1104 = vsub.f32 %v1038, %v1088
      %vm1105 = vcmask 261248
      %v1106 = vsel %vm1105, %v1001, -inf
      %1107 = vmax.xlane.f32.xlu0 %v1106
      %v1108 = vpop.xlane.xlu0 %1107
      %v1109 = vsel %vm1105, %v1003, -inf
      %1110 = vmax.xlane.f32.xlu0 %v1109
      %v1111 = vpop.xlane.xlu0 %1110
      %v1112 = vsel %vm1105, %v1006, -inf
      %1113 = vmax.xlane.f32.xlu0 %v1112
      %v1114 = vpop.xlane.xlu0 %1113
      %v1115 = vsel %vm1105, %v1008, -inf
      %1116 = vmax.xlane.f32.xlu0 %v1115
      %v1117 = vpop.xlane.xlu0 %1116
      %v1118 = vsel %vm1105, %v1011, -inf
      %1119 = vmax.xlane.f32.xlu0 %v1118
      %v1120 = vpop.xlane.xlu0 %1119
      %v1121 = vsel %vm1105, %v1013, -inf
      %1122 = vmax.xlane.f32.xlu0 %v1121
      %v1123 = vpop.xlane.xlu0 %1122
      %v1124 = vsel %vm1105, %v1016, -inf
      %1125 = vmax.xlane.f32.xlu0 %v1124
      %v1126 = vpop.xlane.xlu0 %1125
      %v1127 = vsel %vm1105, %v1018, -inf
      %1128 = vmax.xlane.f32.xlu0 %v1127
      %v1129 = vpop.xlane.xlu0 %1128
      %v1130 = vsel %vm1105, %v1021, -inf
      %1131 = vmax.xlane.f32.xlu0 %v1130
      %v1132 = vpop.xlane.xlu0 %1131
      %v1133 = vsel %vm1105, %v1023, -inf
      %1134 = vmax.xlane.f32.xlu0 %v1133
      %v1135 = vpop.xlane.xlu0 %1134
      %v1136 = vsel %vm1105, %v1026, -inf
      %1137 = vmax.xlane.f32.xlu0 %v1136
      %v1138 = vpop.xlane.xlu0 %1137
      %v1139 = vsel %vm1105, %v1028, -inf
      %1140 = vmax.xlane.f32.xlu0 %v1139
      %v1141 = vpop.xlane.xlu0 %1140
      %v1142 = vsel %vm1105, %v1031, -inf
      %1143 = vmax.xlane.f32.xlu0 %v1142
      %v1144 = vpop.xlane.xlu0 %1143
      %v1145 = vsel %vm1105, %v1033, -inf
      %1146 = vmax.xlane.f32.xlu0 %v1145
      %v1147 = vpop.xlane.xlu0 %1146
      %v1148 = vsel %vm1105, %v1036, -inf
      %1149 = vmax.xlane.f32.xlu0 %v1148
      %v1150 = vpop.xlane.xlu0 %1149
      %v1151 = vsel %vm1105, %v1038, -inf
      %1152 = vmax.xlane.f32.xlu0 %v1151
      %v1153 = vpop.xlane.xlu0 %1152
      %v1154 = vsub.f32 %v1001, %v1108
      %v1155 = vsub.f32 %v1003, %v1111
      %v1156 = vsub.f32 %v1006, %v1114
      %v1157 = vsub.f32 %v1008, %v1117
      %v1158 = vsub.f32 %v1011, %v1120
      %v1159 = vsub.f32 %v1013, %v1123
      %v1160 = vsub.f32 %v1016, %v1126
      %v1161 = vsub.f32 %v1018, %v1129
      %v1162 = vsub.f32 %v1021, %v1132
      %v1163 = vsub.f32 %v1023, %v1135
      %v1164 = vsub.f32 %v1026, %v1138
      %v1165 = vsub.f32 %v1028, %v1141
      %v1166 = vsub.f32 %v1031, %v1144
      %v1167 = vsub.f32 %v1033, %v1147
      %v1168 = vsub.f32 %v1036, %v1150
      %v1169 = vsub.f32 %v1038, %v1153
      %v1170 = vsel %vm1040, %v1089, %v1154
      %v1171 = vsel %vm1040, %v1090, %v1155
      %v1172 = vsel %vm1040, %v1091, %v1156
      %v1173 = vsel %vm1040, %v1092, %v1157
      %v1174 = vsel %vm1040, %v1093, %v1158
      %v1175 = vsel %vm1040, %v1094, %v1159
      %v1176 = vsel %vm1040, %v1095, %v1160
      %v1177 = vsel %vm1040, %v1096, %v1161
      %v1178 = vsel %vm1040, %v1097, %v1162
      %v1179 = vsel %vm1040, %v1098, %v1163
      %v1180 = vsel %vm1040, %v1099, %v1164
      %v1181 = vsel %vm1040, %v1100, %v1165
      %v1182 = vsel %vm1040, %v1101, %v1166
      %v1183 = vsel %vm1040, %v1102, %v1167
      %v1184 = vsel %vm1040, %v1103, %v1168
      %v1185 = vsel %vm1040, %v1104, %v1169
      %v1186 = vmul.f32 %v1170, 1.442695
      %v1187 = vpow.pop %v1186
      %v1188 = vmul.f32 %v1171, 1.442695
      %v1189 = vpow.pop %v1188
      %v1190 = vmul.f32 %v1172, 1.442695
      %v1191 = vpow.pop %v1190
      %v1192 = vmul.f32 %v1173, 1.442695
      %v1193 = vpow.pop %v1192
      %v1194 = vmul.f32 %v1174, 1.442695
      %v1195 = vpow.pop %v1194
      %v1196 = vmul.f32 %v1175, 1.442695
      %v1197 = vpow.pop %v1196
      %v1198 = vmul.f32 %v1176, 1.442695
      %v1199 = vpow.pop %v1198
      %v1200 = vmul.f32 %v1177, 1.442695
      %v1201 = vpow.pop %v1200
      %v1202 = vmul.f32 %v1178, 1.442695
      %v1203 = vpow.pop %v1202
      %v1204 = vmul.f32 %v1179, 1.442695
      %v1205 = vpow.pop %v1204
      %v1206 = vmul.f32 %v1180, 1.442695
      %v1207 = vpow.pop %v1206
      %v1208 = vmul.f32 %v1181, 1.442695
      %v1209 = vpow.pop %v1208
      %v1210 = vmul.f32 %v1182, 1.442695
      %v1211 = vpow.pop %v1210
      %v1212 = vmul.f32 %v1183, 1.442695
      %v1213 = vpow.pop %v1212
      %v1214 = vmul.f32 %v1184, 1.442695
      %v1215 = vpow.pop %v1214
      %v1216 = vmul.f32 %v1185, 1.442695
      %v1217 = vpow.pop %v1216
      %v1218 = vsel %vm1040, %v1187, 0.0
      %1219 = vadd.xlane.f32.xlu0 %v1218
      %v1220 = vpop.xlane.xlu0 %1219
      %v1221 = vsel %vm1040, %v1189, 0.0
      %1222 = vadd.xlane.f32.xlu0 %v1221
      %v1223 = vpop.xlane.xlu0 %1222
      %v1224 = vsel %vm1040, %v1191, 0.0
      %1225 = vadd.xlane.f32.xlu0 %v1224
      %v1226 = vpop.xlane.xlu0 %1225
      %v1227 = vsel %vm1040, %v1193, 0.0
      %1228 = vadd.xlane.f32.xlu0 %v1227
      %v1229 = vpop.xlane.xlu0 %1228
      %v1230 = vsel %vm1040, %v1195, 0.0
      %1231 = vadd.xlane.f32.xlu0 %v1230
      %v1232 = vpop.xlane.xlu0 %1231
      %v1233 = vsel %vm1040, %v1197, 0.0
      %1234 = vadd.xlane.f32.xlu0 %v1233
      %v1235 = vpop.xlane.xlu0 %1234
      %v1236 = vsel %vm1040, %v1199, 0.0
      %1237 = vadd.xlane.f32.xlu0 %v1236
      %v1238 = vpop.xlane.xlu0 %1237
      %v1239 = vsel %vm1040, %v1201, 0.0
      %1240 = vadd.xlane.f32.xlu0 %v1239
      %v1241 = vpop.xlane.xlu0 %1240
      %v1242 = vsel %vm1040, %v1203, 0.0
      %1243 = vadd.xlane.f32.xlu0 %v1242
      %v1244 = vpop.xlane.xlu0 %1243
      %v1245 = vsel %vm1040, %v1205, 0.0
      %1246 = vadd.xlane.f32.xlu0 %v1245
      %v1247 = vpop.xlane.xlu0 %1246
      %v1248 = vsel %vm1040, %v1207, 0.0
      %1249 = vadd.xlane.f32.xlu0 %v1248
      %v1250 = vpop.xlane.xlu0 %1249
      %v1251 = vsel %vm1040, %v1209, 0.0
      %1252 = vadd.xlane.f32.xlu0 %v1251
      %v1253 = vpop.xlane.xlu0 %1252
      %v1254 = vsel %vm1040, %v1211, 0.0
      %1255 = vadd.xlane.f32.xlu0 %v1254
      %v1256 = vpop.xlane.xlu0 %1255
      %v1257 = vsel %vm1040, %v1213, 0.0
      %1258 = vadd.xlane.f32.xlu0 %v1257
      %v1259 = vpop.xlane.xlu0 %1258
      %v1260 = vsel %vm1040, %v1215, 0.0
      %1261 = vadd.xlane.f32.xlu0 %v1260
      %v1262 = vpop.xlane.xlu0 %1261
      %v1263 = vsel %vm1040, %v1217, 0.0
      %1264 = vadd.xlane.f32.xlu0 %v1263
      %v1265 = vpop.xlane.xlu0 %1264
      %v1266 = vrcp.pop %v1220
      %v1267 = vrcp.pop %v1223
      %v1268 = vrcp.pop %v1226
      %v1269 = vrcp.pop %v1229
      %v1270 = vrcp.pop %v1232
      %v1271 = vrcp.pop %v1235
      %v1272 = vrcp.pop %v1238
      %v1273 = vrcp.pop %v1241
      %v1274 = vrcp.pop %v1244
      %v1275 = vrcp.pop %v1247
      %v1276 = vrcp.pop %v1250
      %v1277 = vrcp.pop %v1253
      %v1278 = vrcp.pop %v1256
      %v1279 = vrcp.pop %v1259
      %v1280 = vrcp.pop %v1262
      %v1281 = vrcp.pop %v1265
      %v1282 = vmul.f32 %v1187, %v1266
      %v1283 = vmul.f32 %v1189, %v1267
      %v1284 = vmul.f32 %v1191, %v1268
      %v1285 = vmul.f32 %v1193, %v1269
      %v1286 = vmul.f32 %v1195, %v1270
      %v1287 = vmul.f32 %v1197, %v1271
      %v1288 = vmul.f32 %v1199, %v1272
      %v1289 = vmul.f32 %v1201, %v1273
      %v1290 = vmul.f32 %v1203, %v1274
      %v1291 = vmul.f32 %v1205, %v1275
      %v1292 = vmul.f32 %v1207, %v1276
      %v1293 = vmul.f32 %v1209, %v1277
      %v1294 = vmul.f32 %v1211, %v1278
      %v1295 = vmul.f32 %v1213, %v1279
      %v1296 = vmul.f32 %v1215, %v1280
      %v1297 = vmul.f32 %v1217, %v1281
      %1314 = vrot.lane.b32.xlu0 %v1187, 112
      %v1315 = vpop.permute.xlu0 %1314
      %1316 = vrot.lane.b32.xlu0 %v1189, 112
      %v1317 = vpop.permute.xlu0 %1316
      %1318 = vrot.lane.b32.xlu0 %v1191, 112
      %v1319 = vpop.permute.xlu0 %1318
      %1320 = vrot.lane.b32.xlu0 %v1193, 112
      %v1321 = vpop.permute.xlu0 %1320
      %1322 = vrot.lane.b32.xlu0 %v1195, 112
      %v1323 = vpop.permute.xlu0 %1322
      %1324 = vrot.lane.b32.xlu0 %v1197, 112
      %v1325 = vpop.permute.xlu0 %1324
      %1326 = vrot.lane.b32.xlu0 %v1199, 112
      %v1327 = vpop.permute.xlu0 %1326
      %1328 = vrot.lane.b32.xlu0 %v1201, 112
      %v1329 = vpop.permute.xlu0 %1328
      %1330 = vrot.lane.b32.xlu0 %v1203, 112
      %v1331 = vpop.permute.xlu0 %1330
      %1332 = vrot.lane.b32.xlu0 %v1205, 112
      %v1333 = vpop.permute.xlu0 %1332
      %1334 = vrot.lane.b32.xlu0 %v1207, 112
      %v1335 = vpop.permute.xlu0 %1334
      %1336 = vrot.lane.b32.xlu0 %v1209, 112
      %v1337 = vpop.permute.xlu0 %1336
      %1338 = vrot.lane.b32.xlu0 %v1211, 112
      %v1339 = vpop.permute.xlu0 %1338
      %1340 = vrot.lane.b32.xlu0 %v1213, 112
      %v1341 = vpop.permute.xlu0 %1340
      %1342 = vrot.lane.b32.xlu0 %v1215, 112
      %v1343 = vpop.permute.xlu0 %1342
      %1344 = vrot.lane.b32.xlu0 %v1217, 112
      %v1345 = vpop.permute.xlu0 %1344
      %v1362 = vsel %vm1040, %v1315, 0.0
      %1363 = vadd.xlane.f32.xlu0 %v1362
      %v1364 = vpop.xlane.xlu0 %1363
      %v1365 = vsel %vm1040, %v1317, 0.0
      %1366 = vadd.xlane.f32.xlu0 %v1365
      %v1367 = vpop.xlane.xlu0 %1366
      %v1368 = vsel %vm1040, %v1319, 0.0
      %1369 = vadd.xlane.f32.xlu0 %v1368
      %v1370 = vpop.xlane.xlu0 %1369
      %v1371 = vsel %vm1040, %v1321, 0.0
      %1372 = vadd.xlane.f32.xlu0 %v1371
      %v1373 = vpop.xlane.xlu0 %1372
      %v1374 = vsel %vm1040, %v1323, 0.0
      %1375 = vadd.xlane.f32.xlu0 %v1374
      %v1376 = vpop.xlane.xlu0 %1375
      %v1377 = vsel %vm1040, %v1325, 0.0
      %1378 = vadd.xlane.f32.xlu0 %v1377
      %v1379 = vpop.xlane.xlu0 %1378
      %v1380 = vsel %vm1040, %v1327, 0.0
      %1381 = vadd.xlane.f32.xlu0 %v1380
      %v1382 = vpop.xlane.xlu0 %1381
      %v1383 = vsel %vm1040, %v1329, 0.0
      %1384 = vadd.xlane.f32.xlu0 %v1383
      %v1385 = vpop.xlane.xlu0 %1384
      %v1386 = vsel %vm1040, %v1331, 0.0
      %1387 = vadd.xlane.f32.xlu0 %v1386
      %v1388 = vpop.xlane.xlu0 %1387
      %v1389 = vsel %vm1040, %v1333, 0.0
      %1390 = vadd.xlane.f32.xlu0 %v1389
      %v1391 = vpop.xlane.xlu0 %1390
      %v1392 = vsel %vm1040, %v1335, 0.0
      %1393 = vadd.xlane.f32.xlu0 %v1392
      %v1394 = vpop.xlane.xlu0 %1393
      %v1395 = vsel %vm1040, %v1337, 0.0
      %1396 = vadd.xlane.f32.xlu0 %v1395
      %v1397 = vpop.xlane.xlu0 %1396
      %v1398 = vsel %vm1040, %v1339, 0.0
      %1399 = vadd.xlane.f32.xlu0 %v1398
      %v1400 = vpop.xlane.xlu0 %1399
      %v1401 = vsel %vm1040, %v1341, 0.0
      %1402 = vadd.xlane.f32.xlu0 %v1401
      %v1403 = vpop.xlane.xlu0 %1402
      %v1404 = vsel %vm1040, %v1343, 0.0
      %1405 = vadd.xlane.f32.xlu0 %v1404
      %v1406 = vpop.xlane.xlu0 %1405
      %v1407 = vsel %vm1040, %v1345, 0.0
      %1408 = vadd.xlane.f32.xlu0 %v1407
      %v1409 = vpop.xlane.xlu0 %1408
      %v1410 = vrcp.pop %v1364
      %v1411 = vrcp.pop %v1367
      %v1412 = vrcp.pop %v1370
      %v1413 = vrcp.pop %v1373
      %v1414 = vrcp.pop %v1376
      %v1415 = vrcp.pop %v1379
      %v1416 = vrcp.pop %v1382
      %v1417 = vrcp.pop %v1385
      %v1418 = vrcp.pop %v1388
      %v1419 = vrcp.pop %v1391
      %v1420 = vrcp.pop %v1394
      %v1421 = vrcp.pop %v1397
      %v1422 = vrcp.pop %v1400
      %v1423 = vrcp.pop %v1403
      %v1424 = vrcp.pop %v1406
      %v1425 = vrcp.pop %v1409
      %v1426 = vmul.f32 %v1187, %v1410
      %v1427 = vmul.f32 %v1189, %v1411
      %v1428 = vmul.f32 %v1191, %v1412
      %v1429 = vmul.f32 %v1193, %v1413
      %v1430 = vmul.f32 %v1195, %v1414
      %v1431 = vmul.f32 %v1197, %v1415
      %v1432 = vmul.f32 %v1199, %v1416
      %v1433 = vmul.f32 %v1201, %v1417
      %v1434 = vmul.f32 %v1203, %v1418
      %v1435 = vmul.f32 %v1205, %v1419
      %v1436 = vmul.f32 %v1207, %v1420
      %v1437 = vmul.f32 %v1209, %v1421
      %v1438 = vmul.f32 %v1211, %v1422
      %v1439 = vmul.f32 %v1213, %v1423
      %v1440 = vmul.f32 %v1215, %v1424
      %v1441 = vmul.f32 %v1217, %v1425
      %v1442 = vsel %vm1040, %v1282, %v1426
      %v1443 = vsel %vm1040, %v1283, %v1427
      %v1444 = vsel %vm1040, %v1284, %v1428
      %v1445 = vsel %vm1040, %v1285, %v1429
      %v1446 = vsel %vm1040, %v1286, %v1430
      %v1447 = vsel %vm1040, %v1287, %v1431
      %v1448 = vsel %vm1040, %v1288, %v1432
      %v1449 = vsel %vm1040, %v1289, %v1433
      %v1450 = vsel %vm1040, %v1290, %v1434
      %v1451 = vsel %vm1040, %v1291, %v1435
      %v1452 = vsel %vm1040, %v1292, %v1436
      %v1453 = vsel %vm1040, %v1293, %v1437
      %v1454 = vsel %vm1040, %v1294, %v1438
      %v1455 = vsel %vm1040, %v1295, %v1439
      %v1456 = vsel %vm1040, %v1296, %v1440
      %v1457 = vsel %vm1040, %v1297, %v1441
      %v1458 = vpack.c.bf16 %v1443, %v1442
      %v1459 = vpack.c.bf16 %v1445, %v1444
      %v1460 = vpack.c.bf16 %v1447, %v1446
      %v1461 = vpack.c.bf16 %v1449, %v1448
      %v1462 = vpack.c.bf16 %v1451, %v1450
      %v1463 = vpack.c.bf16 %v1453, %v1452
      %v1464 = vpack.c.bf16 %v1455, %v1454
      %v1465 = vpack.c.bf16 %v1457, %v1456
      %v1466 = vld [vmem:[%s8] sm:$0xff]
      %v1467 = vld [vmem:[%s8 + $0x8] sm:$0xff]
      %v1468 = vld [vmem:[%s8 + $0x10] sm:$0xff]
      %v1469 = vld [vmem:[%s8 + $0x18] sm:$0xff]
      %v1470 = vld [vmem:[%s8 + $0x20] sm:$0xff]
      %v1471 = vld [vmem:[%s8 + $0x28] sm:$0xff]
      %v1472 = vld [vmem:[%s8 + $0x30] sm:$0xff]
      %v1473 = vld [vmem:[%s8 + $0x38] sm:$0xff]
      %v1474 = vpack.c.bf16 %v1468, %v1466
      %v1475 = vpack.c.bf16 %v1469, %v1467
      %v1476 = vpack.c.bf16 %v1472, %v1470
      %v1477 = vpack.c.bf16 %v1473, %v1471
      %vm1478 = vcmask 261120
      %v1480 = vsel %vm1478, %v1458, 0
      %v1483 = vsel %vm1478, %v1459, 0
      %v1486 = vsel %vm1478, %v1460, 0
      %v1489 = vsel %vm1478, %v1461, 0
      %v1492 = vsel %vm1478, %v1462, 0
      %v1495 = vsel %vm1478, %v1463, 0
      %v1498 = vsel %vm1478, %v1464, 0
      %v1501 = vsel %vm1478, %v1465, 0
      %1503 = vmatpush.bf16.msra.mxu0 0
      %1504 = vmatpush.bf16.msra.mxu0 0
      %1505 = vmatpush.bf16.msra.mxu0 0
      %1506 = vmatpush.bf16.msra.mxu0 0
      %1507 = vmatpush.bf16.msra.mxu0 0
      %1508 = vmatpush.bf16.msra.mxu0 0
      %1509 = vmatpush.bf16.msra.mxu0 %v1476
      %1510 = vmatpush.bf16.msra.mxu0 %v1474
      %1511 = vmatmul.bf16.gmra.mxu0 %v1480
      %v1512 = vpop.f32.mrf.mxu0
      %v1513 = vadd.f32 0.0, %v1512
      %v1514 = vpop.f32.mrf.mxu0
      %v1515 = vadd.f32 0.0, %v1514
      %1516 = vmatmul.bf16.gmra.mxu0 %v1483
      %v1517 = vpop.f32.mrf.mxu0
      %v1518 = vadd.f32 0.0, %v1517
      %v1519 = vpop.f32.mrf.mxu0
      %v1520 = vadd.f32 0.0, %v1519
      %1521 = vmatmul.bf16.gmra.mxu0 %v1486
      %v1522 = vpop.f32.mrf.mxu0
      %v1523 = vadd.f32 0.0, %v1522
      %v1524 = vpop.f32.mrf.mxu0
      %v1525 = vadd.f32 0.0, %v1524
      %1526 = vmatmul.bf16.gmra.mxu0 %v1489
      %v1527 = vpop.f32.mrf.mxu0
      %v1528 = vadd.f32 0.0, %v1527
      %v1529 = vpop.f32.mrf.mxu0
      %v1530 = vadd.f32 0.0, %v1529
      %1531 = vmatmul.bf16.gmra.mxu0 %v1492
      %v1532 = vpop.f32.mrf.mxu0
      %v1533 = vadd.f32 0.0, %v1532
      %v1534 = vpop.f32.mrf.mxu0
      %v1535 = vadd.f32 0.0, %v1534
      %1536 = vmatmul.bf16.gmra.mxu0 %v1495
      %v1537 = vpop.f32.mrf.mxu0
      %v1538 = vadd.f32 0.0, %v1537
      %v1539 = vpop.f32.mrf.mxu0
      %v1540 = vadd.f32 0.0, %v1539
      %1541 = vmatmul.bf16.gmra.mxu0 %v1498
      %v1542 = vpop.f32.mrf.mxu0
      %v1543 = vadd.f32 0.0, %v1542
      %v1544 = vpop.f32.mrf.mxu0
      %v1545 = vadd.f32 0.0, %v1544
      %1546 = vmatmul.bf16.gmra.mxu0 %v1501
      %v1547 = vpop.f32.mrf.mxu0
      %v1548 = vadd.f32 0.0, %v1547
      %v1549 = vpop.f32.mrf.mxu0
      %v1550 = vadd.f32 0.0, %v1549
      %1551 = vdwg.mxu0
      %1552 = vmatpush.bf16.msra.mxu0 0
      %1553 = vmatpush.bf16.msra.mxu0 0
      %1554 = vmatpush.bf16.msra.mxu0 0
      %1555 = vmatpush.bf16.msra.mxu0 0
      %1556 = vmatpush.bf16.msra.mxu0 0
      %1557 = vmatpush.bf16.msra.mxu0 0
      %1558 = vmatpush.bf16.msra.mxu0 %v1477
      %1559 = vmatpush.bf16.msra.mxu0 %v1475
      %1560 = vmatmul.bf16.gmra.mxu0 %v1480
      %v1561 = vpop.f32.mrf.mxu0
      %v1562 = vadd.f32 0.0, %v1561
      %v1563 = vpop.f32.mrf.mxu0
      %v1564 = vadd.f32 0.0, %v1563
      %1565 = vmatmul.bf16.gmra.mxu0 %v1483
      %v1566 = vpop.f32.mrf.mxu0
      %v1567 = vadd.f32 0.0, %v1566
      %v1568 = vpop.f32.mrf.mxu0
      %v1569 = vadd.f32 0.0, %v1568
      %1570 = vmatmul.bf16.gmra.mxu0 %v1486
      %v1571 = vpop.f32.mrf.mxu0
      %v1572 = vadd.f32 0.0, %v1571
      %v1573 = vpop.f32.mrf.mxu0
      %v1574 = vadd.f32 0.0, %v1573
      %1575 = vmatmul.bf16.gmra.mxu0 %v1489
      %v1576 = vpop.f32.mrf.mxu0
      %v1577 = vadd.f32 0.0, %v1576
      %v1578 = vpop.f32.mrf.mxu0
      %v1579 = vadd.f32 0.0, %v1578
      %1580 = vmatmul.bf16.gmra.mxu0 %v1492
      %v1581 = vpop.f32.mrf.mxu0
      %v1582 = vadd.f32 0.0, %v1581
      %v1583 = vpop.f32.mrf.mxu0
      %v1584 = vadd.f32 0.0, %v1583
      %1585 = vmatmul.bf16.gmra.mxu0 %v1495
      %v1586 = vpop.f32.mrf.mxu0
      %v1587 = vadd.f32 0.0, %v1586
      %v1588 = vpop.f32.mrf.mxu0
      %v1589 = vadd.f32 0.0, %v1588
      %1590 = vmatmul.bf16.gmra.mxu0 %v1498
      %v1591 = vpop.f32.mrf.mxu0
      %v1592 = vadd.f32 0.0, %v1591
      %v1593 = vpop.f32.mrf.mxu0
      %v1594 = vadd.f32 0.0, %v1593
      %1595 = vmatmul.bf16.gmra.mxu0 %v1501
      %v1596 = vpop.f32.mrf.mxu0
      %v1597 = vadd.f32 0.0, %v1596
      %v1598 = vpop.f32.mrf.mxu0
      %v1599 = vadd.f32 0.0, %v1598
      %1600 = vdwg.mxu0
      %v1601 = vmul.f32 %v1513, %v702
      %v1602 = vmul.f32 %v1562, %v703
      %v1603 = vmul.f32 %v1515, %v702
      %v1604 = vmul.f32 %v1564, %v703
      %v1605 = vmul.f32 %v1518, %v704
      %v1606 = vmul.f32 %v1567, %v705
      %v1607 = vmul.f32 %v1520, %v704
      %v1608 = vmul.f32 %v1569, %v705
      %v1609 = vmul.f32 %v1523, %v706
      %v1610 = vmul.f32 %v1572, %v707
      %v1611 = vmul.f32 %v1525, %v706
      %v1612 = vmul.f32 %v1574, %v707
      %v1613 = vmul.f32 %v1528, %v708
      %v1614 = vmul.f32 %v1577, %v709
      %v1615 = vmul.f32 %v1530, %v708
      %v1616 = vmul.f32 %v1579, %v709
      %v1617 = vmul.f32 %v1533, %v710
      %v1618 = vmul.f32 %v1582, %v711
      %v1619 = vmul.f32 %v1535, %v710
      %v1620 = vmul.f32 %v1584, %v711
      %v1621 = vmul.f32 %v1538, %v712
      %v1622 = vmul.f32 %v1587, %v713
      %v1623 = vmul.f32 %v1540, %v712
      %v1624 = vmul.f32 %v1589, %v713
      %v1625 = vmul.f32 %v1543, %v714
      %v1626 = vmul.f32 %v1592, %v715
      %v1627 = vmul.f32 %v1545, %v714
      %v1628 = vmul.f32 %v1594, %v715
      %v1629 = vmul.f32 %v1548, %v716
      %v1630 = vmul.f32 %v1597, %v717
      %v1631 = vmul.f32 %v1550, %v716
      %v1632 = vmul.f32 %v1599, %v717
      %v1633 = vpack.c.bf16 %v1603, %v1601
      %v1634 = vpack.c.bf16 %v1604, %v1602
      %v1635 = vpack.c.bf16 %v1607, %v1605
      %v1636 = vpack.c.bf16 %v1608, %v1606
      %v1637 = vpack.c.bf16 %v1611, %v1609
      %v1638 = vpack.c.bf16 %v1612, %v1610
      %v1639 = vpack.c.bf16 %v1615, %v1613
      %v1640 = vpack.c.bf16 %v1616, %v1614
      %v1641 = vpack.c.bf16 %v1619, %v1617
      %v1642 = vpack.c.bf16 %v1620, %v1618
      %v1643 = vpack.c.bf16 %v1623, %v1621
      %v1644 = vpack.c.bf16 %v1624, %v1622
      %v1645 = vpack.c.bf16 %v1627, %v1625
      %v1646 = vpack.c.bf16 %v1628, %v1626
      %v1647 = vpack.c.bf16 %v1631, %v1629
      %v1648 = vpack.c.bf16 %v1632, %v1630
      %v1649 = vld [vmem:[%s9] sm:$0xff]
      %v1650 = vld [vmem:[%s9 + $0x8] sm:$0xff]
      %v1651 = vld [vmem:[%s9 + $0x10] sm:$0xff]
      %v1652 = vld [vmem:[%s9 + $0x18] sm:$0xff]
      %v1653 = vld [vmem:[%s9 + $0x20] sm:$0xff]
      %v1654 = vld [vmem:[%s9 + $0x28] sm:$0xff]
      %v1655 = vld [vmem:[%s9 + $0x30] sm:$0xff]
      %v1656 = vld [vmem:[%s9 + $0x38] sm:$0xff]
      %v1657 = vld [vmem:[%s9 + $0x40] sm:$0xff]
      %v1658 = vld [vmem:[%s9 + $0x48] sm:$0xff]
      %v1659 = vld [vmem:[%s9 + $0x50] sm:$0xff]
      %v1660 = vld [vmem:[%s9 + $0x58] sm:$0xff]
      %v1661 = vld [vmem:[%s9 + $0x60] sm:$0xff]
      %v1662 = vld [vmem:[%s9 + $0x68] sm:$0xff]
      %v1663 = vld [vmem:[%s9 + $0x70] sm:$0xff]
      %v1664 = vld [vmem:[%s9 + $0x78] sm:$0xff]
      %v1665 = vld [vmem:[%s9 + $0x80] sm:$0xff]
      %v1666 = vld [vmem:[%s9 + $0x88] sm:$0xff]
      %v1667 = vld [vmem:[%s9 + $0x90] sm:$0xff]
      %v1668 = vld [vmem:[%s9 + $0x98] sm:$0xff]
      %v1669 = vld [vmem:[%s9 + $0xa0] sm:$0xff]
      %v1670 = vld [vmem:[%s9 + $0xa8] sm:$0xff]
      %v1671 = vld [vmem:[%s9 + $0xb0] sm:$0xff]
      %v1672 = vld [vmem:[%s9 + $0xb8] sm:$0xff]
      %v1673 = vld [vmem:[%s9 + $0xc0] sm:$0xff]
      %v1674 = vld [vmem:[%s9 + $0xc8] sm:$0xff]
      %v1675 = vld [vmem:[%s9 + $0xd0] sm:$0xff]
      %v1676 = vld [vmem:[%s9 + $0xd8] sm:$0xff]
      %v1677 = vld [vmem:[%s9 + $0xe0] sm:$0xff]
      %v1678 = vld [vmem:[%s9 + $0xe8] sm:$0xff]
      %v1679 = vld [vmem:[%s9 + $0xf0] sm:$0xff]
      %v1680 = vld [vmem:[%s9 + $0xf8] sm:$0xff]
      %v1681 = vpack.c.bf16 %v1650, %v1649
      %v1682 = vpack.c.bf16 %v1652, %v1651
      %v1683 = vpack.c.bf16 %v1654, %v1653
      %v1684 = vpack.c.bf16 %v1656, %v1655
      %v1685 = vpack.c.bf16 %v1658, %v1657
      %v1686 = vpack.c.bf16 %v1660, %v1659
      %v1687 = vpack.c.bf16 %v1662, %v1661
      %v1688 = vpack.c.bf16 %v1664, %v1663
      %v1689 = vpack.c.bf16 %v1666, %v1665
      %v1690 = vpack.c.bf16 %v1668, %v1667
      %v1691 = vpack.c.bf16 %v1670, %v1669
      %v1692 = vpack.c.bf16 %v1672, %v1671
      %v1693 = vpack.c.bf16 %v1674, %v1673
      %v1694 = vpack.c.bf16 %v1676, %v1675
      %v1695 = vpack.c.bf16 %v1678, %v1677
      %v1696 = vpack.c.bf16 %v1680, %v1679
      %v1697 = vld [vmem:[%s10] sm:$0x1]
      %v1699 = vperm.slane %v1697, 0
      %1701 = vmatpush.bf16.msra.mxu0 %v1688
      %1702 = vmatpush.bf16.msra.mxu0 %v1687
      %1703 = vmatpush.bf16.msra.mxu0 %v1686
      %1704 = vmatpush.bf16.msra.mxu0 %v1685
      %1705 = vmatpush.bf16.msra.mxu0 %v1684
      %1706 = vmatpush.bf16.msra.mxu0 %v1683
      %1707 = vmatpush.bf16.msra.mxu0 %v1682
      %1708 = vmatpush.bf16.msra.mxu0 %v1681
      %1709 = vmatmul.bf16.gmra.mxu0 %v1633
      %v1710 = vpop.f32.mrf.mxu0
      %v1711 = vadd.f32 %v1699, %v1710
      %v1712 = vpop.f32.mrf.mxu0
      %v1713 = vadd.f32 %v1699, %v1712
      %1714 = vmatmul.bf16.gmra.mxu0 %v1635
      %v1715 = vpop.f32.mrf.mxu0
      %v1716 = vadd.f32 %v1699, %v1715
      %v1717 = vpop.f32.mrf.mxu0
      %v1718 = vadd.f32 %v1699, %v1717
      %1719 = vmatmul.bf16.gmra.mxu0 %v1637
      %v1720 = vpop.f32.mrf.mxu0
      %v1721 = vadd.f32 %v1699, %v1720
      %v1722 = vpop.f32.mrf.mxu0
      %v1723 = vadd.f32 %v1699, %v1722
      %1724 = vmatmul.bf16.gmra.mxu0 %v1639
      %v1725 = vpop.f32.mrf.mxu0
      %v1726 = vadd.f32 %v1699, %v1725
      %v1727 = vpop.f32.mrf.mxu0
      %v1728 = vadd.f32 %v1699, %v1727
      %1729 = vmatmul.bf16.gmra.mxu0 %v1641
      %v1730 = vpop.f32.mrf.mxu0
      %v1731 = vadd.f32 %v1699, %v1730
      %v1732 = vpop.f32.mrf.mxu0
      %v1733 = vadd.f32 %v1699, %v1732
      %1734 = vmatmul.bf16.gmra.mxu0 %v1643
      %v1735 = vpop.f32.mrf.mxu0
      %v1736 = vadd.f32 %v1699, %v1735
      %v1737 = vpop.f32.mrf.mxu0
      %v1738 = vadd.f32 %v1699, %v1737
      %1739 = vmatmul.bf16.gmra.mxu0 %v1645
      %v1740 = vpop.f32.mrf.mxu0
      %v1741 = vadd.f32 %v1699, %v1740
      %v1742 = vpop.f32.mrf.mxu0
      %v1743 = vadd.f32 %v1699, %v1742
      %1744 = vmatmul.bf16.gmra.mxu0 %v1647
      %v1745 = vpop.f32.mrf.mxu0
      %v1746 = vadd.f32 %v1699, %v1745
      %v1747 = vpop.f32.mrf.mxu0
      %v1748 = vadd.f32 %v1699, %v1747
      %1749 = vdwg.mxu0
      %1750 = vmatpush.bf16.msra.mxu0 %v1696
      %1751 = vmatpush.bf16.msra.mxu0 %v1695
      %1752 = vmatpush.bf16.msra.mxu0 %v1694
      %1753 = vmatpush.bf16.msra.mxu0 %v1693
      %1754 = vmatpush.bf16.msra.mxu0 %v1692
      %1755 = vmatpush.bf16.msra.mxu0 %v1691
      %1756 = vmatpush.bf16.msra.mxu0 %v1690
      %1757 = vmatpush.bf16.msra.mxu0 %v1689
      %1758 = vmatmul.bf16.gmra.mxu0 %v1634
      %v1759 = vpop.f32.mrf.mxu0
      %v1760 = vadd.f32 %v1711, %v1759
      %v1761 = vpop.f32.mrf.mxu0
      %v1762 = vadd.f32 %v1713, %v1761
      %1763 = vmatmul.bf16.gmra.mxu0 %v1636
      %v1764 = vpop.f32.mrf.mxu0
      %v1765 = vadd.f32 %v1716, %v1764
      %v1766 = vpop.f32.mrf.mxu0
      %v1767 = vadd.f32 %v1718, %v1766
      %1768 = vmatmul.bf16.gmra.mxu0 %v1638
      %v1769 = vpop.f32.mrf.mxu0
      %v1770 = vadd.f32 %v1721, %v1769
      %v1771 = vpop.f32.mrf.mxu0
      %v1772 = vadd.f32 %v1723, %v1771
      %1773 = vmatmul.bf16.gmra.mxu0 %v1640
      %v1774 = vpop.f32.mrf.mxu0
      %v1775 = vadd.f32 %v1726, %v1774
      %v1776 = vpop.f32.mrf.mxu0
      %v1777 = vadd.f32 %v1728, %v1776
      %1778 = vmatmul.bf16.gmra.mxu0 %v1642
      %v1779 = vpop.f32.mrf.mxu0
      %v1780 = vadd.f32 %v1731, %v1779
      %v1781 = vpop.f32.mrf.mxu0
      %v1782 = vadd.f32 %v1733, %v1781
      %1783 = vmatmul.bf16.gmra.mxu0 %v1644
      %v1784 = vpop.f32.mrf.mxu0
      %v1785 = vadd.f32 %v1736, %v1784
      %v1786 = vpop.f32.mrf.mxu0
      %v1787 = vadd.f32 %v1738, %v1786
      %1788 = vmatmul.bf16.gmra.mxu0 %v1646
      %v1789 = vpop.f32.mrf.mxu0
      %v1790 = vadd.f32 %v1741, %v1789
      %v1791 = vpop.f32.mrf.mxu0
      %v1792 = vadd.f32 %v1743, %v1791
      %1793 = vmatmul.bf16.gmra.mxu0 %v1648
      %v1794 = vpop.f32.mrf.mxu0
      %v1795 = vadd.f32 %v1746, %v1794
      %v1796 = vpop.f32.mrf.mxu0
      %v1797 = vadd.f32 %v1748, %v1796
      %1798 = vdwg.mxu0
      %1799 = vst.msk [vmem:[%s427] sm:$0xff] %vm464, %v1760
      %1800 = vst.msk [vmem:[%s427 + $0x8] sm:$0xff] %vm464, %v1762
      %1801 = vst.msk [vmem:[%s427 + $0x10] sm:$0xff] %vm464, %v1765
      %1802 = vst.msk [vmem:[%s427 + $0x18] sm:$0xff] %vm464, %v1767
      %1803 = vst.msk [vmem:[%s427 + $0x20] sm:$0xff] %vm464, %v1770
      %1804 = vst.msk [vmem:[%s427 + $0x28] sm:$0xff] %vm464, %v1772
      %1805 = vst.msk [vmem:[%s427 + $0x30] sm:$0xff] %vm464, %v1775
      %1806 = vst.msk [vmem:[%s427 + $0x38] sm:$0xff] %vm464, %v1777
      %1807 = vst.msk [vmem:[%s427 + $0x40] sm:$0xff] %vm464, %v1780
      %1808 = vst.msk [vmem:[%s427 + $0x48] sm:$0xff] %vm464, %v1782
      %1809 = vst.msk [vmem:[%s427 + $0x50] sm:$0xff] %vm464, %v1785
      %1810 = vst.msk [vmem:[%s427 + $0x58] sm:$0xff] %vm464, %v1787
      %1811 = vst.msk [vmem:[%s427 + $0x60] sm:$0xff] %vm464, %v1790
      %1812 = vst.msk [vmem:[%s427 + $0x68] sm:$0xff] %vm464, %v1792
      %1813 = vst.msk [vmem:[%s427 + $0x70] sm:$0xff] %vm464, %v1795
      %1814 = vst.msk [vmem:[%s427 + $0x78] sm:$0xff] %vm464, %v1797
      %s1815 = smul.u32 16, %s22
      %p1816 = scmp.lt.s32.totalorder %s1815, 31
      %s1817 = scalar_select %p1816, %s1815, 31
      %s1818 = smul.addr %s1817, 8
      %s1819 = scalar_lea.vmem %s11, %s1818
      // Predicated region
      $region65: #{gatv2conv_forward.1} parent=63 // pred_check
        %p1820 = pneg %p286
      $region66: #{gatv2conv_forward.1} parent=63 // pred_check_branch
        %1822 = sbr.rel (%p1820) target = $region68
      $region67: #{gatv2conv_forward.1} parent=63 // pred_region
        %s1823 = smul.u32 16, %s22
      $region68: #{gatv2conv_forward.1} parent=63 // pred_fallthru
        _
    $region64: #{gatv2conv_forward.1} parent=5 // pred_fallthru
      _
    %p1824 = scmp.le.s32.totalorder 2, %s17
    // Predicated region
    $region69: #{gatv2conv_forward.1} parent=5 // pred_check
      %p1825 = pneg %p1824
    $region70: #{gatv2conv_forward.1} parent=5 // pred_check_branch
      %1827 = sbr.rel (%p1825) target = $region72
    $region71: #{gatv2conv_forward.1} parent=5 // pred_region
      %s1828 = ssub.s32 %s17, 2
      // Predicated region
      $region73: #{gatv2conv_forward.1} parent=71 // pred_check
        %p1829 = pneg %p292
      $region74: #{gatv2conv_forward.1} parent=71 // pred_check_branch
        %1831 = sbr.rel (%p1829) target = $region76
      $region75: #{gatv2conv_forward.1} parent=71 // pred_region
        %s1832 = smul.u32 16, %s23
        %p1833 = scmp.lt.s32.totalorder %s1832, 31
        %s1834 = scalar_select %p1833, %s1832, 31
        %s1835 = smul.addr %s1834, 8
        %s1836 = scalar_lea.vmem %s11, %s1835
      $region76: #{gatv2conv_forward.1} parent=71 // pred_fallthru
        _
    $region72: #{gatv2conv_forward.1} parent=5 // pred_fallthru
      _
  $region6: #{gatv2conv_forward.1} parent=0 // loop_footer
    %s21 = sadd.s32 1, %s17
  $region7: #{gatv2conv_forward.1} parent=0 // loop_footer_branch
    %16 = sbr.rel target = $region3
  $region8: #{gatv2conv_forward.1} parent=0 // loop_exit
    _

</llo_original>
